<compile_context>
chip_gen: v7x
topology: tpu7x:2x2x1
jax: 0.10.0
libtpu: 0.0.40
codegen_flags: <defaults>
</compile_context>

<pallas_src>
import functools

import numpy as np
import jax
import jax.numpy as jnp
from jax import lax
from jax.experimental import pallas as pl
from jax.experimental.pallas import tpu as pltpu


def _bilinear_matrix(out_size: int, in_size: int) -> np.ndarray:
    """1-D bilinear interpolation matrix M (out, in), align_corners=True.

    Every row sums to 1.0 (asserted): this is what makes adding the score bias
    *before* the upsample matmuls exactly equivalent to adding it after.
    """
    if out_size == 1 or in_size == 1:
        m = np.zeros((out_size, in_size), np.float32)
        m[:, 0] = 1.0
    else:
        idx = np.arange(out_size, dtype=np.float64)
        src = idx * (in_size - 1) / (out_size - 1)
        i0 = np.floor(src).astype(np.int64)
        i1 = np.minimum(i0 + 1, in_size - 1)
        frac = (src - i0).astype(np.float32)
        m = np.zeros((out_size, in_size), np.float32)
        m[np.arange(out_size), i0] += (1.0 - frac)
        m[np.arange(out_size), i1] += frac
    assert np.allclose(m.sum(axis=1), 1.0, atol=1e-5)
    return m


# ----------------------------------------------------------------------------
# VMEM accounting (generation-aware, (sublane, 128)-padded layouts).
# ----------------------------------------------------------------------------
def _vmem_capacity_bytes() -> int:
    try:
        return int(pltpu.get_tpu_info().vmem_capacity_bytes)
    except Exception:
        return 64 << 20          # conservative fallback = v7x per-TC VMEM


def _padded_bytes(shape, dtype) -> int:
    """Bytes of a VMEM buffer with last-two-dims (sublane, 128) tiling."""
    itemsize = int(jnp.dtype(dtype).itemsize)
    sublane = {4: 8, 2: 16, 1: 32}[itemsize]
    dims = list(shape)
    dims[-1] = -(-dims[-1] // 128) * 128
    if len(dims) >= 2:
        dims[-2] = -(-dims[-2] // sublane) * sublane
    total = itemsize
    for d in dims:
        total *= int(d)
    return total


def _vmem_bytes_estimate(tile_rows, *, cin, cmid, cout, h, w, hout, wout) -> int:
    f32, bf16 = jnp.float32, jnp.bfloat16
    est = 0
    # double-buffered pipelined input / weight blocks
    est += 2 * _padded_bytes((1, cin, h, w), f32)
    est += 2 * _padded_bytes((cin, 9), f32)
    est += 2 * _padded_bytes((cmid, cin), bf16)
    est += 2 * _padded_bytes((cmid, 1), f32)
    est += 2 * _padded_bytes((cout, cmid), bf16)
    est += 2 * _padded_bytes((cout, 1), f32)
    est += 2 * _padded_bytes((hout, h), bf16)
    est += 2 * _padded_bytes((w, wout), bf16)
    # persistent scratches
    est += _padded_bytes((cin, h + 2, w + 2), f32)      # padded input halo
    est += _padded_bytes((cout, hout, w), bf16)         # row-interped scores
    # once-per-batch live intermediates (dw / act / s), counted conservatively
    est += _padded_bytes((cin, h, w), f32)
    est += _padded_bytes((cmid, h * w), f32)
    est += _padded_bytes((cout, h * w), f32)
    # double-buffered output tile + per-tile matmul result
    est += 2 * _padded_bytes((1, cout, tile_rows, wout), f32)
    est += _padded_bytes((cout * tile_rows, wout), f32)
    return est


def _auto_tile_rows(*, cin, cmid, cout, h, w, hout, wout, budget_bytes) -> int:
    cands = [d for d in range(8, hout + 1, 8) if hout % d == 0]
    if hout not in cands:
        cands.append(hout)
    fitting = [d for d in cands
               if _vmem_bytes_estimate(d, cin=cin, cmid=cmid, cout=cout,
                                       h=h, w=w, hout=hout, wout=wout)
               <= budget_bytes]
    return max(fitting) if fitting else min(cands)


# ----------------------------------------------------------------------------
# Kernel
# ----------------------------------------------------------------------------
def _dense_prediction_kernel(x_ref, wdw_ref, wpw_ref, bnb_ref, wsc_ref,
                             bsc_ref, wh_ref, wwt_ref, o_ref, xp_ref, rs_ref):
    # x_ref:   (1, Cin, H, W)       unpadded NCHW input block (one batch elem)
    # wdw_ref: (Cin, 9)   f32       depthwise 3x3 taps (tap index = dy*3+dx)
    # wpw_ref: (Cmid, Cin) bf16     pointwise 1x1 weights, BN scale folded in
    # bnb_ref: (Cmid, 1)  f32       folded BN shift
    # wsc_ref: (Cout, Cmid) bf16    score 1x1 weights
    # bsc_ref: (Cout, 1)  f32       score bias (pre-upsample; interp rows sum to 1)
    # wh_ref:  (Hout, H)  bf16      bilinear row-interp matrix (full)
    # wwt_ref: (W, Wout)  bf16      bilinear col-interp matrix, transposed
    # o_ref:   (1, Cout, THO, Wout) NCHW output tile (Wout on lanes)
    # xp_ref:  (Cin, H+2, W+2) f32  scratch: zero-padded input (in-kernel halo)
    # rs_ref:  (Cout, Hout, W) bf16 scratch: row-interped scores (per-batch resident)
    _, cin, h, w = x_ref.shape
    cout, tho, wout = o_ref.shape[1], o_ref.shape[2], o_ref.shape[3]
    i = pl.program_id(1)

    # ---- once per batch element: conv stack + row interp into the scratch ----
    @pl.when(i == 0)
    def _conv_stack_and_row_interp():
        # Build the zero-padded input in VMEM (no wrapper-side jnp.pad HBM pass).
        xp_ref[...] = jnp.zeros_like(xp_ref)
        xp_ref[:, 1:h + 1, 1:w + 1] = x_ref[0].astype(jnp.float32)
        xp = xp_ref[...]
        wdw = wdw_ref[...]

        # depthwise 3x3, stride 1: init from tap (0,0) (no zero-fill + extra add).
        # TODO(synk): flatten spatial onto lanes + pltpu.roll for dense-lane VPU;
        # this stage now runs once per batch element so it is off the hot path.
        dw = xp[:, 0:h, 0:w] * wdw[:, 0][:, None, None]
        for t in range(1, 9):
            dy, dx = divmod(t, 3)
            dw = dw + xp[:, dy:dy + h, dx:dx + w] * wdw[:, t][:, None, None]

        # pointwise 1x1 (BN scale folded into weights) + shift + ReLU  (MXU bf16)
        act = jnp.dot(wpw_ref[...], dw.reshape(cin, h * w).astype(jnp.bfloat16),
                      preferred_element_type=jnp.float32)          # (Cmid, H*W)
        act = jnp.maximum(act + bnb_ref[...], 0.0)

        # score 1x1 + bias (pre-upsample; valid because interp rows sum to 1)
        s = jnp.dot(wsc_ref[...], act.astype(jnp.bfloat16),
                    preferred_element_type=jnp.float32) + bsc_ref[...]
        s = s.reshape(cout, h, w).astype(jnp.bfloat16)             # (Cout, H, W)

        # bilinear row interp (align_corners=True): rs[c] = wh @ s[c].
        # Cout (= #classes) is small -> unrolled per-channel MXU matmuls written
        # straight into the scratch; no (Cout, Hout, H) broadcast is materialized.
        wh = wh_ref[...]
        for c in range(cout):
            rs_ref[c] = jnp.dot(wh, s[c],
                                preferred_element_type=jnp.float32
                                ).astype(rs_ref.dtype)

    # ---- every tile: bilinear column interp only, as ONE lane-dense matmul ----
    # Result rows are already ordered (Cout, THO) -> NCHW store with free reshapes.
    r0 = pl.multiple_of(i * tho, tho)
    rs_tile = rs_ref[:, pl.ds(r0, tho), :]                         # (Cout, THO, W) bf16
    u = jnp.dot(rs_tile.reshape(cout * tho, w), wwt_ref[...],
                preferred_element_type=jnp.float32)                # (Cout*THO, Wout)
    o_ref[0] = u.reshape(cout, tho, wout).astype(o_ref.dtype)


# ----------------------------------------------------------------------------
# Wrapper
# ----------------------------------------------------------------------------
@functools.partial(jax.jit, static_argnames=("up_rate", "tile_rows"))
def dense_prediction_forward(x_nchw, params, up_rate, tile_rows=None):
    """x_nchw: (N, Cin, H, W) f32 -> (N, Cout, H*up_rate, W*up_rate) f32 (NCHW)."""
    assert up_rate > 1, "module only defines `output` when up_rate > 1"
    n, cin, h, w = x_nchw.shape
    cmid = params["w_pw"].shape[1]
    cout = params["w_score"].shape[1]
    hout, wout = h * up_rate, w * up_rate

    vmem_cap = _vmem_capacity_bytes()
    if tile_rows is None:
        tile_rows = _auto_tile_rows(cin=cin, cmid=cmid, cout=cout, h=h, w=w,
                                    hout=hout, wout=wout,
                                    budget_bytes=vmem_cap // 2)
    assert hout % tile_rows == 0, (hout, tile_rows)
    assert tile_rows % 8 == 0 or tile_rows == hout, tile_rows

    est = _vmem_bytes_estimate(tile_rows, cin=cin, cmid=cmid, cout=cout,
                               h=h, w=w, hout=hout, wout=wout)
    vmem_limit = int(min(int(vmem_cap * 0.9), max(2 * est, 32 << 20)))

    # Fold BatchNorm (inference) into the pointwise weights + a single shift.
    eps = 1e-5
    bn_scale = params["bn_gamma"] * lax.rsqrt(params["bn_var"] + eps)
    bn_shift = params["bn_beta"] - params["bn_mean"] * bn_scale

    w_dw = params["w_dw"].reshape(9, cin).T                         # (Cin, 9) f32
    w_pw = (params["w_pw"] * bn_scale[None, :]).T.astype(jnp.bfloat16)   # (Cmid, Cin)
    bnb = bn_shift.reshape(cmid, 1)                                 # (Cmid, 1) f32
    w_sc = params["w_score"].T.astype(jnp.bfloat16)                 # (Cout, Cmid)
    bsc = params["b_score"].reshape(cout, 1)                        # (Cout, 1) f32
    wh = jnp.asarray(_bilinear_matrix(hout, h), jnp.bfloat16)       # (Hout, H)
    ww_t = jnp.asarray(_bilinear_matrix(wout, w).T, jnp.bfloat16)   # (W, Wout)

    grid = (n, hout // tile_rows)

    out = pl.pallas_call(
        _dense_prediction_kernel,
        out_shape=jax.ShapeDtypeStruct((n, cout, hout, wout), jnp.float32),
        grid=grid,
        in_specs=[
            pl.BlockSpec((1, cin, h, w), lambda b, i: (b, 0, 0, 0)),
            pl.BlockSpec((cin, 9), lambda b, i: (0, 0)),
            pl.BlockSpec((cmid, cin), lambda b, i: (0, 0)),
            pl.BlockSpec((cmid, 1), lambda b, i: (0, 0)),
            pl.BlockSpec((cout, cmid), lambda b, i: (0, 0)),
            pl.BlockSpec((cout, 1), lambda b, i: (0, 0)),
            pl.BlockSpec((hout, h), lambda b, i: (0, 0)),
            pl.BlockSpec((w, wout), lambda b, i: (0, 0)),
        ],
        out_specs=pl.BlockSpec((1, cout, tile_rows, wout),
                               lambda b, i: (b, 0, i, 0)),
        scratch_shapes=[
            pltpu.VMEM((cin, h + 2, w + 2), jnp.float32),   # padded input (halo)
            pltpu.VMEM((cout, hout, w), jnp.bfloat16),      # row-interped scores
        ],
        compiler_params=pltpu.CompilerParams(
            # Batch axis 'parallel' keeps both v7x TensorCores busy; the Hout
            # tile axis MUST be 'arbitrary' because tiles of one batch element
            # reuse the rs scratch written at i == 0.
            # TODO(synk): for N == 1 on v7x, split Hout into two core-parallel
            # halves (each with its own resident scratch) to use both TCs.
            dimension_semantics=("parallel", "arbitrary"),
            vmem_limit_bytes=vmem_limit,
        ),
    )(x_nchw, w_dw, w_pw, bnb, w_sc, bsc, wh, ww_t)
    # TODO(synk): emit bf16 output if the downstream consumer allows it; the
    # upsampled write dominates HBM bytes (biggest win on v5e's ~820 GB/s).
    return out


# ----------------------------------------------------------------------------
# Pure-JAX reference (same math as the PyTorch module), for validation.
# ----------------------------------------------------------------------------
def _reference_forward(x, params, up_rate):
    hp = lax.Precision.HIGHEST
    n, cin, h, w = x.shape
    xp = jnp.pad(x, ((0, 0), (0, 0), (1, 1), (1, 1)))
    dw = jnp.zeros((n, cin, h, w), jnp.float32)
    for dy in range(3):
        for dx in range(3):
            dw = dw + (xp[:, :, dy:dy + h, dx:dx + w]
                       * params["w_dw"][dy, dx][None, :, None, None])
    pw = jnp.einsum("nchw,cm->nmhw", dw, params["w_pw"], precision=hp)
    scale = params["bn_gamma"] * lax.rsqrt(params["bn_var"] + 1e-5)
    shift = params["bn_beta"] - params["bn_mean"] * scale
    act = jnp.maximum(pw * scale[None, :, None, None]
                      + shift[None, :, None, None], 0.0)
    s = jnp.einsum("nmhw,mo->nohw", act, params["w_score"], precision=hp)
    s = s + params["b_score"][None, :, None, None]
    wh = jnp.asarray(_bilinear_matrix(h * up_rate, h))
    ww = jnp.asarray(_bilinear_matrix(w * up_rate, w))
    t = jnp.einsum("rh,nohw->norw", wh, s, precision=hp)
    return jnp.einsum("qw,norw->norq", ww, t, precision=hp)


def init_params(key, in_channels, mid_channels, out_channels):
    ks = jax.random.split(key, 8)
    scale = 0.1
    return {
        # depthwise 3x3 (groups=in_channels, bias=False): (3, 3, Cin)
        # (PyTorch stores (Cin,1,3,3); a real weight port must transpose.)
        "w_dw": scale * jax.random.normal(ks[0], (3, 3, in_channels), jnp.float32),
        # pointwise 1x1 (bias=False): (Cin, Cmid)
        "w_pw": scale * jax.random.normal(ks[1], (in_channels, mid_channels), jnp.float32),
        # BatchNorm2d(mid_channels) running stats / affine params
        "bn_gamma": 1.0 + 0.1 * jax.random.normal(ks[2], (mid_channels,), jnp.float32),
        "bn_beta": 0.1 * jax.random.normal(ks[3], (mid_channels,), jnp.float32),
        "bn_mean": 0.1 * jax.random.normal(ks[4], (mid_channels,), jnp.float32),
        "bn_var": jnp.abs(1.0 + 0.1 * jax.random.normal(ks[5], (mid_channels,), jnp.float32)),
        # score: Conv2d(mid, out, 1) with bias: (Cmid, Cout), (Cout,)
        "w_score": scale * jax.random.normal(ks[6], (mid_channels, out_channels), jnp.float32),
        "b_score": 0.1 * jax.random.normal(ks[7], (out_channels,), jnp.float32),
    }


if __name__ == "__main__":
    # fcn32-style configuration: up_rate=32 -> Wout = 32*W >= 128, so the output
    # stores are naturally lane-dense, exactly like the production use-case.
    N, Cin, H, W = 2, 8, 8, 8
    Cmid, Cout, up_rate = 16, 8, 32

    key = jax.random.PRNGKey(0)
    kx, kp = jax.random.split(key)
    x = jax.random.normal(kx, (N, Cin, H, W), jnp.float32)   # NCHW like PyTorch
    params = init_params(kp, Cin, Cmid, Cout)

    # tile_rows=64 -> grid (N, Hout/64) = (2, 4): exercises the per-batch
    # resident-scratch reuse across multiple Hout tiles.
    y = dense_prediction_forward(x, params, up_rate=up_rate, tile_rows=64)
    y = jax.block_until_ready(y)

    assert y.shape == (N, Cout, H * up_rate, W * up_rate), y.shape
    assert bool(jnp.all(jnp.isfinite(y)))

    y_ref = _reference_forward(x, params, up_rate)
    max_err = float(jnp.max(jnp.abs(y - y_ref)))
    # bf16 MXU operands (weights / activations / interp matrices) -> tolerance
    # is looser than a pure-f32 comparison.
    assert bool(jnp.allclose(y, y_ref, rtol=5e-2, atol=5e-3)), max_err

    print("KERNEL_OK")
</pallas_src>

<mosaic_0001>
module attributes {stable_mosaic.version = 11 : i64} {
  func.func @_dense_prediction_kernel(%arg0: i32, %arg1: i32, %arg2: memref<1x8x8x8xf32, #tpu.memory_space<vmem>>, %arg3: memref<8x9xf32, #tpu.memory_space<vmem>>, %arg4: memref<16x8xbf16, #tpu.memory_space<vmem>>, %arg5: memref<16x1xf32, #tpu.memory_space<vmem>>, %arg6: memref<8x16xbf16, #tpu.memory_space<vmem>>, %arg7: memref<8x1xf32, #tpu.memory_space<vmem>>, %arg8: memref<256x8xbf16, #tpu.memory_space<vmem>>, %arg9: memref<8x256xbf16, #tpu.memory_space<vmem>>, %arg10: memref<1x8x64x256xf32, #tpu.memory_space<vmem>>, %arg11: memref<8x10x10xf32, #tpu.memory_space<vmem>>, %arg12: memref<8x256x8xbf16, #tpu.memory_space<vmem>>) attributes {dimension_semantics = [#tpu.dimension_semantics<parallel>, #tpu.dimension_semantics<arbitrary>], iteration_bounds = array<i64: 2, 4>, scalar_prefetch = 0 : i64, scratch_operands = 2 : i64, tpu.core_type = #tpu.core_type<tc>, window_params = [{transform_indices = @transform_0, window_bounds = array<i64: 1, 8, 8, 8>}, {pipeline_mode = #tpu.pipeline_mode<synchronous>, transform_indices = @transform_1, window_bounds = array<i64: 8, 9>}, {pipeline_mode = #tpu.pipeline_mode<synchronous>, transform_indices = @transform_2, window_bounds = array<i64: 16, 8>}, {pipeline_mode = #tpu.pipeline_mode<synchronous>, transform_indices = @transform_3, window_bounds = array<i64: 16, 1>}, {pipeline_mode = #tpu.pipeline_mode<synchronous>, transform_indices = @transform_4, window_bounds = array<i64: 8, 16>}, {pipeline_mode = #tpu.pipeline_mode<synchronous>, transform_indices = @transform_5, window_bounds = array<i64: 8, 1>}, {pipeline_mode = #tpu.pipeline_mode<synchronous>, transform_indices = @transform_6, window_bounds = array<i64: 256, 8>}, {pipeline_mode = #tpu.pipeline_mode<synchronous>, transform_indices = @transform_7, window_bounds = array<i64: 8, 256>}, {transform_indices = @transform_8, window_bounds = array<i64: 1, 8, 64, 256>}]} {
    %c0_i32 = arith.constant 0 : i32
    %0 = arith.cmpi eq, %arg1, %c0_i32 : i32
    %1 = arith.extui %0 : i1 to i32
    %c0_i32_0 = arith.constant 0 : i32
    %2 = arith.cmpi ne, %1, %c0_i32_0 : i32
    scf.if %2 {
      %cst_8 = arith.constant 0.000000e+00 : f32
      %14 = vector.broadcast %cst_8 : f32 to vector<8x10x10xf32>
      %c0_9 = arith.constant 0 : index
      %c0_10 = arith.constant 0 : index
      %c0_11 = arith.constant 0 : index
      %15 = vector.load %arg11[%c0_9, %c0_10, %c0_11] : memref<8x10x10xf32, #tpu.memory_space<vmem>>, vector<8x10x10xf32>
      tpu.vector_store %arg11[%c0_9, %c0_10, %c0_11], %14 {strides = array<i32>} : memref<8x10x10xf32, #tpu.memory_space<vmem>>, vector<8x10x10xf32>,
      %c0_12 = arith.constant 0 : index
      %c0_13 = arith.constant 0 : index
      %c0_14 = arith.constant 0 : index
      %c0_15 = arith.constant 0 : index
      %16 = vector.load %arg2[%c0_12, %c0_13, %c0_14, %c0_15] : memref<1x8x8x8xf32, #tpu.memory_space<vmem>>, vector<1x8x8x8xf32>
      %17 = vector.shape_cast %16 : vector<1x8x8x8xf32> to vector<8x8x8xf32>
      %c0_16 = arith.constant 0 : index
      %c1 = arith.constant 1 : index
      %c1_17 = arith.constant 1 : index
      %18 = vector.load %arg11[%c0_16, %c1, %c1_17] : memref<8x10x10xf32, #tpu.memory_space<vmem>>, vector<8x8x8xf32>
      tpu.vector_store %arg11[%c0_16, %c1, %c1_17], %17 {strides = array<i32>} : memref<8x10x10xf32, #tpu.memory_space<vmem>>, vector<8x8x8xf32>,
      %c0_18 = arith.constant 0 : index
      %c0_19 = arith.constant 0 : index
      %c0_20 = arith.constant 0 : index
      %19 = vector.load %arg11[%c0_18, %c0_19, %c0_20] : memref<8x10x10xf32, #tpu.memory_space<vmem>>, vector<8x10x10xf32>
      %c0_21 = arith.constant 0 : index
      %c0_22 = arith.constant 0 : index
      %20 = vector.load %arg3[%c0_21, %c0_22] : memref<8x9xf32, #tpu.memory_space<vmem>>, vector<8x9xf32>
      %21 = vector.extract_strided_slice %19 {offsets = [0, 0, 0], sizes = [8, 8, 8], strides = [1, 1, 1]} : vector<8x10x10xf32> to vector<8x8x8xf32>
      %22 = vector.extract_strided_slice %20 {offsets = [0, 0], sizes = [8, 1], strides = [1, 1]} : vector<8x9xf32> to vector<8x1xf32>
      %23 = vector.shape_cast %22 : vector<8x1xf32> to vector<8xf32>
      %24 = vector.shape_cast %23 : vector<8xf32> to vector<8x1x1xf32>
      %25 = vector.broadcast %24 : vector<8x1x1xf32> to vector<8x8x8xf32>
      %26 = arith.mulf %21, %25 : vector<8x8x8xf32>
      %27 = vector.extract_strided_slice %19 {offsets = [0, 0, 1], sizes = [8, 8, 8], strides = [1, 1, 1]} : vector<8x10x10xf32> to vector<8x8x8xf32>
      %28 = vector.extract_strided_slice %20 {offsets = [0, 1], sizes = [8, 1], strides = [1, 1]} : vector<8x9xf32> to vector<8x1xf32>
      %29 = vector.shape_cast %28 : vector<8x1xf32> to vector<8xf32>
      %30 = vector.shape_cast %29 : vector<8xf32> to vector<8x1x1xf32>
      %31 = vector.broadcast %30 : vector<8x1x1xf32> to vector<8x8x8xf32>
      %32 = arith.mulf %27, %31 : vector<8x8x8xf32>
      %33 = arith.addf %26, %32 : vector<8x8x8xf32>
      %34 = vector.extract_strided_slice %19 {offsets = [0, 0, 2], sizes = [8, 8, 8], strides = [1, 1, 1]} : vector<8x10x10xf32> to vector<8x8x8xf32>
      %35 = vector.extract_strided_slice %20 {offsets = [0, 2], sizes = [8, 1], strides = [1, 1]} : vector<8x9xf32> to vector<8x1xf32>
      %36 = vector.shape_cast %35 : vector<8x1xf32> to vector<8xf32>
      %37 = vector.shape_cast %36 : vector<8xf32> to vector<8x1x1xf32>
      %38 = vector.broadcast %37 : vector<8x1x1xf32> to vector<8x8x8xf32>
      %39 = arith.mulf %34, %38 : vector<8x8x8xf32>
      %40 = arith.addf %33, %39 : vector<8x8x8xf32>
      %41 = vector.extract_strided_slice %19 {offsets = [0, 1, 0], sizes = [8, 8, 8], strides = [1, 1, 1]} : vector<8x10x10xf32> to vector<8x8x8xf32>
      %42 = vector.extract_strided_slice %20 {offsets = [0, 3], sizes = [8, 1], strides = [1, 1]} : vector<8x9xf32> to vector<8x1xf32>
      %43 = vector.shape_cast %42 : vector<8x1xf32> to vector<8xf32>
      %44 = vector.shape_cast %43 : vector<8xf32> to vector<8x1x1xf32>
      %45 = vector.broadcast %44 : vector<8x1x1xf32> to vector<8x8x8xf32>
      %46 = arith.mulf %41, %45 : vector<8x8x8xf32>
      %47 = arith.addf %40, %46 : vector<8x8x8xf32>
      %48 = vector.extract_strided_slice %19 {offsets = [0, 1, 1], sizes = [8, 8, 8], strides = [1, 1, 1]} : vector<8x10x10xf32> to vector<8x8x8xf32>
      %49 = vector.extract_strided_slice %20 {offsets = [0, 4], sizes = [8, 1], strides = [1, 1]} : vector<8x9xf32> to vector<8x1xf32>
      %50 = vector.shape_cast %49 : vector<8x1xf32> to vector<8xf32>
      %51 = vector.shape_cast %50 : vector<8xf32> to vector<8x1x1xf32>
      %52 = vector.broadcast %51 : vector<8x1x1xf32> to vector<8x8x8xf32>
      %53 = arith.mulf %48, %52 : vector<8x8x8xf32>
      %54 = arith.addf %47, %53 : vector<8x8x8xf32>
      %55 = vector.extract_strided_slice %19 {offsets = [0, 1, 2], sizes = [8, 8, 8], strides = [1, 1, 1]} : vector<8x10x10xf32> to vector<8x8x8xf32>
      %56 = vector.extract_strided_slice %20 {offsets = [0, 5], sizes = [8, 1], strides = [1, 1]} : vector<8x9xf32> to vector<8x1xf32>
      %57 = vector.shape_cast %56 : vector<8x1xf32> to vector<8xf32>
      %58 = vector.shape_cast %57 : vector<8xf32> to vector<8x1x1xf32>
      %59 = vector.broadcast %58 : vector<8x1x1xf32> to vector<8x8x8xf32>
      %60 = arith.mulf %55, %59 : vector<8x8x8xf32>
      %61 = arith.addf %54, %60 : vector<8x8x8xf32>
      %62 = vector.extract_strided_slice %19 {offsets = [0, 2, 0], sizes = [8, 8, 8], strides = [1, 1, 1]} : vector<8x10x10xf32> to vector<8x8x8xf32>
      %63 = vector.extract_strided_slice %20 {offsets = [0, 6], sizes = [8, 1], strides = [1, 1]} : vector<8x9xf32> to vector<8x1xf32>
      %64 = vector.shape_cast %63 : vector<8x1xf32> to vector<8xf32>
      %65 = vector.shape_cast %64 : vector<8xf32> to vector<8x1x1xf32>
      %66 = vector.broadcast %65 : vector<8x1x1xf32> to vector<8x8x8xf32>
      %67 = arith.mulf %62, %66 : vector<8x8x8xf32>
      %68 = arith.addf %61, %67 : vector<8x8x8xf32>
      %69 = vector.extract_strided_slice %19 {offsets = [0, 2, 1], sizes = [8, 8, 8], strides = [1, 1, 1]} : vector<8x10x10xf32> to vector<8x8x8xf32>
      %70 = vector.extract_strided_slice %20 {offsets = [0, 7], sizes = [8, 1], strides = [1, 1]} : vector<8x9xf32> to vector<8x1xf32>
      %71 = vector.shape_cast %70 : vector<8x1xf32> to vector<8xf32>
      %72 = vector.shape_cast %71 : vector<8xf32> to vector<8x1x1xf32>
      %73 = vector.broadcast %72 : vector<8x1x1xf32> to vector<8x8x8xf32>
      %74 = arith.mulf %69, %73 : vector<8x8x8xf32>
      %75 = arith.addf %68, %74 : vector<8x8x8xf32>
      %76 = vector.extract_strided_slice %19 {offsets = [0, 2, 2], sizes = [8, 8, 8], strides = [1, 1, 1]} : vector<8x10x10xf32> to vector<8x8x8xf32>
      %77 = vector.extract_strided_slice %20 {offsets = [0, 8], sizes = [8, 1], strides = [1, 1]} : vector<8x9xf32> to vector<8x1xf32>
      %78 = vector.shape_cast %77 : vector<8x1xf32> to vector<8xf32>
      %79 = vector.shape_cast %78 : vector<8xf32> to vector<8x1x1xf32>
      %80 = vector.broadcast %79 : vector<8x1x1xf32> to vector<8x8x8xf32>
      %81 = arith.mulf %76, %80 : vector<8x8x8xf32>
      %82 = arith.addf %75, %81 : vector<8x8x8xf32>
      %c0_23 = arith.constant 0 : index
      %c0_24 = arith.constant 0 : index
      %83 = vector.load %arg4[%c0_23, %c0_24] : memref<16x8xbf16, #tpu.memory_space<vmem>>, vector<16x8xbf16>
      %84 = vector.shape_cast %82 : vector<8x8x8xf32> to vector<8x64xf32>
      %85 = arith.truncf %84 : vector<8x64xf32> to vector<8x64xbf16>
      %cst_25 = arith.constant dense<0.000000e+00> : vector<16x64xf32>
      %86 = tpu.matmul %83, %85, %cst_25 {dimension_numbers = #tpu.dot_dimension_numbers<[1], [0], [0], [1], [0, 0, 1, 1], [], []>} : vector<16x8xbf16>, vector<8x64xbf16>, vector<16x64xf32> -> vector<16x64xf32>
      %c0_26 = arith.constant 0 : index
      %c0_27 = arith.constant 0 : index
      %87 = vector.load %arg5[%c0_26, %c0_27] : memref<16x1xf32, #tpu.memory_space<vmem>>, vector<16x1xf32>
      %88 = vector.broadcast %87 : vector<16x1xf32> to vector<16x64xf32>
      %89 = arith.addf %86, %88 : vector<16x64xf32>
      %cst_28 = arith.constant 0.000000e+00 : f32
      %90 = vector.broadcast %cst_28 : f32 to vector<16x64xf32>
      %91 = arith.maximumf %89, %90 : vector<16x64xf32>
      %c0_29 = arith.constant 0 : index
      %c0_30 = arith.constant 0 : index
      %92 = vector.load %arg6[%c0_29, %c0_30] : memref<8x16xbf16, #tpu.memory_space<vmem>>, vector<8x16xbf16>
      %93 = arith.truncf %91 : vector<16x64xf32> to vector<16x64xbf16>
      %cst_31 = arith.constant dense<0.000000e+00> : vector<8x64xf32>
      %94 = tpu.matmul %92, %93, %cst_31 {dimension_numbers = #tpu.dot_dimension_numbers<[1], [0], [0], [1], [0, 0, 1, 1], [], []>} : vector<8x16xbf16>, vector<16x64xbf16>, vector<8x64xf32> -> vector<8x64xf32>
      %c0_32 = arith.constant 0 : index
      %c0_33 = arith.constant 0 : index
      %95 = vector.load %arg7[%c0_32, %c0_33] : memref<8x1xf32, #tpu.memory_space<vmem>>, vector<8x1xf32>
      %96 = vector.broadcast %95 : vector<8x1xf32> to vector<8x64xf32>
      %97 = arith.addf %94, %96 : vector<8x64xf32>
      %98 = vector.shape_cast %97 : vector<8x64xf32> to vector<8x8x8xf32>
      %99 = arith.truncf %98 : vector<8x8x8xf32> to vector<8x8x8xbf16>
      %c0_34 = arith.constant 0 : index
      %c0_35 = arith.constant 0 : index
      %100 = vector.load %arg8[%c0_34, %c0_35] : memref<256x8xbf16, #tpu.memory_space<vmem>>, vector<256x8xbf16>
      %101 = vector.extract_strided_slice %99 {offsets = [0, 0, 0], sizes = [1, 8, 8], strides = [1, 1, 1]} : vector<8x8x8xbf16> to vector<1x8x8xbf16>
      %102 = vector.shape_cast %101 : vector<1x8x8xbf16> to vector<8x8xbf16>
      %cst_36 = arith.constant dense<0.000000e+00> : vector<256x8xf32>
      %103 = tpu.matmul %100, %102, %cst_36 {dimension_numbers = #tpu.dot_dimension_numbers<[1], [0], [0], [1], [0, 0, 1, 1], [], []>} : vector<256x8xbf16>, vector<8x8xbf16>, vector<256x8xf32> -> vector<256x8xf32>
      %104 = arith.truncf %103 : vector<256x8xf32> to vector<256x8xbf16>
      %c0_37 = arith.constant 0 : index
      %c0_38 = arith.constant 0 : index
      %c0_39 = arith.constant 0 : index
      %105 = vector.load %arg12[%c0_37, %c0_38, %c0_39] : memref<8x256x8xbf16, #tpu.memory_space<vmem>>, vector<1x256x8xbf16>
      %106 = vector.shape_cast %105 : vector<1x256x8xbf16> to vector<256x8xbf16>
      %107 = vector.shape_cast %104 : vector<256x8xbf16> to vector<1x256x8xbf16>
      tpu.vector_store %arg12[%c0_37, %c0_38, %c0_39], %107 {strides = array<i32>} : memref<8x256x8xbf16, #tpu.memory_space<vmem>>, vector<1x256x8xbf16>,
      %108 = vector.extract_strided_slice %99 {offsets = [1, 0, 0], sizes = [1, 8, 8], strides = [1, 1, 1]} : vector<8x8x8xbf16> to vector<1x8x8xbf16>
      %109 = vector.shape_cast %108 : vector<1x8x8xbf16> to vector<8x8xbf16>
      %cst_40 = arith.constant dense<0.000000e+00> : vector<256x8xf32>
      %110 = tpu.matmul %100, %109, %cst_40 {dimension_numbers = #tpu.dot_dimension_numbers<[1], [0], [0], [1], [0, 0, 1, 1], [], []>} : vector<256x8xbf16>, vector<8x8xbf16>, vector<256x8xf32> -> vector<256x8xf32>
      %111 = arith.truncf %110 : vector<256x8xf32> to vector<256x8xbf16>
      %c1_41 = arith.constant 1 : index
      %c0_42 = arith.constant 0 : index
      %c0_43 = arith.constant 0 : index
      %112 = vector.load %arg12[%c1_41, %c0_42, %c0_43] : memref<8x256x8xbf16, #tpu.memory_space<vmem>>, vector<1x256x8xbf16>
      %113 = vector.shape_cast %112 : vector<1x256x8xbf16> to vector<256x8xbf16>
      %114 = vector.shape_cast %111 : vector<256x8xbf16> to vector<1x256x8xbf16>
      tpu.vector_store %arg12[%c1_41, %c0_42, %c0_43], %114 {strides = array<i32>} : memref<8x256x8xbf16, #tpu.memory_space<vmem>>, vector<1x256x8xbf16>,
      %115 = vector.extract_strided_slice %99 {offsets = [2, 0, 0], sizes = [1, 8, 8], strides = [1, 1, 1]} : vector<8x8x8xbf16> to vector<1x8x8xbf16>
      %116 = vector.shape_cast %115 : vector<1x8x8xbf16> to vector<8x8xbf16>
      %cst_44 = arith.constant dense<0.000000e+00> : vector<256x8xf32>
      %117 = tpu.matmul %100, %116, %cst_44 {dimension_numbers = #tpu.dot_dimension_numbers<[1], [0], [0], [1], [0, 0, 1, 1], [], []>} : vector<256x8xbf16>, vector<8x8xbf16>, vector<256x8xf32> -> vector<256x8xf32>
      %118 = arith.truncf %117 : vector<256x8xf32> to vector<256x8xbf16>
      %c2 = arith.constant 2 : index
      %c0_45 = arith.constant 0 : index
      %c0_46 = arith.constant 0 : index
      %119 = vector.load %arg12[%c2, %c0_45, %c0_46] : memref<8x256x8xbf16, #tpu.memory_space<vmem>>, vector<1x256x8xbf16>
      %120 = vector.shape_cast %119 : vector<1x256x8xbf16> to vector<256x8xbf16>
      %121 = vector.shape_cast %118 : vector<256x8xbf16> to vector<1x256x8xbf16>
      tpu.vector_store %arg12[%c2, %c0_45, %c0_46], %121 {strides = array<i32>} : memref<8x256x8xbf16, #tpu.memory_space<vmem>>, vector<1x256x8xbf16>,
      %122 = vector.extract_strided_slice %99 {offsets = [3, 0, 0], sizes = [1, 8, 8], strides = [1, 1, 1]} : vector<8x8x8xbf16> to vector<1x8x8xbf16>
      %123 = vector.shape_cast %122 : vector<1x8x8xbf16> to vector<8x8xbf16>
      %cst_47 = arith.constant dense<0.000000e+00> : vector<256x8xf32>
      %124 = tpu.matmul %100, %123, %cst_47 {dimension_numbers = #tpu.dot_dimension_numbers<[1], [0], [0], [1], [0, 0, 1, 1], [], []>} : vector<256x8xbf16>, vector<8x8xbf16>, vector<256x8xf32> -> vector<256x8xf32>
      %125 = arith.truncf %124 : vector<256x8xf32> to vector<256x8xbf16>
      %c3 = arith.constant 3 : index
      %c0_48 = arith.constant 0 : index
      %c0_49 = arith.constant 0 : index
      %126 = vector.load %arg12[%c3, %c0_48, %c0_49] : memref<8x256x8xbf16, #tpu.memory_space<vmem>>, vector<1x256x8xbf16>
      %127 = vector.shape_cast %126 : vector<1x256x8xbf16> to vector<256x8xbf16>
      %128 = vector.shape_cast %125 : vector<256x8xbf16> to vector<1x256x8xbf16>
      tpu.vector_store %arg12[%c3, %c0_48, %c0_49], %128 {strides = array<i32>} : memref<8x256x8xbf16, #tpu.memory_space<vmem>>, vector<1x256x8xbf16>,
      %129 = vector.extract_strided_slice %99 {offsets = [4, 0, 0], sizes = [1, 8, 8], strides = [1, 1, 1]} : vector<8x8x8xbf16> to vector<1x8x8xbf16>
      %130 = vector.shape_cast %129 : vector<1x8x8xbf16> to vector<8x8xbf16>
      %cst_50 = arith.constant dense<0.000000e+00> : vector<256x8xf32>
      %131 = tpu.matmul %100, %130, %cst_50 {dimension_numbers = #tpu.dot_dimension_numbers<[1], [0], [0], [1], [0, 0, 1, 1], [], []>} : vector<256x8xbf16>, vector<8x8xbf16>, vector<256x8xf32> -> vector<256x8xf32>
      %132 = arith.truncf %131 : vector<256x8xf32> to vector<256x8xbf16>
      %c4 = arith.constant 4 : index
      %c0_51 = arith.constant 0 : index
      %c0_52 = arith.constant 0 : index
      %133 = vector.load %arg12[%c4, %c0_51, %c0_52] : memref<8x256x8xbf16, #tpu.memory_space<vmem>>, vector<1x256x8xbf16>
      %134 = vector.shape_cast %133 : vector<1x256x8xbf16> to vector<256x8xbf16>
      %135 = vector.shape_cast %132 : vector<256x8xbf16> to vector<1x256x8xbf16>
      tpu.vector_store %arg12[%c4, %c0_51, %c0_52], %135 {strides = array<i32>} : memref<8x256x8xbf16, #tpu.memory_space<vmem>>, vector<1x256x8xbf16>,
      %136 = vector.extract_strided_slice %99 {offsets = [5, 0, 0], sizes = [1, 8, 8], strides = [1, 1, 1]} : vector<8x8x8xbf16> to vector<1x8x8xbf16>
      %137 = vector.shape_cast %136 : vector<1x8x8xbf16> to vector<8x8xbf16>
      %cst_53 = arith.constant dense<0.000000e+00> : vector<256x8xf32>
      %138 = tpu.matmul %100, %137, %cst_53 {dimension_numbers = #tpu.dot_dimension_numbers<[1], [0], [0], [1], [0, 0, 1, 1], [], []>} : vector<256x8xbf16>, vector<8x8xbf16>, vector<256x8xf32> -> vector<256x8xf32>
      %139 = arith.truncf %138 : vector<256x8xf32> to vector<256x8xbf16>
      %c5 = arith.constant 5 : index
      %c0_54 = arith.constant 0 : index
      %c0_55 = arith.constant 0 : index
      %140 = vector.load %arg12[%c5, %c0_54, %c0_55] : memref<8x256x8xbf16, #tpu.memory_space<vmem>>, vector<1x256x8xbf16>
      %141 = vector.shape_cast %140 : vector<1x256x8xbf16> to vector<256x8xbf16>
      %142 = vector.shape_cast %139 : vector<256x8xbf16> to vector<1x256x8xbf16>
      tpu.vector_store %arg12[%c5, %c0_54, %c0_55], %142 {strides = array<i32>} : memref<8x256x8xbf16, #tpu.memory_space<vmem>>, vector<1x256x8xbf16>,
      %143 = vector.extract_strided_slice %99 {offsets = [6, 0, 0], sizes = [1, 8, 8], strides = [1, 1, 1]} : vector<8x8x8xbf16> to vector<1x8x8xbf16>
      %144 = vector.shape_cast %143 : vector<1x8x8xbf16> to vector<8x8xbf16>
      %cst_56 = arith.constant dense<0.000000e+00> : vector<256x8xf32>
      %145 = tpu.matmul %100, %144, %cst_56 {dimension_numbers = #tpu.dot_dimension_numbers<[1], [0], [0], [1], [0, 0, 1, 1], [], []>} : vector<256x8xbf16>, vector<8x8xbf16>, vector<256x8xf32> -> vector<256x8xf32>
      %146 = arith.truncf %145 : vector<256x8xf32> to vector<256x8xbf16>
      %c6 = arith.constant 6 : index
      %c0_57 = arith.constant 0 : index
      %c0_58 = arith.constant 0 : index
      %147 = vector.load %arg12[%c6, %c0_57, %c0_58] : memref<8x256x8xbf16, #tpu.memory_space<vmem>>, vector<1x256x8xbf16>
      %148 = vector.shape_cast %147 : vector<1x256x8xbf16> to vector<256x8xbf16>
      %149 = vector.shape_cast %146 : vector<256x8xbf16> to vector<1x256x8xbf16>
      tpu.vector_store %arg12[%c6, %c0_57, %c0_58], %149 {strides = array<i32>} : memref<8x256x8xbf16, #tpu.memory_space<vmem>>, vector<1x256x8xbf16>,
      %150 = vector.extract_strided_slice %99 {offsets = [7, 0, 0], sizes = [1, 8, 8], strides = [1, 1, 1]} : vector<8x8x8xbf16> to vector<1x8x8xbf16>
      %151 = vector.shape_cast %150 : vector<1x8x8xbf16> to vector<8x8xbf16>
      %cst_59 = arith.constant dense<0.000000e+00> : vector<256x8xf32>
      %152 = tpu.matmul %100, %151, %cst_59 {dimension_numbers = #tpu.dot_dimension_numbers<[1], [0], [0], [1], [0, 0, 1, 1], [], []>} : vector<256x8xbf16>, vector<8x8xbf16>, vector<256x8xf32> -> vector<256x8xf32>
      %153 = arith.truncf %152 : vector<256x8xf32> to vector<256x8xbf16>
      %c7 = arith.constant 7 : index
      %c0_60 = arith.constant 0 : index
      %c0_61 = arith.constant 0 : index
      %154 = vector.load %arg12[%c7, %c0_60, %c0_61] : memref<8x256x8xbf16, #tpu.memory_space<vmem>>, vector<1x256x8xbf16>
      %155 = vector.shape_cast %154 : vector<1x256x8xbf16> to vector<256x8xbf16>
      %156 = vector.shape_cast %153 : vector<256x8xbf16> to vector<1x256x8xbf16>
      tpu.vector_store %arg12[%c7, %c0_60, %c0_61], %156 {strides = array<i32>} : memref<8x256x8xbf16, #tpu.memory_space<vmem>>, vector<1x256x8xbf16>,
    } else {
    }
    %c64_i32 = arith.constant 64 : i32
    %3 = arith.muli %arg1, %c64_i32 : i32
    %4 = tpu.assume_multiple %3, 64 : i32
    %c0 = arith.constant 0 : index
    %5 = arith.index_cast %4 : i32 to index
    %c0_1 = arith.constant 0 : index
    %6 = vector.load %arg12[%c0, %5, %c0_1] : memref<8x256x8xbf16, #tpu.memory_space<vmem>>, vector<8x64x8xbf16>
    %7 = vector.shape_cast %6 : vector<8x64x8xbf16> to vector<512x8xbf16>
    %c0_2 = arith.constant 0 : index
    %c0_3 = arith.constant 0 : index
    %8 = vector.load %arg9[%c0_2, %c0_3] : memref<8x256xbf16, #tpu.memory_space<vmem>>, vector<8x256xbf16>
    %cst = arith.constant dense<0.000000e+00> : vector<512x256xf32>
    %9 = tpu.matmul %7, %8, %cst {dimension_numbers = #tpu.dot_dimension_numbers<[1], [0], [0], [1], [0, 0, 1, 1], [], []>} : vector<512x8xbf16>, vector<8x256xbf16>, vector<512x256xf32> -> vector<512x256xf32>
    %10 = vector.shape_cast %9 : vector<512x256xf32> to vector<8x64x256xf32>
    %c0_4 = arith.constant 0 : index
    %c0_5 = arith.constant 0 : index
    %c0_6 = arith.constant 0 : index
    %c0_7 = arith.constant 0 : index
    %11 = vector.load %arg10[%c0_4, %c0_5, %c0_6, %c0_7] : memref<1x8x64x256xf32, #tpu.memory_space<vmem>>, vector<1x8x64x256xf32>
    %12 = vector.shape_cast %11 : vector<1x8x64x256xf32> to vector<8x64x256xf32>
    %13 = vector.shape_cast %10 : vector<8x64x256xf32> to vector<1x8x64x256xf32>
    tpu.vector_store %arg10[%c0_4, %c0_5, %c0_6, %c0_7], %13 {strides = array<i32>} : memref<1x8x64x256xf32, #tpu.memory_space<vmem>>, vector<1x8x64x256xf32>,
    return
  }
  func.func @transform_0(%arg0: i32, %arg1: i32) -> (i32, i32, i32, i32) {
    %c0_i32 = arith.constant 0 : i32
    %c0_i32_0 = arith.constant 0 : i32
    %c0_i32_1 = arith.constant 0 : i32
    %c0_i32_2 = arith.constant 0 : i32
    return %arg0, %c0_i32, %c0_i32_0, %c0_i32_1 : i32, i32, i32, i32
  }
  func.func @transform_1(%arg0: i32, %arg1: i32) -> (i32, i32) {
    %c0_i32 = arith.constant 0 : i32
    %c0_i32_0 = arith.constant 0 : i32
    %c0_i32_1 = arith.constant 0 : i32
    return %c0_i32, %c0_i32_0 : i32, i32
  }
  func.func @transform_2(%arg0: i32, %arg1: i32) -> (i32, i32) {
    %c0_i32 = arith.constant 0 : i32
    %c0_i32_0 = arith.constant 0 : i32
    %c0_i32_1 = arith.constant 0 : i32
    return %c0_i32, %c0_i32_0 : i32, i32
  }
  func.func @transform_3(%arg0: i32, %arg1: i32) -> (i32, i32) {
    %c0_i32 = arith.constant 0 : i32
    %c0_i32_0 = arith.constant 0 : i32
    %c0_i32_1 = arith.constant 0 : i32
    return %c0_i32, %c0_i32_0 : i32, i32
  }
  func.func @transform_4(%arg0: i32, %arg1: i32) -> (i32, i32) {
    %c0_i32 = arith.constant 0 : i32
    %c0_i32_0 = arith.constant 0 : i32
    %c0_i32_1 = arith.constant 0 : i32
    return %c0_i32, %c0_i32_0 : i32, i32
  }
  func.func @transform_5(%arg0: i32, %arg1: i32) -> (i32, i32) {
    %c0_i32 = arith.constant 0 : i32
    %c0_i32_0 = arith.constant 0 : i32
    %c0_i32_1 = arith.constant 0 : i32
    return %c0_i32, %c0_i32_0 : i32, i32
  }
  func.func @transform_6(%arg0: i32, %arg1: i32) -> (i32, i32) {
    %c0_i32 = arith.constant 0 : i32
    %c0_i32_0 = arith.constant 0 : i32
    %c0_i32_1 = arith.constant 0 : i32
    return %c0_i32, %c0_i32_0 : i32, i32
  }
  func.func @transform_7(%arg0: i32, %arg1: i32) -> (i32, i32) {
    %c0_i32 = arith.constant 0 : i32
    %c0_i32_0 = arith.constant 0 : i32
    %c0_i32_1 = arith.constant 0 : i32
    return %c0_i32, %c0_i32_0 : i32, i32
  }
  func.func @transform_8(%arg0: i32, %arg1: i32) -> (i32, i32, i32, i32) {
    %c0_i32 = arith.constant 0 : i32
    %c0_i32_0 = arith.constant 0 : i32
    %c0_i32_1 = arith.constant 0 : i32
    return %arg0, %c0_i32, %arg1, %c0_i32_0 : i32, i32, i32, i32
  }
}

</mosaic_0001>

<llo_original>
// kernel: dense_prediction_forward.1
$region0: #{dense_prediction_forward.1}
  #allocation0 [shape = 'u32[]', space=smem, size = 0x4, offset = 0x4, fixed_abs, tag = 'smem constant byte address 0x4 - core index']
  #allocation1 [shape = 'u32[144,128]{1,0:T(1,128)}', space=vmem, size = 0x12000, scoped, tag = 'internal scratch']
  #allocation2 [shape = 'f32[8,10,10]{2,1,0:T(8,128)}', space=vmem, size = 0x10000, scoped, tag = 'scratch operand']
  #allocation3 [shape = 'bf16[8,256,8]{2,1,0:T(16,128)(2,1)}', space=vmem, size = 0x80000, scoped, tag = 'scratch operand']
  #allocation11 [shape = 's32[]', space=sflag, size = 0x4, offset = 0, fixed_abs, tag = 'sflag constant byte address 0x0 - dummy sync flag']
  %s0 = inlined_call_operand.hbm [shape: f32[2,8,8,8], index: 0, kind: input, shape index: {}]
  %s1 = inlined_call_operand.vmem [shape: f32[8,9], index: 1, kind: input, shape index: {}]
  %s2 = inlined_call_operand.vmem [shape: bf16[16,8], index: 2, kind: input, shape index: {}]
  %s3 = inlined_call_operand.vmem [shape: f32[16,1], index: 3, kind: input, shape index: {}]
  %s4 = inlined_call_operand.vmem [shape: bf16[8,16], index: 4, kind: input, shape index: {}]
  %s5 = inlined_call_operand.vmem [shape: f32[8,1], index: 5, kind: input, shape index: {}]
  %s6 = inlined_call_operand.hbm [shape: bf16[256,8], index: 6, kind: input, shape index: {}]
  %s7 = inlined_call_operand.hbm [shape: bf16[8,256], index: 7, kind: input, shape index: {}]
  %s8 = inlined_call_operand.hbm [shape: f32[2,8,256,256], index: 8, kind: output, shape index: {}]
  %s9 = sld [smem:[#allocation0]]
  $region81: #{dense_prediction_forward.1} parent=0
    _
  %s11 = ssub.s32 1, %s9
  %s12 = scalar_select 0, %s11, %s9
  $region1: #{dense_prediction_forward.1} parent=0
    #allocation4 [shape = 'u8[65536]{0}', space=vmem, size = 0x10000, scoped, tag = 'input window, operand 0']
    #allocation5 [shape = 's32[2]{0}', space=sflag, size = 0x8, scoped, tag = 'scoped memory for dense_prediction_forward.1']
    #allocation6 [shape = 's32[2]{0}', space=sflag, size = 0x8, scoped, tag = 'scoped memory for dense_prediction_forward.1']
    #allocation7 [shape = 'u8[65536]{0}', space=vmem, size = 0x10000, scoped, tag = 'input window, operand 6, single buffered']
    #allocation8 [shape = 's32[1]{0}', space=sflag, size = 0x4, scoped, tag = 'scoped memory for dense_prediction_forward.1']
    #allocation9 [shape = 'u8[4096]{0}', space=vmem, size = 0x1000, scoped, tag = 'input window, operand 7, single buffered']
    #allocation10 [shape = 'u8[1048576]{0}', space=vmem, size = 0x100000, scoped, tag = 'output window, operand 0']
    %13 = vsyncpa [#allocation5], 0
    %s14 = scalar_lea.sflag [#allocation5], 1
    %15 = vsyncpa %s14, 0
    %16 = vsyncpa [#allocation8], 0
    %17 = vsyncpa [#allocation6], 0
    %s18 = scalar_lea.sflag [#allocation6], 1
    %19 = vsyncpa %s18, 0
    loop: start=0, step=1, limit=10
    $region2: #{dense_prediction_forward.1} parent=1 // loop_pre_header
      _
    $region3: #{dense_prediction_forward.1} parent=1 // loop_header
      %s21 = sphi 0, %s25
      %p22 = scmp.ge.s32.totalorder %s21, 10
      %s28 = sphi 0, %s40
      %s29 = sphi 0, %s36
      %s30 = sphi 0, %s28
      %s31 = sphi 0, %s29
      %s32 = sphi 0, %s30
      %s33 = sphi 0, %s31
      %s43 = sphi 0, %s45
      %s46 = sphi 0, %s43
      %s47 = sphi 0, %s46
      %s63 = sphi 0, %s47
      %s67 = sphi 0, %s67
      %s69 = sphi 0, %s67
      %s70 = sphi 0, %s69
      %s84 = sphi 0, %s70
      %s88 = sphi 0, %s88
      %s90 = sphi 0, %s88
      %s91 = sphi 0, %s90
      %s105 = sphi 0, %s91
      %s109 = sphi 0, %s109
      %s111 = sphi 0, %s109
      %s112 = sphi 0, %s111
      %s126 = sphi 0, %s112
      %s130 = sphi 0, %s130
      %s132 = sphi 0, %s130
      %s133 = sphi 0, %s132
      %s147 = sphi 0, %s133
      %s151 = sphi 0, %s151
      %s153 = sphi 0, %s151
      %s154 = sphi 0, %s153
      %s168 = sphi 0, %s154
      %s172 = sphi 0, %s172
      %s174 = sphi 0, %s172
      %s175 = sphi 0, %s174
      %s189 = sphi 0, %s175
      %s193 = sphi 0, %s193
      %s195 = sphi 0, %s193
      %s196 = sphi 0, %s195
      %s210 = sphi 0, %s196
      %s218 = sphi 0, %s220
      %s221 = sphi 0, %s218
      %s222 = sphi 0, %s221
      %s238 = sphi 0, %s222
    $region4: #{dense_prediction_forward.1} parent=1 // loop_header_branch
      %24 = sbr.rel (%p22) target = $region8
    $region5: #{dense_prediction_forward.1} parent=1 // loop_body
      %s26 = ssub.s32 %s21, 1
      %s27 = ssub.s32 %s21, 2
      %s34 = sadd.s32 1, %s29
      %p35 = scmp.ge.s32.totalorder %s34, 4
      %s36 = scalar_select %p35, 0, %s34
      %s37 = sadd.s32 1, %s28
      %s38 = scalar_select %p35, %s37, %s28
      %p39 = scmp.ge.s32.totalorder %s38, 2
      %s40 = scalar_select %p39, 0, %s38
      %s41 = ssub.s32 %s28, %s40
      %p42 = scmp.eq.s32.totalorder %s41, 0
      %s44 = sadd.s32 %s43, 1
      %s45 = scalar_select %p42, %s43, %s44
      %p48 = pneg %p42
      %p49 = scmp.eq.s32.totalorder %s21, 7
      %p50 = por %p48, %p49
      %p51 = scmp.ne.s32.totalorder %s43, %s46
      %p52 = scmp.eq.s32.totalorder %s21, 0
      %p53 = por %p51, %p52
      %p54 = scmp.ne.s32.totalorder %s43, %s46
      %p55 = scmp.eq.s32.totalorder %s26, 7
      %p56 = por %p54, %p55
      %p57 = scmp.ne.s32.totalorder %s46, %s47
      %p58 = scmp.eq.s32.totalorder %s26, 0
      %p59 = por %p57, %p58
      %p60 = scmp.ne.s32.totalorder %s46, %s47
      %p61 = scmp.eq.s32.totalorder %s27, 7
      %p62 = por %p60, %p61
      %p64 = scmp.ne.s32.totalorder %s47, %s63
      %p65 = scmp.eq.s32.totalorder %s27, 0
      %p66 = por %p64, %p65
      %s68 = sadd.s32 %s67, 1
      %p71 = scmp.eq.s32.totalorder %s21, 7
      %p72 = scmp.ne.s32.totalorder %s67, %s69
      %p73 = scmp.eq.s32.totalorder %s21, 0
      %p74 = por %p72, %p73
      %p75 = scmp.ne.s32.totalorder %s67, %s69
      %p76 = scmp.eq.s32.totalorder %s26, 7
      %p77 = por %p75, %p76
      %p78 = scmp.ne.s32.totalorder %s69, %s70
      %p79 = scmp.eq.s32.totalorder %s26, 0
      %p80 = por %p78, %p79
      %p81 = scmp.ne.s32.totalorder %s69, %s70
      %p82 = scmp.eq.s32.totalorder %s27, 7
      %p83 = por %p81, %p82
      %p85 = scmp.ne.s32.totalorder %s70, %s84
      %p86 = scmp.eq.s32.totalorder %s27, 0
      %p87 = por %p85, %p86
      %s89 = sadd.s32 %s88, 1
      %p92 = scmp.eq.s32.totalorder %s21, 7
      %p93 = scmp.ne.s32.totalorder %s88, %s90
      %p94 = scmp.eq.s32.totalorder %s21, 0
      %p95 = por %p93, %p94
      %p96 = scmp.ne.s32.totalorder %s88, %s90
      %p97 = scmp.eq.s32.totalorder %s26, 7
      %p98 = por %p96, %p97
      %p99 = scmp.ne.s32.totalorder %s90, %s91
      %p100 = scmp.eq.s32.totalorder %s26, 0
      %p101 = por %p99, %p100
      %p102 = scmp.ne.s32.totalorder %s90, %s91
      %p103 = scmp.eq.s32.totalorder %s27, 7
      %p104 = por %p102, %p103
      %p106 = scmp.ne.s32.totalorder %s91, %s105
      %p107 = scmp.eq.s32.totalorder %s27, 0
      %p108 = por %p106, %p107
      %s110 = sadd.s32 %s109, 1
      %p113 = scmp.eq.s32.totalorder %s21, 7
      %p114 = scmp.ne.s32.totalorder %s109, %s111
      %p115 = scmp.eq.s32.totalorder %s21, 0
      %p116 = por %p114, %p115
      %p117 = scmp.ne.s32.totalorder %s109, %s111
      %p118 = scmp.eq.s32.totalorder %s26, 7
      %p119 = por %p117, %p118
      %p120 = scmp.ne.s32.totalorder %s111, %s112
      %p121 = scmp.eq.s32.totalorder %s26, 0
      %p122 = por %p120, %p121
      %p123 = scmp.ne.s32.totalorder %s111, %s112
      %p124 = scmp.eq.s32.totalorder %s27, 7
      %p125 = por %p123, %p124
      %p127 = scmp.ne.s32.totalorder %s112, %s126
      %p128 = scmp.eq.s32.totalorder %s27, 0
      %p129 = por %p127, %p128
      %s131 = sadd.s32 %s130, 1
      %p134 = scmp.eq.s32.totalorder %s21, 7
      %p135 = scmp.ne.s32.totalorder %s130, %s132
      %p136 = scmp.eq.s32.totalorder %s21, 0
      %p137 = por %p135, %p136
      %p138 = scmp.ne.s32.totalorder %s130, %s132
      %p139 = scmp.eq.s32.totalorder %s26, 7
      %p140 = por %p138, %p139
      %p141 = scmp.ne.s32.totalorder %s132, %s133
      %p142 = scmp.eq.s32.totalorder %s26, 0
      %p143 = por %p141, %p142
      %p144 = scmp.ne.s32.totalorder %s132, %s133
      %p145 = scmp.eq.s32.totalorder %s27, 7
      %p146 = por %p144, %p145
      %p148 = scmp.ne.s32.totalorder %s133, %s147
      %p149 = scmp.eq.s32.totalorder %s27, 0
      %p150 = por %p148, %p149
      %s152 = sadd.s32 %s151, 1
      %p155 = scmp.eq.s32.totalorder %s21, 7
      %p156 = scmp.ne.s32.totalorder %s151, %s153
      %p157 = scmp.eq.s32.totalorder %s21, 0
      %p158 = por %p156, %p157
      %p159 = scmp.ne.s32.totalorder %s151, %s153
      %p160 = scmp.eq.s32.totalorder %s26, 7
      %p161 = por %p159, %p160
      %p162 = scmp.ne.s32.totalorder %s153, %s154
      %p163 = scmp.eq.s32.totalorder %s26, 0
      %p164 = por %p162, %p163
      %p165 = scmp.ne.s32.totalorder %s153, %s154
      %p166 = scmp.eq.s32.totalorder %s27, 7
      %p167 = por %p165, %p166
      %p169 = scmp.ne.s32.totalorder %s154, %s168
      %p170 = scmp.eq.s32.totalorder %s27, 0
      %p171 = por %p169, %p170
      %s173 = sadd.s32 %s172, 1
      %p176 = scmp.eq.s32.totalorder %s21, 7
      %p177 = scmp.ne.s32.totalorder %s172, %s174
      %p178 = scmp.eq.s32.totalorder %s21, 0
      %p179 = por %p177, %p178
      %p180 = scmp.ne.s32.totalorder %s172, %s174
      %p181 = scmp.eq.s32.totalorder %s26, 7
      %p182 = por %p180, %p181
      %p183 = scmp.ne.s32.totalorder %s174, %s175
      %p184 = scmp.eq.s32.totalorder %s26, 0
      %p185 = por %p183, %p184
      %p186 = scmp.ne.s32.totalorder %s174, %s175
      %p187 = scmp.eq.s32.totalorder %s27, 7
      %p188 = por %p186, %p187
      %p190 = scmp.ne.s32.totalorder %s175, %s189
      %p191 = scmp.eq.s32.totalorder %s27, 0
      %p192 = por %p190, %p191
      %s194 = sadd.s32 %s193, 1
      %p197 = scmp.eq.s32.totalorder %s21, 7
      %p198 = scmp.ne.s32.totalorder %s193, %s195
      %p199 = scmp.eq.s32.totalorder %s21, 0
      %p200 = por %p198, %p199
      %p201 = scmp.ne.s32.totalorder %s193, %s195
      %p202 = scmp.eq.s32.totalorder %s26, 7
      %p203 = por %p201, %p202
      %p204 = scmp.ne.s32.totalorder %s195, %s196
      %p205 = scmp.eq.s32.totalorder %s26, 0
      %p206 = por %p204, %p205
      %p207 = scmp.ne.s32.totalorder %s195, %s196
      %p208 = scmp.eq.s32.totalorder %s27, 7
      %p209 = por %p207, %p208
      %p211 = scmp.ne.s32.totalorder %s196, %s210
      %p212 = scmp.eq.s32.totalorder %s27, 0
      %p213 = por %p211, %p212
      %s214 = ssub.s32 %s28, %s40
      %s215 = ssub.s32 %s29, %s36
      %s216 = sor.u32 %s214, %s215
      %p217 = scmp.eq.s32.totalorder %s216, 0
      %s219 = sadd.s32 %s218, 1
      %s220 = scalar_select %p217, %s218, %s219
      %p223 = pneg %p217
      %p224 = scmp.eq.s32.totalorder %s21, 7
      %p225 = por %p223, %p224
      %p226 = scmp.ne.s32.totalorder %s218, %s221
      %p227 = scmp.eq.s32.totalorder %s21, 0
      %p228 = por %p226, %p227
      %p229 = scmp.ne.s32.totalorder %s218, %s221
      %p230 = scmp.eq.s32.totalorder %s26, 7
      %p231 = por %p229, %p230
      %p232 = scmp.ne.s32.totalorder %s221, %s222
      %p233 = scmp.eq.s32.totalorder %s26, 0
      %p234 = por %p232, %p233
      %p235 = scmp.ne.s32.totalorder %s221, %s222
      %p236 = scmp.eq.s32.totalorder %s27, 7
      %p237 = por %p235, %p236
      %p239 = scmp.ne.s32.totalorder %s222, %s238
      %p240 = scmp.eq.s32.totalorder %s27, 0
      %p241 = por %p239, %p240
      %p242 = scmp.le.s32.totalorder 1, %s21
      %p243 = scmp.lt.s32.totalorder %s21, 9
      %p244 = pnand %p242, %p243
      %p245 = pneg %p244
      // Predicated region
      $region9: #{dense_prediction_forward.1} parent=5 // pred_check
        _
      $region10: #{dense_prediction_forward.1} parent=5 // pred_check_branch
        %247 = sbr.rel (%p244) target = $region12
      $region11: #{dense_prediction_forward.1} parent=5 // pred_region
        %s248 = ssub.s32 %s21, 1
        // Predicated region
        $region13: #{dense_prediction_forward.1} parent=11 // pred_check
          %p249 = pneg %p80
        $region14: #{dense_prediction_forward.1} parent=11 // pred_check_branch
          %251 = sbr.rel (%p249) target = $region16
        $region15: #{dense_prediction_forward.1} parent=11 // pred_region
          _
        $region16: #{dense_prediction_forward.1} parent=11 // pred_fallthru
          _
        // Predicated region
        $region17: #{dense_prediction_forward.1} parent=11 // pred_check
          %p252 = pneg %p101
        $region18: #{dense_prediction_forward.1} parent=11 // pred_check_branch
          %254 = sbr.rel (%p252) target = $region20
        $region19: #{dense_prediction_forward.1} parent=11 // pred_region
          _
        $region20: #{dense_prediction_forward.1} parent=11 // pred_fallthru
          _
        // Predicated region
        $region21: #{dense_prediction_forward.1} parent=11 // pred_check
          %p255 = pneg %p122
        $region22: #{dense_prediction_forward.1} parent=11 // pred_check_branch
          %257 = sbr.rel (%p255) target = $region24
        $region23: #{dense_prediction_forward.1} parent=11 // pred_region
          _
        $region24: #{dense_prediction_forward.1} parent=11 // pred_fallthru
          _
        // Predicated region
        $region25: #{dense_prediction_forward.1} parent=11 // pred_check
          %p258 = pneg %p143
        $region26: #{dense_prediction_forward.1} parent=11 // pred_check_branch
          %260 = sbr.rel (%p258) target = $region28
        $region27: #{dense_prediction_forward.1} parent=11 // pred_region
          _
        $region28: #{dense_prediction_forward.1} parent=11 // pred_fallthru
          _
        // Predicated region
        $region29: #{dense_prediction_forward.1} parent=11 // pred_check
          %p261 = pneg %p164
        $region30: #{dense_prediction_forward.1} parent=11 // pred_check_branch
          %263 = sbr.rel (%p261) target = $region32
        $region31: #{dense_prediction_forward.1} parent=11 // pred_region
          _
        $region32: #{dense_prediction_forward.1} parent=11 // pred_fallthru
          _
        // Predicated region
        $region33: #{dense_prediction_forward.1} parent=11 // pred_check
          %p264 = pneg %p185
        $region34: #{dense_prediction_forward.1} parent=11 // pred_check_branch
          %266 = sbr.rel (%p264) target = $region36
        $region35: #{dense_prediction_forward.1} parent=11 // pred_region
          %s268 = ssub.s32 2048, 2048
          %269 = vsyncadd [#allocation8], %s268
          %s270 = sshll.u32 [#allocation7], 4
          %s271 = int_to_ptr.vmem [resolvable:$true] %s270
          %276 = dma.hbm_to_vmem [thread:$0]  %s6, 2048, %s271, [#allocation8], 64, 64, 4
        $region36: #{dense_prediction_forward.1} parent=11 // pred_fallthru
          _
        // Predicated region
        $region37: #{dense_prediction_forward.1} parent=11 // pred_check
          %p277 = pneg %p206
        $region38: #{dense_prediction_forward.1} parent=11 // pred_check_branch
          %279 = sbr.rel (%p277) target = $region40
        $region39: #{dense_prediction_forward.1} parent=11 // pred_region
          %s281 = ssub.s32 128, 128
          %282 = vsyncadd [#allocation8], %s281
          %s284 = sshll.u32 [#allocation9], 4
          %s285 = int_to_ptr.vmem [resolvable:$true] %s284
          %287 = dma.hbm_to_vmem [thread:$0]  %s7, 128, %s285, [#allocation8]
        $region40: #{dense_prediction_forward.1} parent=11 // pred_fallthru
          _
      $region12: #{dense_prediction_forward.1} parent=5 // pred_fallthru
        _
      %p288 = scmp.lt.s32.totalorder %s21, 8
      // Predicated region
      $region41: #{dense_prediction_forward.1} parent=5 // pred_check
        %p289 = pneg %p288
      $region42: #{dense_prediction_forward.1} parent=5 // pred_check_branch
        %291 = sbr.rel (%p289) target = $region44
      $region43: #{dense_prediction_forward.1} parent=5 // pred_region
        // Predicated region
        $region45: #{dense_prediction_forward.1} parent=43 // pred_check
          %p292 = pneg %p53
        $region46: #{dense_prediction_forward.1} parent=43 // pred_check_branch
          %294 = sbr.rel (%p292) target = $region48
        $region47: #{dense_prediction_forward.1} parent=43 // pred_region
          %s295 = sand.u32 %s43, 1
          %s296 = scalar_lea.sflag [#allocation5], %s295
          %s297 = sand.u32 %s43, 1
          %s298 = smul.addr %s297, 64
          %s299 = scalar_lea.vmem [#allocation4], %s298
          %s301 = ssub.s32 1024, 1024
          %302 = vsyncadd %s296, %s301
          %s303 = smul.addr %s28, 8
          %s304 = smul.addr %s303, 128
          %s305 = scalar_lea.hbm %s0, %s304
          %s306 = sshll.u32 %s299, 4
          %s307 = int_to_ptr.vmem [resolvable:$true] %s306
          %312 = dma.hbm_to_vmem [thread:$0]  %s305, 1024, %s307, %s296, 128, 128, 8
        $region48: #{dense_prediction_forward.1} parent=43 // pred_fallthru
          _
      $region44: #{dense_prediction_forward.1} parent=5 // pred_fallthru
        _
      %p313 = scmp.le.s32.totalorder 1, %s21
      %p314 = scmp.lt.s32.totalorder %s21, 9
      %p315 = pnand %p313, %p314
      %p316 = pneg %p315
      // Predicated region
      $region49: #{dense_prediction_forward.1} parent=5 // pred_check
        _
      $region50: #{dense_prediction_forward.1} parent=5 // pred_check_branch
        %318 = sbr.rel (%p315) target = $region52
      $region51: #{dense_prediction_forward.1} parent=5 // pred_region
        %s319 = ssub.s32 %s21, 1
        %s320 = sand.u32 %s46, 1
        %s321 = scalar_lea.sflag [#allocation5], %s320
        %s322 = sand.u32 %s46, 1
        %s323 = smul.addr %s322, 64
        %s324 = scalar_lea.vmem [#allocation4], %s323
        // Predicated region
        $region53: #{dense_prediction_forward.1} parent=51 // pred_check
          %p325 = pneg %p59
        $region54: #{dense_prediction_forward.1} parent=51 // pred_check_branch
          %327 = sbr.rel (%p325) target = $region56
        $region55: #{dense_prediction_forward.1} parent=51 // pred_region
          %328 = dma.done %s321, 1024
        $region56: #{dense_prediction_forward.1} parent=51 // pred_fallthru
          _
        // Predicated region
        $region57: #{dense_prediction_forward.1} parent=51 // pred_check
          %p329 = pneg %p185
        $region58: #{dense_prediction_forward.1} parent=51 // pred_check_branch
          %331 = sbr.rel (%p329) target = $region60
        $region59: #{dense_prediction_forward.1} parent=51 // pred_region
          %332 = dma.done [#allocation8], 2048
        $region60: #{dense_prediction_forward.1} parent=51 // pred_fallthru
          _
        // Predicated region
        $region61: #{dense_prediction_forward.1} parent=51 // pred_check
          %p333 = pneg %p206
        $region62: #{dense_prediction_forward.1} parent=51 // pred_check_branch
          %335 = sbr.rel (%p333) target = $region64
        $region63: #{dense_prediction_forward.1} parent=51 // pred_region
          %336 = dma.done [#allocation8], 128
        $region64: #{dense_prediction_forward.1} parent=51 // pred_fallthru
          _
        %s337 = sand.u32 %s46, 1
        %s338 = scalar_lea.sflag [#allocation5], %s337
        %s339 = sand.u32 %s46, 1
        %s340 = smul.addr %s339, 64
        %s341 = scalar_lea.vmem [#allocation4], %s340
        %p342 = pneg %p59
        %p343 = pneg %p56
        %p344 = pneg %p80
        %p345 = pneg %p77
        %p346 = pneg %p101
        %p347 = pneg %p98
        %p348 = pneg %p122
        %p349 = pneg %p119
        %p350 = pneg %p143
        %p351 = pneg %p140
        %p352 = pneg %p164
        %p353 = pneg %p161
        %p354 = pneg %p185
        %p355 = pneg %p182
        %p356 = pneg %p206
        %p357 = pneg %p203
        %p358 = pneg %p234
        %p359 = pneg %p231
        %s360 = sand.u32 %s221, 1
        %s361 = scalar_lea.sflag [#allocation6], %s360
        %s362 = sand.u32 %s221, 1
        %s363 = smul.addr %s362, 1024
        %s364 = scalar_lea.vmem [#allocation10], %s363
        %s365 = smul.u32 8, %s31
        %p367 = scmp.eq.s32.totalorder %s31, 0
        // Predicated region
        $region65: #{dense_prediction_forward.1} parent=51 // pred_check
          %p368 = pneg %p367
        $region66: #{dense_prediction_forward.1} parent=51 // pred_check_branch
          %370 = sbr.rel (%p368) target = $region68
        $region67: #{dense_prediction_forward.1} parent=51 // pred_region
          %vm371 = vcmask 80896
          %372 = vst.msk [vmem:[#allocation2] sm:$0xff] %vm371, 0.0
          %vm373 = vcmask 74752
          %374 = vst.msk [vmem:[#allocation2 + $0x8] sm:$0x3] %vm373, 0.0
          %375 = vst.msk [vmem:[#allocation2 + $0x10] sm:$0xff] %vm371, 0.0
          %376 = vst.msk [vmem:[#allocation2 + $0x18] sm:$0x3] %vm373, 0.0
          %377 = vst.msk [vmem:[#allocation2 + $0x20] sm:$0xff] %vm371, 0.0
          %378 = vst.msk [vmem:[#allocation2 + $0x28] sm:$0x3] %vm373, 0.0
          %379 = vst.msk [vmem:[#allocation2 + $0x30] sm:$0xff] %vm371, 0.0
          %380 = vst.msk [vmem:[#allocation2 + $0x38] sm:$0x3] %vm373, 0.0
          %381 = vst.msk [vmem:[#allocation2 + $0x40] sm:$0xff] %vm371, 0.0
          %382 = vst.msk [vmem:[#allocation2 + $0x48] sm:$0x3] %vm373, 0.0
          %383 = vst.msk [vmem:[#allocation2 + $0x50] sm:$0xff] %vm371, 0.0
          %384 = vst.msk [vmem:[#allocation2 + $0x58] sm:$0x3] %vm373, 0.0
          %385 = vst.msk [vmem:[#allocation2 + $0x60] sm:$0xff] %vm371, 0.0
          %386 = vst.msk [vmem:[#allocation2 + $0x68] sm:$0x3] %vm373, 0.0
          %387 = vst.msk [vmem:[#allocation2 + $0x70] sm:$0xff] %vm371, 0.0
          %388 = vst.msk [vmem:[#allocation2 + $0x78] sm:$0x3] %vm373, 0.0
          %v389 = vld [vmem:[%s324] sm:$0xff]
          %v390 = vld [vmem:[%s324 + $0x8] sm:$0xff]
          %v391 = vld [vmem:[%s324 + $0x10] sm:$0xff]
          %v392 = vld [vmem:[%s324 + $0x18] sm:$0xff]
          %v393 = vld [vmem:[%s324 + $0x20] sm:$0xff]
          %v394 = vld [vmem:[%s324 + $0x28] sm:$0xff]
          %v395 = vld [vmem:[%s324 + $0x30] sm:$0xff]
          %v396 = vld [vmem:[%s324 + $0x38] sm:$0xff]
          %405 = vrot.lane.b32.xlu0 %v389, 1
          %v406 = vpop.permute.xlu0 %405
          %407 = vrot.lane.b32.xlu0 %v390, 1
          %v408 = vpop.permute.xlu0 %407
          %409 = vrot.lane.b32.xlu0 %v391, 1
          %v410 = vpop.permute.xlu0 %409
          %411 = vrot.lane.b32.xlu0 %v392, 1
          %v412 = vpop.permute.xlu0 %411
          %413 = vrot.lane.b32.xlu0 %v393, 1
          %v414 = vpop.permute.xlu0 %413
          %415 = vrot.lane.b32.xlu0 %v394, 1
          %v416 = vpop.permute.xlu0 %415
          %417 = vrot.lane.b32.xlu0 %v395, 1
          %v418 = vpop.permute.xlu0 %417
          %419 = vrot.lane.b32.xlu0 %v396, 1
          %v420 = vpop.permute.xlu0 %419
          %vm429 = vcmask 72712
          %430 = vst.msk [vmem:[#allocation2 + $0x1] sm:$0xff] %vm429, %v406
          %431 = vst.msk [vmem:[#allocation2 + $0x11] sm:$0xff] %vm429, %v408
          %432 = vst.msk [vmem:[#allocation2 + $0x21] sm:$0xff] %vm429, %v410
          %433 = vst.msk [vmem:[#allocation2 + $0x31] sm:$0xff] %vm429, %v412
          %434 = vst.msk [vmem:[#allocation2 + $0x41] sm:$0xff] %vm429, %v414
          %435 = vst.msk [vmem:[#allocation2 + $0x51] sm:$0xff] %vm429, %v416
          %436 = vst.msk [vmem:[#allocation2 + $0x61] sm:$0xff] %vm429, %v418
          %437 = vst.msk [vmem:[#allocation2 + $0x71] sm:$0xff] %vm429, %v420
          %v438 = vld [vmem:[#allocation2] sm:$0xff]
          %v439 = vld [vmem:[#allocation2 + $0x8] sm:$0x3]
          %v440 = vld [vmem:[#allocation2 + $0x10] sm:$0xff]
          %v441 = vld [vmem:[#allocation2 + $0x18] sm:$0x3]
          %v442 = vld [vmem:[#allocation2 + $0x20] sm:$0xff]
          %v443 = vld [vmem:[#allocation2 + $0x28] sm:$0x3]
          %v444 = vld [vmem:[#allocation2 + $0x30] sm:$0xff]
          %v445 = vld [vmem:[#allocation2 + $0x38] sm:$0x3]
          %v446 = vld [vmem:[#allocation2 + $0x40] sm:$0xff]
          %v447 = vld [vmem:[#allocation2 + $0x48] sm:$0x3]
          %v448 = vld [vmem:[#allocation2 + $0x50] sm:$0xff]
          %v449 = vld [vmem:[#allocation2 + $0x58] sm:$0x3]
          %v450 = vld [vmem:[#allocation2 + $0x60] sm:$0xff]
          %v451 = vld [vmem:[#allocation2 + $0x68] sm:$0x3]
          %v452 = vld [vmem:[#allocation2 + $0x70] sm:$0xff]
          %v453 = vld [vmem:[#allocation2 + $0x78] sm:$0x3]
          %v454 = vld [vmem:[%s1] sm:$0xff]
          %v456 = vcombine.high %v454, %v454
          %v458 = vunpack.c.l.s4 1966171168
          %v459 = vunpack.c.0.s8 %v458
          %v460 = vlaneseq
          %v461 = vshrl.u32 %v460, 7
          %v462 = vsub.s32 %v459, %v461
          %v463 = vrot.slane %v454, %v462
          %v465 = vunpack.c.l.s4 1966171168
          %v466 = vunpack.c.0.s8 %v465
          %v467 = vlaneseq
          %v468 = vshrl.u32 %v467, 7
          %v469 = vsub.s32 %v466, %v468
          %v470 = vrot.slane %v456, %v469
          %v471 = vcombine.high %v463, %v463
          %v472 = vcombine.high %v470, %v470
          %v474 = vunpack.c.l.s4 1966171168
          %v475 = vunpack.c.0.s8 %v474
          %v476 = vlaneseq
          %v477 = vshrl.u32 %v476, 7
          %v478 = vsub.s32 %v475, %v477
          %v479 = vrot.slane %v463, %v478
          %v481 = vunpack.c.l.s4 1966171168
          %v482 = vunpack.c.0.s8 %v481
          %v483 = vlaneseq
          %v484 = vshrl.u32 %v483, 7
          %v485 = vsub.s32 %v482, %v484
          %v486 = vrot.slane %v470, %v485
          %v488 = vunpack.c.l.s4 1966171168
          %v489 = vunpack.c.0.s8 %v488
          %v490 = vlaneseq
          %v491 = vshrl.u32 %v490, 7
          %v492 = vsub.s32 %v489, %v491
          %v493 = vrot.slane %v471, %v492
          %v495 = vunpack.c.l.s4 1966171168
          %v496 = vunpack.c.0.s8 %v495
          %v497 = vlaneseq
          %v498 = vshrl.u32 %v497, 7
          %v499 = vsub.s32 %v496, %v498
          %v500 = vrot.slane %v472, %v499
          %v501 = vcombine.high %v479, %v479
          %v502 = vcombine.high %v486, %v486
          %v503 = vcombine.high %v493, %v493
          %v504 = vcombine.high %v500, %v500
          %v505 = vlaneseq
          %v506 = vshrl.u32 %v505, 7
          %v507 = vsub.s32 0, %v506
          %v508 = vrot.slane %v479, %v507
          %v509 = vlaneseq
          %v510 = vshrl.u32 %v509, 7
          %v511 = vsub.s32 0, %v510
          %v512 = vrot.slane %v493, %v511
          %v513 = vlaneseq
          %v514 = vshrl.u32 %v513, 7
          %v515 = vsub.s32 0, %v514
          %v516 = vrot.slane %v501, %v515
          %v517 = vlaneseq
          %v518 = vshrl.u32 %v517, 7
          %v519 = vsub.s32 0, %v518
          %v520 = vrot.slane %v503, %v519
          %v521 = vlaneseq
          %v522 = vshrl.u32 %v521, 7
          %v523 = vsub.s32 0, %v522
          %v524 = vrot.slane %v486, %v523
          %v525 = vlaneseq
          %v526 = vshrl.u32 %v525, 7
          %v527 = vsub.s32 0, %v526
          %v528 = vrot.slane %v500, %v527
          %v529 = vlaneseq
          %v530 = vshrl.u32 %v529, 7
          %v531 = vsub.s32 0, %v530
          %v532 = vrot.slane %v502, %v531
          %v533 = vlaneseq
          %v534 = vshrl.u32 %v533, 7
          %v535 = vsub.s32 0, %v534
          %v536 = vrot.slane %v504, %v535
          %537 = vset.pattern.permute.xlu0 0
          %538 = vperm.xlu0 %537, %v508
          %v539 = vpop.permute.xlu0 %538
          %541 = vset.pattern.permute.xlu0 0
          %542 = vperm.xlu0 %541, %v512
          %v543 = vpop.permute.xlu0 %542
          %545 = vset.pattern.permute.xlu0 0
          %546 = vperm.xlu0 %545, %v516
          %v547 = vpop.permute.xlu0 %546
          %549 = vset.pattern.permute.xlu0 0
          %550 = vperm.xlu0 %549, %v520
          %v551 = vpop.permute.xlu0 %550
          %553 = vset.pattern.permute.xlu0 0
          %554 = vperm.xlu0 %553, %v524
          %v555 = vpop.permute.xlu0 %554
          %557 = vset.pattern.permute.xlu0 0
          %558 = vperm.xlu0 %557, %v528
          %v559 = vpop.permute.xlu0 %558
          %561 = vset.pattern.permute.xlu0 0
          %562 = vperm.xlu0 %561, %v532
          %v563 = vpop.permute.xlu0 %562
          %565 = vset.pattern.permute.xlu0 0
          %566 = vperm.xlu0 %565, %v536
          %v567 = vpop.permute.xlu0 %566
          %v569 = vmul.f32 %v438, %v539
          %v570 = vmul.f32 %v440, %v543
          %v571 = vmul.f32 %v442, %v547
          %v572 = vmul.f32 %v444, %v551
          %v573 = vmul.f32 %v446, %v555
          %v574 = vmul.f32 %v448, %v559
          %v575 = vmul.f32 %v450, %v563
          %v576 = vmul.f32 %v452, %v567
          %577 = vset.pattern.permute.xlu0 1
          %578 = vperm.xlu0 %577, %v508
          %v579 = vpop.permute.xlu0 %578
          %581 = vset.pattern.permute.xlu0 1
          %582 = vperm.xlu0 %581, %v512
          %v583 = vpop.permute.xlu0 %582
          %585 = vset.pattern.permute.xlu0 1
          %586 = vperm.xlu0 %585, %v516
          %v587 = vpop.permute.xlu0 %586
          %589 = vset.pattern.permute.xlu0 1
          %590 = vperm.xlu0 %589, %v520
          %v591 = vpop.permute.xlu0 %590
          %593 = vset.pattern.permute.xlu0 1
          %594 = vperm.xlu0 %593, %v524
          %v595 = vpop.permute.xlu0 %594
          %597 = vset.pattern.permute.xlu0 1
          %598 = vperm.xlu0 %597, %v528
          %v599 = vpop.permute.xlu0 %598
          %601 = vset.pattern.permute.xlu0 1
          %602 = vperm.xlu0 %601, %v532
          %v603 = vpop.permute.xlu0 %602
          %605 = vset.pattern.permute.xlu0 1
          %606 = vperm.xlu0 %605, %v536
          %v607 = vpop.permute.xlu0 %606
          %v609 = vmul.f32 %v438, %v579
          %v610 = vmul.f32 %v440, %v583
          %v611 = vmul.f32 %v442, %v587
          %v612 = vmul.f32 %v444, %v591
          %v613 = vmul.f32 %v446, %v595
          %v614 = vmul.f32 %v448, %v599
          %v615 = vmul.f32 %v450, %v603
          %v616 = vmul.f32 %v452, %v607
          %625 = vrot.lane.b32.xlu0 %v609, 127
          %v626 = vpop.permute.xlu0 %625
          %627 = vrot.lane.b32.xlu0 %v610, 127
          %v628 = vpop.permute.xlu0 %627
          %629 = vrot.lane.b32.xlu0 %v611, 127
          %v630 = vpop.permute.xlu0 %629
          %631 = vrot.lane.b32.xlu0 %v612, 127
          %v632 = vpop.permute.xlu0 %631
          %633 = vrot.lane.b32.xlu0 %v613, 127
          %v634 = vpop.permute.xlu0 %633
          %635 = vrot.lane.b32.xlu0 %v614, 127
          %v636 = vpop.permute.xlu0 %635
          %637 = vrot.lane.b32.xlu0 %v615, 127
          %v638 = vpop.permute.xlu0 %637
          %639 = vrot.lane.b32.xlu0 %v616, 127
          %v640 = vpop.permute.xlu0 %639
          %v649 = vadd.f32 %v569, %v626
          %v650 = vadd.f32 %v570, %v628
          %v651 = vadd.f32 %v571, %v630
          %v652 = vadd.f32 %v572, %v632
          %v653 = vadd.f32 %v573, %v634
          %v654 = vadd.f32 %v574, %v636
          %v655 = vadd.f32 %v575, %v638
          %v656 = vadd.f32 %v576, %v640
          %657 = vset.pattern.permute.xlu0 2
          %658 = vperm.xlu0 %657, %v508
          %v659 = vpop.permute.xlu0 %658
          %661 = vset.pattern.permute.xlu0 2
          %662 = vperm.xlu0 %661, %v512
          %v663 = vpop.permute.xlu0 %662
          %665 = vset.pattern.permute.xlu0 2
          %666 = vperm.xlu0 %665, %v516
          %v667 = vpop.permute.xlu0 %666
          %669 = vset.pattern.permute.xlu0 2
          %670 = vperm.xlu0 %669, %v520
          %v671 = vpop.permute.xlu0 %670
          %673 = vset.pattern.permute.xlu0 2
          %674 = vperm.xlu0 %673, %v524
          %v675 = vpop.permute.xlu0 %674
          %677 = vset.pattern.permute.xlu0 2
          %678 = vperm.xlu0 %677, %v528
          %v679 = vpop.permute.xlu0 %678
          %681 = vset.pattern.permute.xlu0 2
          %682 = vperm.xlu0 %681, %v532
          %v683 = vpop.permute.xlu0 %682
          %685 = vset.pattern.permute.xlu0 2
          %686 = vperm.xlu0 %685, %v536
          %v687 = vpop.permute.xlu0 %686
          %v689 = vmul.f32 %v438, %v659
          %v690 = vmul.f32 %v440, %v663
          %v691 = vmul.f32 %v442, %v667
          %v692 = vmul.f32 %v444, %v671
          %v693 = vmul.f32 %v446, %v675
          %v694 = vmul.f32 %v448, %v679
          %v695 = vmul.f32 %v450, %v683
          %v696 = vmul.f32 %v452, %v687
          %705 = vrot.lane.b32.xlu0 %v689, 126
          %v706 = vpop.permute.xlu0 %705
          %707 = vrot.lane.b32.xlu0 %v690, 126
          %v708 = vpop.permute.xlu0 %707
          %709 = vrot.lane.b32.xlu0 %v691, 126
          %v710 = vpop.permute.xlu0 %709
          %711 = vrot.lane.b32.xlu0 %v692, 126
          %v712 = vpop.permute.xlu0 %711
          %713 = vrot.lane.b32.xlu0 %v693, 126
          %v714 = vpop.permute.xlu0 %713
          %715 = vrot.lane.b32.xlu0 %v694, 126
          %v716 = vpop.permute.xlu0 %715
          %717 = vrot.lane.b32.xlu0 %v695, 126
          %v718 = vpop.permute.xlu0 %717
          %719 = vrot.lane.b32.xlu0 %v696, 126
          %v720 = vpop.permute.xlu0 %719
          %v729 = vadd.f32 %v649, %v706
          %v730 = vadd.f32 %v650, %v708
          %v731 = vadd.f32 %v651, %v710
          %v732 = vadd.f32 %v652, %v712
          %v733 = vadd.f32 %v653, %v714
          %v734 = vadd.f32 %v654, %v716
          %v735 = vadd.f32 %v655, %v718
          %v736 = vadd.f32 %v656, %v720
          %737 = vset.pattern.permute.xlu0 3
          %738 = vperm.xlu0 %737, %v508
          %v739 = vpop.permute.xlu0 %738
          %741 = vset.pattern.permute.xlu0 3
          %742 = vperm.xlu0 %741, %v512
          %v743 = vpop.permute.xlu0 %742
          %745 = vset.pattern.permute.xlu0 3
          %746 = vperm.xlu0 %745, %v516
          %v747 = vpop.permute.xlu0 %746
          %749 = vset.pattern.permute.xlu0 3
          %750 = vperm.xlu0 %749, %v520
          %v751 = vpop.permute.xlu0 %750
          %753 = vset.pattern.permute.xlu0 3
          %754 = vperm.xlu0 %753, %v524
          %v755 = vpop.permute.xlu0 %754
          %757 = vset.pattern.permute.xlu0 3
          %758 = vperm.xlu0 %757, %v528
          %v759 = vpop.permute.xlu0 %758
          %761 = vset.pattern.permute.xlu0 3
          %762 = vperm.xlu0 %761, %v532
          %v763 = vpop.permute.xlu0 %762
          %765 = vset.pattern.permute.xlu0 3
          %766 = vperm.xlu0 %765, %v536
          %v767 = vpop.permute.xlu0 %766
          %v769 = vmul.f32 %v438, %v739
          %v770 = vmul.f32 %v439, %v739
          %v771 = vmul.f32 %v440, %v743
          %v772 = vmul.f32 %v441, %v743
          %v773 = vmul.f32 %v442, %v747
          %v774 = vmul.f32 %v443, %v747
          %v775 = vmul.f32 %v444, %v751
          %v776 = vmul.f32 %v445, %v751
          %v777 = vmul.f32 %v446, %v755
          %v778 = vmul.f32 %v447, %v755
          %v779 = vmul.f32 %v448, %v759
          %v780 = vmul.f32 %v449, %v759
          %v781 = vmul.f32 %v450, %v763
          %v782 = vmul.f32 %v451, %v763
          %v783 = vmul.f32 %v452, %v767
          %v784 = vmul.f32 %v453, %v767
          %vm801 = vcmask 1046528
          %v802 = vrot.slane %v769, 1
          %v803 = vrot.slane %v770, 1
          %v804 = vsel %vm801, %v802, %v803
          %v805 = vrot.slane %v771, 1
          %v806 = vrot.slane %v772, 1
          %v807 = vsel %vm801, %v805, %v806
          %v808 = vrot.slane %v773, 1
          %v809 = vrot.slane %v774, 1
          %v810 = vsel %vm801, %v808, %v809
          %v811 = vrot.slane %v775, 1
          %v812 = vrot.slane %v776, 1
          %v813 = vsel %vm801, %v811, %v812
          %v814 = vrot.slane %v777, 1
          %v815 = vrot.slane %v778, 1
          %v816 = vsel %vm801, %v814, %v815
          %v817 = vrot.slane %v779, 1
          %v818 = vrot.slane %v780, 1
          %v819 = vsel %vm801, %v817, %v818
          %v820 = vrot.slane %v781, 1
          %v821 = vrot.slane %v782, 1
          %v822 = vsel %vm801, %v820, %v821
          %v823 = vrot.slane %v783, 1
          %v824 = vrot.slane %v784, 1
          %v825 = vsel %vm801, %v823, %v824
          %v834 = vadd.f32 %v729, %v804
          %v835 = vadd.f32 %v730, %v807
          %v836 = vadd.f32 %v731, %v810
          %v837 = vadd.f32 %v732, %v813
          %v838 = vadd.f32 %v733, %v816
          %v839 = vadd.f32 %v734, %v819
          %v840 = vadd.f32 %v735, %v822
          %v841 = vadd.f32 %v736, %v825
          %842 = vset.pattern.permute.xlu0 4
          %843 = vperm.xlu0 %842, %v508
          %v844 = vpop.permute.xlu0 %843
          %846 = vset.pattern.permute.xlu0 4
          %847 = vperm.xlu0 %846, %v512
          %v848 = vpop.permute.xlu0 %847
          %850 = vset.pattern.permute.xlu0 4
          %851 = vperm.xlu0 %850, %v516
          %v852 = vpop.permute.xlu0 %851
          %854 = vset.pattern.permute.xlu0 4
          %855 = vperm.xlu0 %854, %v520
          %v856 = vpop.permute.xlu0 %855
          %858 = vset.pattern.permute.xlu0 4
          %859 = vperm.xlu0 %858, %v524
          %v860 = vpop.permute.xlu0 %859
          %862 = vset.pattern.permute.xlu0 4
          %863 = vperm.xlu0 %862, %v528
          %v864 = vpop.permute.xlu0 %863
          %866 = vset.pattern.permute.xlu0 4
          %867 = vperm.xlu0 %866, %v532
          %v868 = vpop.permute.xlu0 %867
          %870 = vset.pattern.permute.xlu0 4
          %871 = vperm.xlu0 %870, %v536
          %v872 = vpop.permute.xlu0 %871
          %v874 = vmul.f32 %v438, %v844
          %v875 = vmul.f32 %v439, %v844
          %v876 = vmul.f32 %v440, %v848
          %v877 = vmul.f32 %v441, %v848
          %v878 = vmul.f32 %v442, %v852
          %v879 = vmul.f32 %v443, %v852
          %v880 = vmul.f32 %v444, %v856
          %v881 = vmul.f32 %v445, %v856
          %v882 = vmul.f32 %v446, %v860
          %v883 = vmul.f32 %v447, %v860
          %v884 = vmul.f32 %v448, %v864
          %v885 = vmul.f32 %v449, %v864
          %v886 = vmul.f32 %v450, %v868
          %v887 = vmul.f32 %v451, %v868
          %v888 = vmul.f32 %v452, %v872
          %v889 = vmul.f32 %v453, %v872
          %v906 = vrot.slane %v874, 1
          %v907 = vrot.slane %v875, 1
          %v908 = vsel %vm801, %v906, %v907
          %v909 = vrot.slane %v876, 1
          %v910 = vrot.slane %v877, 1
          %v911 = vsel %vm801, %v909, %v910
          %v912 = vrot.slane %v878, 1
          %v913 = vrot.slane %v879, 1
          %v914 = vsel %vm801, %v912, %v913
          %v915 = vrot.slane %v880, 1
          %v916 = vrot.slane %v881, 1
          %v917 = vsel %vm801, %v915, %v916
          %v918 = vrot.slane %v882, 1
          %v919 = vrot.slane %v883, 1
          %v920 = vsel %vm801, %v918, %v919
          %v921 = vrot.slane %v884, 1
          %v922 = vrot.slane %v885, 1
          %v923 = vsel %vm801, %v921, %v922
          %v924 = vrot.slane %v886, 1
          %v925 = vrot.slane %v887, 1
          %v926 = vsel %vm801, %v924, %v925
          %v927 = vrot.slane %v888, 1
          %v928 = vrot.slane %v889, 1
          %v929 = vsel %vm801, %v927, %v928
          %930 = vrot.lane.b32.xlu0 %v908, 127
          %v931 = vpop.permute.xlu0 %930
          %932 = vrot.lane.b32.xlu0 %v911, 127
          %v933 = vpop.permute.xlu0 %932
          %934 = vrot.lane.b32.xlu0 %v914, 127
          %v935 = vpop.permute.xlu0 %934
          %936 = vrot.lane.b32.xlu0 %v917, 127
          %v937 = vpop.permute.xlu0 %936
          %938 = vrot.lane.b32.xlu0 %v920, 127
          %v939 = vpop.permute.xlu0 %938
          %940 = vrot.lane.b32.xlu0 %v923, 127
          %v941 = vpop.permute.xlu0 %940
          %942 = vrot.lane.b32.xlu0 %v926, 127
          %v943 = vpop.permute.xlu0 %942
          %944 = vrot.lane.b32.xlu0 %v929, 127
          %v945 = vpop.permute.xlu0 %944
          %v954 = vadd.f32 %v834, %v931
          %v955 = vadd.f32 %v835, %v933
          %v956 = vadd.f32 %v836, %v935
          %v957 = vadd.f32 %v837, %v937
          %v958 = vadd.f32 %v838, %v939
          %v959 = vadd.f32 %v839, %v941
          %v960 = vadd.f32 %v840, %v943
          %v961 = vadd.f32 %v841, %v945
          %962 = vset.pattern.permute.xlu0 5
          %963 = vperm.xlu0 %962, %v508
          %v964 = vpop.permute.xlu0 %963
          %966 = vset.pattern.permute.xlu0 5
          %967 = vperm.xlu0 %966, %v512
          %v968 = vpop.permute.xlu0 %967
          %970 = vset.pattern.permute.xlu0 5
          %971 = vperm.xlu0 %970, %v516
          %v972 = vpop.permute.xlu0 %971
          %974 = vset.pattern.permute.xlu0 5
          %975 = vperm.xlu0 %974, %v520
          %v976 = vpop.permute.xlu0 %975
          %978 = vset.pattern.permute.xlu0 5
          %979 = vperm.xlu0 %978, %v524
          %v980 = vpop.permute.xlu0 %979
          %982 = vset.pattern.permute.xlu0 5
          %983 = vperm.xlu0 %982, %v528
          %v984 = vpop.permute.xlu0 %983
          %986 = vset.pattern.permute.xlu0 5
          %987 = vperm.xlu0 %986, %v532
          %v988 = vpop.permute.xlu0 %987
          %990 = vset.pattern.permute.xlu0 5
          %991 = vperm.xlu0 %990, %v536
          %v992 = vpop.permute.xlu0 %991
          %v994 = vmul.f32 %v438, %v964
          %v995 = vmul.f32 %v439, %v964
          %v996 = vmul.f32 %v440, %v968
          %v997 = vmul.f32 %v441, %v968
          %v998 = vmul.f32 %v442, %v972
          %v999 = vmul.f32 %v443, %v972
          %v1000 = vmul.f32 %v444, %v976
          %v1001 = vmul.f32 %v445, %v976
          %v1002 = vmul.f32 %v446, %v980
          %v1003 = vmul.f32 %v447, %v980
          %v1004 = vmul.f32 %v448, %v984
          %v1005 = vmul.f32 %v449, %v984
          %v1006 = vmul.f32 %v450, %v988
          %v1007 = vmul.f32 %v451, %v988
          %v1008 = vmul.f32 %v452, %v992
          %v1009 = vmul.f32 %v453, %v992
          %v1026 = vrot.slane %v994, 1
          %v1027 = vrot.slane %v995, 1
          %v1028 = vsel %vm801, %v1026, %v1027
          %v1029 = vrot.slane %v996, 1
          %v1030 = vrot.slane %v997, 1
          %v1031 = vsel %vm801, %v1029, %v1030
          %v1032 = vrot.slane %v998, 1
          %v1033 = vrot.slane %v999, 1
          %v1034 = vsel %vm801, %v1032, %v1033
          %v1035 = vrot.slane %v1000, 1
          %v1036 = vrot.slane %v1001, 1
          %v1037 = vsel %vm801, %v1035, %v1036
          %v1038 = vrot.slane %v1002, 1
          %v1039 = vrot.slane %v1003, 1
          %v1040 = vsel %vm801, %v1038, %v1039
          %v1041 = vrot.slane %v1004, 1
          %v1042 = vrot.slane %v1005, 1
          %v1043 = vsel %vm801, %v1041, %v1042
          %v1044 = vrot.slane %v1006, 1
          %v1045 = vrot.slane %v1007, 1
          %v1046 = vsel %vm801, %v1044, %v1045
          %v1047 = vrot.slane %v1008, 1
          %v1048 = vrot.slane %v1009, 1
          %v1049 = vsel %vm801, %v1047, %v1048
          %1050 = vrot.lane.b32.xlu0 %v1028, 126
          %v1051 = vpop.permute.xlu0 %1050
          %1052 = vrot.lane.b32.xlu0 %v1031, 126
          %v1053 = vpop.permute.xlu0 %1052
          %1054 = vrot.lane.b32.xlu0 %v1034, 126
          %v1055 = vpop.permute.xlu0 %1054
          %1056 = vrot.lane.b32.xlu0 %v1037, 126
          %v1057 = vpop.permute.xlu0 %1056
          %1058 = vrot.lane.b32.xlu0 %v1040, 126
          %v1059 = vpop.permute.xlu0 %1058
          %1060 = vrot.lane.b32.xlu0 %v1043, 126
          %v1061 = vpop.permute.xlu0 %1060
          %1062 = vrot.lane.b32.xlu0 %v1046, 126
          %v1063 = vpop.permute.xlu0 %1062
          %1064 = vrot.lane.b32.xlu0 %v1049, 126
          %v1065 = vpop.permute.xlu0 %1064
          %v1074 = vadd.f32 %v954, %v1051
          %v1075 = vadd.f32 %v955, %v1053
          %v1076 = vadd.f32 %v956, %v1055
          %v1077 = vadd.f32 %v957, %v1057
          %v1078 = vadd.f32 %v958, %v1059
          %v1079 = vadd.f32 %v959, %v1061
          %v1080 = vadd.f32 %v960, %v1063
          %v1081 = vadd.f32 %v961, %v1065
          %1082 = vset.pattern.permute.xlu0 6
          %1083 = vperm.xlu0 %1082, %v508
          %v1084 = vpop.permute.xlu0 %1083
          %1086 = vset.pattern.permute.xlu0 6
          %1087 = vperm.xlu0 %1086, %v512
          %v1088 = vpop.permute.xlu0 %1087
          %1090 = vset.pattern.permute.xlu0 6
          %1091 = vperm.xlu0 %1090, %v516
          %v1092 = vpop.permute.xlu0 %1091
          %1094 = vset.pattern.permute.xlu0 6
          %1095 = vperm.xlu0 %1094, %v520
          %v1096 = vpop.permute.xlu0 %1095
          %1098 = vset.pattern.permute.xlu0 6
          %1099 = vperm.xlu0 %1098, %v524
          %v1100 = vpop.permute.xlu0 %1099
          %1102 = vset.pattern.permute.xlu0 6
          %1103 = vperm.xlu0 %1102, %v528
          %v1104 = vpop.permute.xlu0 %1103
          %1106 = vset.pattern.permute.xlu0 6
          %1107 = vperm.xlu0 %1106, %v532
          %v1108 = vpop.permute.xlu0 %1107
          %1110 = vset.pattern.permute.xlu0 6
          %1111 = vperm.xlu0 %1110, %v536
          %v1112 = vpop.permute.xlu0 %1111
          %v1114 = vmul.f32 %v438, %v1084
          %v1115 = vmul.f32 %v439, %v1084
          %v1116 = vmul.f32 %v440, %v1088
          %v1117 = vmul.f32 %v441, %v1088
          %v1118 = vmul.f32 %v442, %v1092
          %v1119 = vmul.f32 %v443, %v1092
          %v1120 = vmul.f32 %v444, %v1096
          %v1121 = vmul.f32 %v445, %v1096
          %v1122 = vmul.f32 %v446, %v1100
          %v1123 = vmul.f32 %v447, %v1100
          %v1124 = vmul.f32 %v448, %v1104
          %v1125 = vmul.f32 %v449, %v1104
          %v1126 = vmul.f32 %v450, %v1108
          %v1127 = vmul.f32 %v451, %v1108
          %v1128 = vmul.f32 %v452, %v1112
          %v1129 = vmul.f32 %v453, %v1112
          %vm1146 = vcmask 1045504
          %v1147 = vrot.slane %v1114, 2
          %v1148 = vrot.slane %v1115, 2
          %v1149 = vsel %vm1146, %v1147, %v1148
          %v1150 = vrot.slane %v1116, 2
          %v1151 = vrot.slane %v1117, 2
          %v1152 = vsel %vm1146, %v1150, %v1151
          %v1153 = vrot.slane %v1118, 2
          %v1154 = vrot.slane %v1119, 2
          %v1155 = vsel %vm1146, %v1153, %v1154
          %v1156 = vrot.slane %v1120, 2
          %v1157 = vrot.slane %v1121, 2
          %v1158 = vsel %vm1146, %v1156, %v1157
          %v1159 = vrot.slane %v1122, 2
          %v1160 = vrot.slane %v1123, 2
          %v1161 = vsel %vm1146, %v1159, %v1160
          %v1162 = vrot.slane %v1124, 2
          %v1163 = vrot.slane %v1125, 2
          %v1164 = vsel %vm1146, %v1162, %v1163
          %v1165 = vrot.slane %v1126, 2
          %v1166 = vrot.slane %v1127, 2
          %v1167 = vsel %vm1146, %v1165, %v1166
          %v1168 = vrot.slane %v1128, 2
          %v1169 = vrot.slane %v1129, 2
          %v1170 = vsel %vm1146, %v1168, %v1169
          %v1179 = vadd.f32 %v1074, %v1149
          %v1180 = vadd.f32 %v1075, %v1152
          %v1181 = vadd.f32 %v1076, %v1155
          %v1182 = vadd.f32 %v1077, %v1158
          %v1183 = vadd.f32 %v1078, %v1161
          %v1184 = vadd.f32 %v1079, %v1164
          %v1185 = vadd.f32 %v1080, %v1167
          %v1186 = vadd.f32 %v1081, %v1170
          %1187 = vset.pattern.permute.xlu0 7
          %1188 = vperm.xlu0 %1187, %v508
          %v1189 = vpop.permute.xlu0 %1188
          %1191 = vset.pattern.permute.xlu0 7
          %1192 = vperm.xlu0 %1191, %v512
          %v1193 = vpop.permute.xlu0 %1192
          %1195 = vset.pattern.permute.xlu0 7
          %1196 = vperm.xlu0 %1195, %v516
          %v1197 = vpop.permute.xlu0 %1196
          %1199 = vset.pattern.permute.xlu0 7
          %1200 = vperm.xlu0 %1199, %v520
          %v1201 = vpop.permute.xlu0 %1200
          %1203 = vset.pattern.permute.xlu0 7
          %1204 = vperm.xlu0 %1203, %v524
          %v1205 = vpop.permute.xlu0 %1204
          %1207 = vset.pattern.permute.xlu0 7
          %1208 = vperm.xlu0 %1207, %v528
          %v1209 = vpop.permute.xlu0 %1208
          %1211 = vset.pattern.permute.xlu0 7
          %1212 = vperm.xlu0 %1211, %v532
          %v1213 = vpop.permute.xlu0 %1212
          %1215 = vset.pattern.permute.xlu0 7
          %1216 = vperm.xlu0 %1215, %v536
          %v1217 = vpop.permute.xlu0 %1216
          %v1219 = vmul.f32 %v438, %v1189
          %v1220 = vmul.f32 %v439, %v1189
          %v1221 = vmul.f32 %v440, %v1193
          %v1222 = vmul.f32 %v441, %v1193
          %v1223 = vmul.f32 %v442, %v1197
          %v1224 = vmul.f32 %v443, %v1197
          %v1225 = vmul.f32 %v444, %v1201
          %v1226 = vmul.f32 %v445, %v1201
          %v1227 = vmul.f32 %v446, %v1205
          %v1228 = vmul.f32 %v447, %v1205
          %v1229 = vmul.f32 %v448, %v1209
          %v1230 = vmul.f32 %v449, %v1209
          %v1231 = vmul.f32 %v450, %v1213
          %v1232 = vmul.f32 %v451, %v1213
          %v1233 = vmul.f32 %v452, %v1217
          %v1234 = vmul.f32 %v453, %v1217
          %v1251 = vrot.slane %v1219, 2
          %v1252 = vrot.slane %v1220, 2
          %v1253 = vsel %vm1146, %v1251, %v1252
          %v1254 = vrot.slane %v1221, 2
          %v1255 = vrot.slane %v1222, 2
          %v1256 = vsel %vm1146, %v1254, %v1255
          %v1257 = vrot.slane %v1223, 2
          %v1258 = vrot.slane %v1224, 2
          %v1259 = vsel %vm1146, %v1257, %v1258
          %v1260 = vrot.slane %v1225, 2
          %v1261 = vrot.slane %v1226, 2
          %v1262 = vsel %vm1146, %v1260, %v1261
          %v1263 = vrot.slane %v1227, 2
          %v1264 = vrot.slane %v1228, 2
          %v1265 = vsel %vm1146, %v1263, %v1264
          %v1266 = vrot.slane %v1229, 2
          %v1267 = vrot.slane %v1230, 2
          %v1268 = vsel %vm1146, %v1266, %v1267
          %v1269 = vrot.slane %v1231, 2
          %v1270 = vrot.slane %v1232, 2
          %v1271 = vsel %vm1146, %v1269, %v1270
          %v1272 = vrot.slane %v1233, 2
          %v1273 = vrot.slane %v1234, 2
          %v1274 = vsel %vm1146, %v1272, %v1273
          %1275 = vrot.lane.b32.xlu0 %v1253, 127
          %v1276 = vpop.permute.xlu0 %1275
          %1277 = vrot.lane.b32.xlu0 %v1256, 127
          %v1278 = vpop.permute.xlu0 %1277
          %1279 = vrot.lane.b32.xlu0 %v1259, 127
          %v1280 = vpop.permute.xlu0 %1279
          %1281 = vrot.lane.b32.xlu0 %v1262, 127
          %v1282 = vpop.permute.xlu0 %1281
          %1283 = vrot.lane.b32.xlu0 %v1265, 127
          %v1284 = vpop.permute.xlu0 %1283
          %1285 = vrot.lane.b32.xlu0 %v1268, 127
          %v1286 = vpop.permute.xlu0 %1285
          %1287 = vrot.lane.b32.xlu0 %v1271, 127
          %v1288 = vpop.permute.xlu0 %1287
          %1289 = vrot.lane.b32.xlu0 %v1274, 127
          %v1290 = vpop.permute.xlu0 %1289
          %v1299 = vadd.f32 %v1179, %v1276
          %v1300 = vadd.f32 %v1180, %v1278
          %v1301 = vadd.f32 %v1181, %v1280
          %v1302 = vadd.f32 %v1182, %v1282
          %v1303 = vadd.f32 %v1183, %v1284
          %v1304 = vadd.f32 %v1184, %v1286
          %v1305 = vadd.f32 %v1185, %v1288
          %v1306 = vadd.f32 %v1186, %v1290
          %1307 = vset.pattern.permute.xlu0 8
          %1308 = vperm.xlu0 %1307, %v508
          %v1309 = vpop.permute.xlu0 %1308
          %1311 = vset.pattern.permute.xlu0 8
          %1312 = vperm.xlu0 %1311, %v512
          %v1313 = vpop.permute.xlu0 %1312
          %1315 = vset.pattern.permute.xlu0 8
          %1316 = vperm.xlu0 %1315, %v516
          %v1317 = vpop.permute.xlu0 %1316
          %1319 = vset.pattern.permute.xlu0 8
          %1320 = vperm.xlu0 %1319, %v520
          %v1321 = vpop.permute.xlu0 %1320
          %1323 = vset.pattern.permute.xlu0 8
          %1324 = vperm.xlu0 %1323, %v524
          %v1325 = vpop.permute.xlu0 %1324
          %1327 = vset.pattern.permute.xlu0 8
          %1328 = vperm.xlu0 %1327, %v528
          %v1329 = vpop.permute.xlu0 %1328
          %1331 = vset.pattern.permute.xlu0 8
          %1332 = vperm.xlu0 %1331, %v532
          %v1333 = vpop.permute.xlu0 %1332
          %1335 = vset.pattern.permute.xlu0 8
          %1336 = vperm.xlu0 %1335, %v536
          %v1337 = vpop.permute.xlu0 %1336
          %v1339 = vmul.f32 %v438, %v1309
          %v1340 = vmul.f32 %v439, %v1309
          %v1341 = vmul.f32 %v440, %v1313
          %v1342 = vmul.f32 %v441, %v1313
          %v1343 = vmul.f32 %v442, %v1317
          %v1344 = vmul.f32 %v443, %v1317
          %v1345 = vmul.f32 %v444, %v1321
          %v1346 = vmul.f32 %v445, %v1321
          %v1347 = vmul.f32 %v446, %v1325
          %v1348 = vmul.f32 %v447, %v1325
          %v1349 = vmul.f32 %v448, %v1329
          %v1350 = vmul.f32 %v449, %v1329
          %v1351 = vmul.f32 %v450, %v1333
          %v1352 = vmul.f32 %v451, %v1333
          %v1353 = vmul.f32 %v452, %v1337
          %v1354 = vmul.f32 %v453, %v1337
          %v1371 = vrot.slane %v1339, 2
          %v1372 = vrot.slane %v1340, 2
          %v1373 = vsel %vm1146, %v1371, %v1372
          %v1374 = vrot.slane %v1341, 2
          %v1375 = vrot.slane %v1342, 2
          %v1376 = vsel %vm1146, %v1374, %v1375
          %v1377 = vrot.slane %v1343, 2
          %v1378 = vrot.slane %v1344, 2
          %v1379 = vsel %vm1146, %v1377, %v1378
          %v1380 = vrot.slane %v1345, 2
          %v1381 = vrot.slane %v1346, 2
          %v1382 = vsel %vm1146, %v1380, %v1381
          %v1383 = vrot.slane %v1347, 2
          %v1384 = vrot.slane %v1348, 2
          %v1385 = vsel %vm1146, %v1383, %v1384
          %v1386 = vrot.slane %v1349, 2
          %v1387 = vrot.slane %v1350, 2
          %v1388 = vsel %vm1146, %v1386, %v1387
          %v1389 = vrot.slane %v1351, 2
          %v1390 = vrot.slane %v1352, 2
          %v1391 = vsel %vm1146, %v1389, %v1390
          %v1392 = vrot.slane %v1353, 2
          %v1393 = vrot.slane %v1354, 2
          %v1394 = vsel %vm1146, %v1392, %v1393
          %1395 = vrot.lane.b32.xlu0 %v1373, 126
          %v1396 = vpop.permute.xlu0 %1395
          %1397 = vrot.lane.b32.xlu0 %v1376, 126
          %v1398 = vpop.permute.xlu0 %1397
          %1399 = vrot.lane.b32.xlu0 %v1379, 126
          %v1400 = vpop.permute.xlu0 %1399
          %1401 = vrot.lane.b32.xlu0 %v1382, 126
          %v1402 = vpop.permute.xlu0 %1401
          %1403 = vrot.lane.b32.xlu0 %v1385, 126
          %v1404 = vpop.permute.xlu0 %1403
          %1405 = vrot.lane.b32.xlu0 %v1388, 126
          %v1406 = vpop.permute.xlu0 %1405
          %1407 = vrot.lane.b32.xlu0 %v1391, 126
          %v1408 = vpop.permute.xlu0 %1407
          %1409 = vrot.lane.b32.xlu0 %v1394, 126
          %v1410 = vpop.permute.xlu0 %1409
          %v1419 = vadd.f32 %v1299, %v1396
          %v1420 = vadd.f32 %v1300, %v1398
          %v1421 = vadd.f32 %v1301, %v1400
          %v1422 = vadd.f32 %v1302, %v1402
          %v1423 = vadd.f32 %v1303, %v1404
          %v1424 = vadd.f32 %v1304, %v1406
          %v1425 = vadd.f32 %v1305, %v1408
          %v1426 = vadd.f32 %v1306, %v1410
          %v1427 = vld [vmem:[%s2] sm:$0xf]
          %v1428 = vld [vmem:[%s2 + $0x4] sm:$0xf]
          %v1429 = vcombine.low %v1419, %v1421
          %v1430 = vcombine.high %v1419, %v1421
          %v1432 = vunpack.c.l.s4 1983009808
          %v1433 = vunpack.c.0.s8 %v1432
          %v1434 = vlaneseq
          %v1435 = vshrl.u32 %v1434, 7
          %v1436 = vsub.s32 %v1433, %v1435
          %v1437 = vrot.slane %v1429, %v1436
          %v1439 = vunpack.c.l.s4 1983009808
          %v1440 = vunpack.c.0.s8 %v1439
          %v1441 = vlaneseq
          %v1442 = vshrl.u32 %v1441, 7
          %v1443 = vsub.s32 %v1440, %v1442
          %v1444 = vrot.slane %v1430, %v1443
          %v1445 = vcombine.low %v1420, %v1422
          %v1446 = vcombine.high %v1420, %v1422
          %v1448 = vunpack.c.l.s4 1983009808
          %v1449 = vunpack.c.0.s8 %v1448
          %v1450 = vlaneseq
          %v1451 = vshrl.u32 %v1450, 7
          %v1452 = vsub.s32 %v1449, %v1451
          %v1453 = vrot.slane %v1445, %v1452
          %v1455 = vunpack.c.l.s4 1983009808
          %v1456 = vunpack.c.0.s8 %v1455
          %v1457 = vlaneseq
          %v1458 = vshrl.u32 %v1457, 7
          %v1459 = vsub.s32 %v1456, %v1458
          %v1460 = vrot.slane %v1446, %v1459
          %v1461 = vcombine.low %v1423, %v1425
          %v1462 = vcombine.high %v1423, %v1425
          %v1464 = vunpack.c.l.s4 1983009808
          %v1465 = vunpack.c.0.s8 %v1464
          %v1466 = vlaneseq
          %v1467 = vshrl.u32 %v1466, 7
          %v1468 = vsub.s32 %v1465, %v1467
          %v1469 = vrot.slane %v1461, %v1468
          %v1471 = vunpack.c.l.s4 1983009808
          %v1472 = vunpack.c.0.s8 %v1471
          %v1473 = vlaneseq
          %v1474 = vshrl.u32 %v1473, 7
          %v1475 = vsub.s32 %v1472, %v1474
          %v1476 = vrot.slane %v1462, %v1475
          %v1477 = vcombine.low %v1424, %v1426
          %v1478 = vcombine.high %v1424, %v1426
          %v1480 = vunpack.c.l.s4 1983009808
          %v1481 = vunpack.c.0.s8 %v1480
          %v1482 = vlaneseq
          %v1483 = vshrl.u32 %v1482, 7
          %v1484 = vsub.s32 %v1481, %v1483
          %v1485 = vrot.slane %v1477, %v1484
          %v1487 = vunpack.c.l.s4 1983009808
          %v1488 = vunpack.c.0.s8 %v1487
          %v1489 = vlaneseq
          %v1490 = vshrl.u32 %v1489, 7
          %v1491 = vsub.s32 %v1488, %v1490
          %v1492 = vrot.slane %v1478, %v1491
          %v1493 = vcombine.low %v1437, %v1453
          %v1494 = vcombine.high %v1437, %v1453
          %v1496 = vunpack.c.l.s4 1934713408
          %v1497 = vunpack.c.0.s8 %v1496
          %v1498 = vlaneseq
          %v1499 = vshrl.u32 %v1498, 7
          %v1500 = vsub.s32 %v1497, %v1499
          %v1501 = vrot.slane %v1493, %v1500
          %v1503 = vunpack.c.l.s4 1934713408
          %v1504 = vunpack.c.0.s8 %v1503
          %v1505 = vlaneseq
          %v1506 = vshrl.u32 %v1505, 7
          %v1507 = vsub.s32 %v1504, %v1506
          %v1508 = vrot.slane %v1494, %v1507
          %v1509 = vcombine.low %v1444, %v1460
          %v1510 = vcombine.high %v1444, %v1460
          %v1512 = vunpack.c.l.s4 1934713408
          %v1513 = vunpack.c.0.s8 %v1512
          %v1514 = vlaneseq
          %v1515 = vshrl.u32 %v1514, 7
          %v1516 = vsub.s32 %v1513, %v1515
          %v1517 = vrot.slane %v1509, %v1516
          %v1519 = vunpack.c.l.s4 1934713408
          %v1520 = vunpack.c.0.s8 %v1519
          %v1521 = vlaneseq
          %v1522 = vshrl.u32 %v1521, 7
          %v1523 = vsub.s32 %v1520, %v1522
          %v1524 = vrot.slane %v1510, %v1523
          %v1525 = vcombine.low %v1469, %v1485
          %v1526 = vcombine.high %v1469, %v1485
          %v1528 = vunpack.c.l.s4 1934713408
          %v1529 = vunpack.c.0.s8 %v1528
          %v1530 = vlaneseq
          %v1531 = vshrl.u32 %v1530, 7
          %v1532 = vsub.s32 %v1529, %v1531
          %v1533 = vrot.slane %v1525, %v1532
          %v1535 = vunpack.c.l.s4 1934713408
          %v1536 = vunpack.c.0.s8 %v1535
          %v1537 = vlaneseq
          %v1538 = vshrl.u32 %v1537, 7
          %v1539 = vsub.s32 %v1536, %v1538
          %v1540 = vrot.slane %v1526, %v1539
          %v1541 = vcombine.low %v1476, %v1492
          %v1542 = vcombine.high %v1476, %v1492
          %v1544 = vunpack.c.l.s4 1934713408
          %v1545 = vunpack.c.0.s8 %v1544
          %v1546 = vlaneseq
          %v1547 = vshrl.u32 %v1546, 7
          %v1548 = vsub.s32 %v1545, %v1547
          %v1549 = vrot.slane %v1541, %v1548
          %v1551 = vunpack.c.l.s4 1934713408
          %v1552 = vunpack.c.0.s8 %v1551
          %v1553 = vlaneseq
          %v1554 = vshrl.u32 %v1553, 7
          %v1555 = vsub.s32 %v1552, %v1554
          %v1556 = vrot.slane %v1542, %v1555
          %v1557 = vcombine.low %v1501, %v1533
          %v1558 = vcombine.high %v1501, %v1533
          %v1559 = vcombine.low %v1508, %v1540
          %v1560 = vcombine.high %v1508, %v1540
          %v1561 = vcombine.low %v1517, %v1549
          %v1562 = vcombine.high %v1517, %v1549
          %v1563 = vcombine.low %v1524, %v1556
          %v1564 = vcombine.high %v1524, %v1556
          %1566 = vrot.lane.b32.xlu0 %v1558, 8
          %v1567 = vpop.permute.xlu0 %1566
          %1570 = vrot.lane.b32.xlu0 %v1559, 16
          %v1571 = vpop.permute.xlu0 %1570
          %1574 = vrot.lane.b32.xlu0 %v1560, 24
          %v1575 = vpop.permute.xlu0 %1574
          %1578 = vrot.lane.b32.xlu0 %v1561, 32
          %v1579 = vpop.permute.xlu0 %1578
          %1582 = vrot.lane.b32.xlu0 %v1562, 40
          %v1583 = vpop.permute.xlu0 %1582
          %1586 = vrot.lane.b32.xlu0 %v1563, 48
          %v1587 = vpop.permute.xlu0 %1586
          %1590 = vrot.lane.b32.xlu0 %v1564, 56
          %v1591 = vpop.permute.xlu0 %1590
          %vm1593 = vcmask 64512
          %v1594 = vsel %vm1593, %v1557, %v1567
          %vm1595 = vcmask 130048
          %v1596 = vsel %vm1595, %v1594, %v1571
          %vm1597 = vcmask 195584
          %v1598 = vsel %vm1597, %v1596, %v1575
          %vm1599 = vcmask 261120
          %v1600 = vsel %vm1599, %v1598, %v1579
          %vm1601 = vcmask 326656
          %v1602 = vsel %vm1601, %v1600, %v1583
          %vm1603 = vcmask 392192
          %v1604 = vsel %vm1603, %v1602, %v1587
          %vm1605 = vcmask 457728
          %v1606 = vsel %vm1605, %v1604, %v1591
          %v1607 = vpack.c.bf16 %v1606, %v1606
          %v1608 = vld [vmem:[%s3] sm:$0xff]
          %v1609 = vld [vmem:[%s3 + $0x8] sm:$0xff]
          %1611 = vset.pattern.permute.xlu0 0
          %1612 = vperm.xlu0 %1611, %v1608
          %v1613 = vpop.permute.xlu0 %1612
          %1616 = vset.pattern.permute.xlu0 0
          %1617 = vperm.xlu0 %1616, %v1609
          %v1618 = vpop.permute.xlu0 %1617
          %v1622 = vunpack.c.l.b16 %v1427
          %v1623 = vunpack.c.l.b16 %v1428
          %v1624 = vpack.c.b16 %v1623, %v1622
          %v1626 = vsel %vm1593, %v1624, 0
          %vm1628 = vcmask 1043456
          %v1630 = vsel %vm1628, %v1607, 0
          %1632 = vmatprep.subr.bf16.mxu0 0
          %1633 = vmatpush1.bf16.msra.mxu0 %v1630
          %1634 = vmatprep.subr.bf16.mxu0 0
          %1635 = vmatpush1.bf16.msra.mxu0 0
          %1636 = vmatprep.subr.bf16.mxu0 0
          %1637 = vmatpush1.bf16.msra.mxu0 0
          %1638 = vmatprep.subr.bf16.mxu0 0
          %1639 = vmatpush1.bf16.msra.mxu0 0
          %1640 = vmatprep.subr.bf16.mxu0 0
          %1641 = vmatpush1.bf16.msra.mxu0 0
          %1642 = vmatprep.subr.bf16.mxu0 0
          %1643 = vmatpush1.bf16.msra.mxu0 0
          %1644 = vmatprep.subr.bf16.mxu0 0
          %1645 = vmatpush1.bf16.msra.mxu0 0
          %1646 = vmatprep.subr.bf16.mxu0 0
          %1647 = vmatpush1.bf16.msra.mxu0 0
          %1648 = vmatprep.subr.bf16.mxu0 0
          %1649 = vmatpush1.bf16.msra.mxu0 0
          %1650 = vmatprep.subr.bf16.mxu0 0
          %1651 = vmatpush1.bf16.msra.mxu0 0
          %1652 = vmatprep.subr.bf16.mxu0 0
          %1653 = vmatpush1.bf16.msra.mxu0 0
          %1654 = vmatprep.subr.bf16.mxu0 0
          %1655 = vmatpush1.bf16.msra.mxu0 0
          %1656 = vmatprep.subr.bf16.mxu0 0
          %1657 = vmatpush1.bf16.msra.mxu0 0
          %1658 = vmatprep.subr.bf16.mxu0 0
          %1659 = vmatpush1.bf16.msra.mxu0 0
          %1660 = vmatprep.subr.bf16.mxu0 0
          %1661 = vmatpush1.bf16.msra.mxu0 0
          %1662 = vmatprep.subr.bf16.mxu0 0
          %1663 = vmatpush1.bf16.msra.mxu0 0
          %1664 = vmatprep.mubr.bf16.mxu0 0
          %1665 = vmatmul.mubr.bf16.gmra.mrb[0].mxu0 %v1626
          %v1666 = vpop.f32.mrb[0].mxu0
          %v1667 = vadd.f32 %v1613, %v1666
          %v1668 = vpop.f32.mrb[0].mxu0
          %v1669 = vpop.f32.mrb[0].mxu0
          %v1670 = vadd.f32 %v1618, %v1669
          %v1671 = vpop.f32.mrb[0].mxu0
          %1672 = vdwg.mxu0
          %v1673 = vmax.f32 %v1667, 0.0
          %v1674 = vmax.f32 %v1670, 0.0
          %v1675 = vld [vmem:[%s4] sm:$0xf]
          %v1676 = vpack.c.bf16 %v1674, %v1673
          %v1677 = vld [vmem:[%s5] sm:$0xff]
          %1679 = vset.pattern.permute.xlu0 0
          %1680 = vperm.xlu0 %1679, %v1677
          %v1681 = vpop.permute.xlu0 %1680
          %v1684 = vsel %vm1595, %v1675, 0
          %1686 = vmatprep.subr.bf16.mxu0 0
          %1687 = vmatpush1.bf16.msra.mxu0 %v1676
          %1688 = vmatprep.subr.bf16.mxu0 0
          %1689 = vmatpush1.bf16.msra.mxu0 0
          %1690 = vmatprep.subr.bf16.mxu0 0
          %1691 = vmatpush1.bf16.msra.mxu0 0
          %1692 = vmatprep.subr.bf16.mxu0 0
          %1693 = vmatpush1.bf16.msra.mxu0 0
          %1694 = vmatprep.subr.bf16.mxu0 0
          %1695 = vmatpush1.bf16.msra.mxu0 0
          %1696 = vmatprep.subr.bf16.mxu0 0
          %1697 = vmatpush1.bf16.msra.mxu0 0
          %1698 = vmatprep.subr.bf16.mxu0 0
          %1699 = vmatpush1.bf16.msra.mxu0 0
          %1700 = vmatprep.subr.bf16.mxu0 0
          %1701 = vmatpush1.bf16.msra.mxu0 0
          %1702 = vmatprep.subr.bf16.mxu0 0
          %1703 = vmatpush1.bf16.msra.mxu0 0
          %1704 = vmatprep.subr.bf16.mxu0 0
          %1705 = vmatpush1.bf16.msra.mxu0 0
          %1706 = vmatprep.subr.bf16.mxu0 0
          %1707 = vmatpush1.bf16.msra.mxu0 0
          %1708 = vmatprep.subr.bf16.mxu0 0
          %1709 = vmatpush1.bf16.msra.mxu0 0
          %1710 = vmatprep.subr.bf16.mxu0 0
          %1711 = vmatpush1.bf16.msra.mxu0 0
          %1712 = vmatprep.subr.bf16.mxu0 0
          %1713 = vmatpush1.bf16.msra.mxu0 0
          %1714 = vmatprep.subr.bf16.mxu0 0
          %1715 = vmatpush1.bf16.msra.mxu0 0
          %1716 = vmatprep.subr.bf16.mxu0 0
          %1717 = vmatpush1.bf16.msra.mxu0 0
          %1718 = vmatprep.mubr.bf16.mxu0 0
          %1719 = vmatmul.mubr.bf16.gmra.mrb[0].mxu0 %v1684
          %v1720 = vpop.f32.mrb[0].mxu0
          %v1721 = vadd.f32 %v1681, %v1720
          %v1722 = vpop.f32.mrb[0].mxu0
          %v1723 = vpop.f32.mrb[0].mxu0
          %v1724 = vpop.f32.mrb[0].mxu0
          %1725 = vdwg.mxu0
          %1727 = vrot.lane.b32.xlu0 %v1721, 120
          %v1728 = vpop.permute.xlu0 %1727
          %1730 = vrot.lane.b32.xlu0 %v1721, 112
          %v1731 = vpop.permute.xlu0 %1730
          %1733 = vrot.lane.b32.xlu0 %v1721, 104
          %v1734 = vpop.permute.xlu0 %1733
          %1736 = vrot.lane.b32.xlu0 %v1721, 96
          %v1737 = vpop.permute.xlu0 %1736
          %1739 = vrot.lane.b32.xlu0 %v1721, 88
          %v1740 = vpop.permute.xlu0 %1739
          %1742 = vrot.lane.b32.xlu0 %v1721, 80
          %v1743 = vpop.permute.xlu0 %1742
          %1745 = vrot.lane.b32.xlu0 %v1721, 72
          %v1746 = vpop.permute.xlu0 %1745
          %v1748 = vcombine.low %v1721, %v1731
          %v1749 = vcombine.high %v1721, %v1731
          %v1751 = vunpack.c.l.s4 1983009808
          %v1752 = vunpack.c.0.s8 %v1751
          %v1753 = vlaneseq
          %v1754 = vshrl.u32 %v1753, 7
          %v1755 = vsub.s32 %v1752, %v1754
          %v1756 = vrot.slane %v1748, %v1755
          %v1758 = vunpack.c.l.s4 1983009808
          %v1759 = vunpack.c.0.s8 %v1758
          %v1760 = vlaneseq
          %v1761 = vshrl.u32 %v1760, 7
          %v1762 = vsub.s32 %v1759, %v1761
          %v1763 = vrot.slane %v1749, %v1762
          %v1764 = vcombine.low %v1728, %v1734
          %v1765 = vcombine.high %v1728, %v1734
          %v1767 = vunpack.c.l.s4 1983009808
          %v1768 = vunpack.c.0.s8 %v1767
          %v1769 = vlaneseq
          %v1770 = vshrl.u32 %v1769, 7
          %v1771 = vsub.s32 %v1768, %v1770
          %v1772 = vrot.slane %v1764, %v1771
          %v1774 = vunpack.c.l.s4 1983009808
          %v1775 = vunpack.c.0.s8 %v1774
          %v1776 = vlaneseq
          %v1777 = vshrl.u32 %v1776, 7
          %v1778 = vsub.s32 %v1775, %v1777
          %v1779 = vrot.slane %v1765, %v1778
          %v1780 = vcombine.low %v1737, %v1743
          %v1781 = vcombine.high %v1737, %v1743
          %v1783 = vunpack.c.l.s4 1983009808
          %v1784 = vunpack.c.0.s8 %v1783
          %v1785 = vlaneseq
          %v1786 = vshrl.u32 %v1785, 7
          %v1787 = vsub.s32 %v1784, %v1786
          %v1788 = vrot.slane %v1780, %v1787
          %v1790 = vunpack.c.l.s4 1983009808
          %v1791 = vunpack.c.0.s8 %v1790
          %v1792 = vlaneseq
          %v1793 = vshrl.u32 %v1792, 7
          %v1794 = vsub.s32 %v1791, %v1793
          %v1795 = vrot.slane %v1781, %v1794
          %v1796 = vcombine.low %v1740, %v1746
          %v1797 = vcombine.high %v1740, %v1746
          %v1799 = vunpack.c.l.s4 1983009808
          %v1800 = vunpack.c.0.s8 %v1799
          %v1801 = vlaneseq
          %v1802 = vshrl.u32 %v1801, 7
          %v1803 = vsub.s32 %v1800, %v1802
          %v1804 = vrot.slane %v1796, %v1803
          %v1806 = vunpack.c.l.s4 1983009808
          %v1807 = vunpack.c.0.s8 %v1806
          %v1808 = vlaneseq
          %v1809 = vshrl.u32 %v1808, 7
          %v1810 = vsub.s32 %v1807, %v1809
          %v1811 = vrot.slane %v1797, %v1810
          %v1812 = vcombine.low %v1756, %v1772
          %v1813 = vcombine.high %v1756, %v1772
          %v1815 = vunpack.c.l.s4 1934713408
          %v1816 = vunpack.c.0.s8 %v1815
          %v1817 = vlaneseq
          %v1818 = vshrl.u32 %v1817, 7
          %v1819 = vsub.s32 %v1816, %v1818
          %v1820 = vrot.slane %v1812, %v1819
          %v1822 = vunpack.c.l.s4 1934713408
          %v1823 = vunpack.c.0.s8 %v1822
          %v1824 = vlaneseq
          %v1825 = vshrl.u32 %v1824, 7
          %v1826 = vsub.s32 %v1823, %v1825
          %v1827 = vrot.slane %v1813, %v1826
          %v1828 = vcombine.low %v1763, %v1779
          %v1829 = vcombine.high %v1763, %v1779
          %v1831 = vunpack.c.l.s4 1934713408
          %v1832 = vunpack.c.0.s8 %v1831
          %v1833 = vlaneseq
          %v1834 = vshrl.u32 %v1833, 7
          %v1835 = vsub.s32 %v1832, %v1834
          %v1836 = vrot.slane %v1828, %v1835
          %v1838 = vunpack.c.l.s4 1934713408
          %v1839 = vunpack.c.0.s8 %v1838
          %v1840 = vlaneseq
          %v1841 = vshrl.u32 %v1840, 7
          %v1842 = vsub.s32 %v1839, %v1841
          %v1843 = vrot.slane %v1829, %v1842
          %v1844 = vcombine.low %v1788, %v1804
          %v1845 = vcombine.high %v1788, %v1804
          %v1847 = vunpack.c.l.s4 1934713408
          %v1848 = vunpack.c.0.s8 %v1847
          %v1849 = vlaneseq
          %v1850 = vshrl.u32 %v1849, 7
          %v1851 = vsub.s32 %v1848, %v1850
          %v1852 = vrot.slane %v1844, %v1851
          %v1854 = vunpack.c.l.s4 1934713408
          %v1855 = vunpack.c.0.s8 %v1854
          %v1856 = vlaneseq
          %v1857 = vshrl.u32 %v1856, 7
          %v1858 = vsub.s32 %v1855, %v1857
          %v1859 = vrot.slane %v1845, %v1858
          %v1860 = vcombine.low %v1795, %v1811
          %v1861 = vcombine.high %v1795, %v1811
          %v1863 = vunpack.c.l.s4 1934713408
          %v1864 = vunpack.c.0.s8 %v1863
          %v1865 = vlaneseq
          %v1866 = vshrl.u32 %v1865, 7
          %v1867 = vsub.s32 %v1864, %v1866
          %v1868 = vrot.slane %v1860, %v1867
          %v1870 = vunpack.c.l.s4 1934713408
          %v1871 = vunpack.c.0.s8 %v1870
          %v1872 = vlaneseq
          %v1873 = vshrl.u32 %v1872, 7
          %v1874 = vsub.s32 %v1871, %v1873
          %v1875 = vrot.slane %v1861, %v1874
          %v1876 = vcombine.low %v1820, %v1852
          %v1877 = vcombine.high %v1820, %v1852
          %v1878 = vcombine.low %v1827, %v1859
          %v1879 = vcombine.high %v1827, %v1859
          %v1880 = vcombine.low %v1836, %v1868
          %v1881 = vcombine.high %v1836, %v1868
          %v1882 = vcombine.low %v1843, %v1875
          %v1883 = vcombine.high %v1843, %v1875
          %v1884 = vpack.c.bf16 %v1876, %v1876
          %v1885 = vpack.c.bf16 %v1877, %v1877
          %v1886 = vpack.c.bf16 %v1878, %v1878
          %v1887 = vpack.c.bf16 %v1879, %v1879
          %v1888 = vpack.c.bf16 %v1880, %v1880
          %v1889 = vpack.c.bf16 %v1881, %v1881
          %v1890 = vpack.c.bf16 %v1882, %v1882
          %v1891 = vpack.c.bf16 %v1883, %v1883
          %v1892 = vld [vmem:[#allocation7] sm:$0xf]
          %v1893 = vld [vmem:[#allocation7 + $0x4] sm:$0xf]
          %v1894 = vld [vmem:[#allocation7 + $0x8] sm:$0xf]
          %v1895 = vld [vmem:[#allocation7 + $0xc] sm:$0xf]
          %v1896 = vld [vmem:[#allocation7 + $0x10] sm:$0xf]
          %v1897 = vld [vmem:[#allocation7 + $0x14] sm:$0xf]
          %v1898 = vld [vmem:[#allocation7 + $0x18] sm:$0xf]
          %v1899 = vld [vmem:[#allocation7 + $0x1c] sm:$0xf]
          %v1900 = vld [vmem:[#allocation7 + $0x20] sm:$0xf]
          %v1901 = vld [vmem:[#allocation7 + $0x24] sm:$0xf]
          %v1902 = vld [vmem:[#allocation7 + $0x28] sm:$0xf]
          %v1903 = vld [vmem:[#allocation7 + $0x2c] sm:$0xf]
          %v1904 = vld [vmem:[#allocation7 + $0x30] sm:$0xf]
          %v1905 = vld [vmem:[#allocation7 + $0x34] sm:$0xf]
          %v1906 = vld [vmem:[#allocation7 + $0x38] sm:$0xf]
          %v1907 = vld [vmem:[#allocation7 + $0x3c] sm:$0xf]
          %v1908 = vld [vmem:[#allocation7 + $0x40] sm:$0xf]
          %v1909 = vld [vmem:[#allocation7 + $0x44] sm:$0xf]
          %v1910 = vld [vmem:[#allocation7 + $0x48] sm:$0xf]
          %v1911 = vld [vmem:[#allocation7 + $0x4c] sm:$0xf]
          %v1912 = vld [vmem:[#allocation7 + $0x50] sm:$0xf]
          %v1913 = vld [vmem:[#allocation7 + $0x54] sm:$0xf]
          %v1914 = vld [vmem:[#allocation7 + $0x58] sm:$0xf]
          %v1915 = vld [vmem:[#allocation7 + $0x5c] sm:$0xf]
          %v1916 = vld [vmem:[#allocation7 + $0x60] sm:$0xf]
          %v1917 = vld [vmem:[#allocation7 + $0x64] sm:$0xf]
          %v1918 = vld [vmem:[#allocation7 + $0x68] sm:$0xf]
          %v1919 = vld [vmem:[#allocation7 + $0x6c] sm:$0xf]
          %v1920 = vld [vmem:[#allocation7 + $0x70] sm:$0xf]
          %v1921 = vld [vmem:[#allocation7 + $0x74] sm:$0xf]
          %v1922 = vld [vmem:[#allocation7 + $0x78] sm:$0xf]
          %v1923 = vld [vmem:[#allocation7 + $0x7c] sm:$0xf]
          %v1956 = vunpack.c.l.b16 %v1892
          %v1957 = vunpack.c.l.b16 %v1893
          %v1958 = vunpack.c.l.b16 %v1894
          %v1959 = vunpack.c.l.b16 %v1895
          %v1960 = vunpack.c.l.b16 %v1896
          %v1961 = vunpack.c.l.b16 %v1897
          %v1962 = vunpack.c.l.b16 %v1898
          %v1963 = vunpack.c.l.b16 %v1899
          %v1964 = vunpack.c.l.b16 %v1900
          %v1965 = vunpack.c.l.b16 %v1901
          %v1966 = vunpack.c.l.b16 %v1902
          %v1967 = vunpack.c.l.b16 %v1903
          %v1968 = vunpack.c.l.b16 %v1904
          %v1969 = vunpack.c.l.b16 %v1905
          %v1970 = vunpack.c.l.b16 %v1906
          %v1971 = vunpack.c.l.b16 %v1907
          %v1972 = vunpack.c.l.b16 %v1908
          %v1973 = vunpack.c.l.b16 %v1909
          %v1974 = vunpack.c.l.b16 %v1910
          %v1975 = vunpack.c.l.b16 %v1911
          %v1976 = vunpack.c.l.b16 %v1912
          %v1977 = vunpack.c.l.b16 %v1913
          %v1978 = vunpack.c.l.b16 %v1914
          %v1979 = vunpack.c.l.b16 %v1915
          %v1980 = vunpack.c.l.b16 %v1916
          %v1981 = vunpack.c.l.b16 %v1917
          %v1982 = vunpack.c.l.b16 %v1918
          %v1983 = vunpack.c.l.b16 %v1919
          %v1984 = vunpack.c.l.b16 %v1920
          %v1985 = vunpack.c.l.b16 %v1921
          %v1986 = vunpack.c.l.b16 %v1922
          %v1987 = vunpack.c.l.b16 %v1923
          %v1988 = vpack.c.b16 %v1957, %v1956
          %v1989 = vpack.c.b16 %v1959, %v1958
          %v1990 = vpack.c.b16 %v1961, %v1960
          %v1991 = vpack.c.b16 %v1963, %v1962
          %v1992 = vpack.c.b16 %v1965, %v1964
          %v1993 = vpack.c.b16 %v1967, %v1966
          %v1994 = vpack.c.b16 %v1969, %v1968
          %v1995 = vpack.c.b16 %v1971, %v1970
          %v1996 = vpack.c.b16 %v1973, %v1972
          %v1997 = vpack.c.b16 %v1975, %v1974
          %v1998 = vpack.c.b16 %v1977, %v1976
          %v1999 = vpack.c.b16 %v1979, %v1978
          %v2000 = vpack.c.b16 %v1981, %v1980
          %v2001 = vpack.c.b16 %v1983, %v1982
          %v2002 = vpack.c.b16 %v1985, %v1984
          %v2003 = vpack.c.b16 %v1987, %v1986
          %v2005 = vsel %vm1593, %v1988, 0
          %v2008 = vsel %vm1593, %v1989, 0
          %v2011 = vsel %vm1593, %v1990, 0
          %v2014 = vsel %vm1593, %v1991, 0
          %v2017 = vsel %vm1593, %v1992, 0
          %v2020 = vsel %vm1593, %v1993, 0
          %v2023 = vsel %vm1593, %v1994, 0
          %v2026 = vsel %vm1593, %v1995, 0
          %v2029 = vsel %vm1593, %v1996, 0
          %v2032 = vsel %vm1593, %v1997, 0
          %v2035 = vsel %vm1593, %v1998, 0
          %v2038 = vsel %vm1593, %v1999, 0
          %v2041 = vsel %vm1593, %v2000, 0
          %v2044 = vsel %vm1593, %v2001, 0
          %v2047 = vsel %vm1593, %v2002, 0
          %v2050 = vsel %vm1593, %v2003, 0
          %v2053 = vsel %vm1628, %v1884, 0
          %2055 = vmatprep.subr.bf16.mxu0 0
          %2056 = vmatpush1.bf16.msra.mxu0 %v2053
          %2057 = vmatprep.subr.bf16.mxu0 0
          %2058 = vmatpush1.bf16.msra.mxu0 0
          %2059 = vmatprep.subr.bf16.mxu0 0
          %2060 = vmatpush1.bf16.msra.mxu0 0
          %2061 = vmatprep.subr.bf16.mxu0 0
          %2062 = vmatpush1.bf16.msra.mxu0 0
          %2063 = vmatprep.subr.bf16.mxu0 0
          %2064 = vmatpush1.bf16.msra.mxu0 0
          %2065 = vmatprep.subr.bf16.mxu0 0
          %2066 = vmatpush1.bf16.msra.mxu0 0
          %2067 = vmatprep.subr.bf16.mxu0 0
          %2068 = vmatpush1.bf16.msra.mxu0 0
          %2069 = vmatprep.subr.bf16.mxu0 0
          %2070 = vmatpush1.bf16.msra.mxu0 0
          %2071 = vmatprep.subr.bf16.mxu0 0
          %2072 = vmatpush1.bf16.msra.mxu0 0
          %2073 = vmatprep.subr.bf16.mxu0 0
          %2074 = vmatpush1.bf16.msra.mxu0 0
          %2075 = vmatprep.subr.bf16.mxu0 0
          %2076 = vmatpush1.bf16.msra.mxu0 0
          %2077 = vmatprep.subr.bf16.mxu0 0
          %2078 = vmatpush1.bf16.msra.mxu0 0
          %2079 = vmatprep.subr.bf16.mxu0 0
          %2080 = vmatpush1.bf16.msra.mxu0 0
          %2081 = vmatprep.subr.bf16.mxu0 0
          %2082 = vmatpush1.bf16.msra.mxu0 0
          %2083 = vmatprep.subr.bf16.mxu0 0
          %2084 = vmatpush1.bf16.msra.mxu0 0
          %2085 = vmatprep.subr.bf16.mxu0 0
          %2086 = vmatpush1.bf16.msra.mxu0 0
          %2087 = vmatprep.mubr.bf16.mxu0 0
          %2088 = vmatmul.mubr.bf16.gmra.mrb[0].mxu0 %v2005
          %v2089 = vpop.f32.mrb[0].mxu0
          %v2090 = vadd.f32 0.0, %v2089
          %v2091 = vpop.f32.mrb[0].mxu0
          %v2092 = vpop.f32.mrb[0].mxu0
          %v2093 = vadd.f32 0.0, %v2092
          %v2094 = vpop.f32.mrb[0].mxu0
          %2095 = vmatprep.mubr.bf16.mxu0 0
          %2096 = vmatmul.mubr.bf16.gmra.mrb[0].mxu0 %v2008
          %v2097 = vpop.f32.mrb[0].mxu0
          %v2098 = vadd.f32 0.0, %v2097
          %v2099 = vpop.f32.mrb[0].mxu0
          %v2100 = vpop.f32.mrb[0].mxu0
          %v2101 = vadd.f32 0.0, %v2100
          %v2102 = vpop.f32.mrb[0].mxu0
          %2103 = vmatprep.mubr.bf16.mxu0 0
          %2104 = vmatmul.mubr.bf16.gmra.mrb[0].mxu0 %v2011
          %v2105 = vpop.f32.mrb[0].mxu0
          %v2106 = vadd.f32 0.0, %v2105
          %v2107 = vpop.f32.mrb[0].mxu0
          %v2108 = vpop.f32.mrb[0].mxu0
          %v2109 = vadd.f32 0.0, %v2108
          %v2110 = vpop.f32.mrb[0].mxu0
          %2111 = vmatprep.mubr.bf16.mxu0 0
          %2112 = vmatmul.mubr.bf16.gmra.mrb[0].mxu0 %v2014
          %v2113 = vpop.f32.mrb[0].mxu0
          %v2114 = vadd.f32 0.0, %v2113
          %v2115 = vpop.f32.mrb[0].mxu0
          %v2116 = vpop.f32.mrb[0].mxu0
          %v2117 = vadd.f32 0.0, %v2116
          %v2118 = vpop.f32.mrb[0].mxu0
          %2119 = vmatprep.mubr.bf16.mxu0 0
          %2120 = vmatmul.mubr.bf16.gmra.mrb[0].mxu0 %v2017
          %v2121 = vpop.f32.mrb[0].mxu0
          %v2122 = vadd.f32 0.0, %v2121
          %v2123 = vpop.f32.mrb[0].mxu0
          %v2124 = vpop.f32.mrb[0].mxu0
          %v2125 = vadd.f32 0.0, %v2124
          %v2126 = vpop.f32.mrb[0].mxu0
          %2127 = vmatprep.mubr.bf16.mxu0 0
          %2128 = vmatmul.mubr.bf16.gmra.mrb[0].mxu0 %v2020
          %v2129 = vpop.f32.mrb[0].mxu0
          %v2130 = vadd.f32 0.0, %v2129
          %v2131 = vpop.f32.mrb[0].mxu0
          %v2132 = vpop.f32.mrb[0].mxu0
          %v2133 = vadd.f32 0.0, %v2132
          %v2134 = vpop.f32.mrb[0].mxu0
          %2135 = vmatprep.mubr.bf16.mxu0 0
          %2136 = vmatmul.mubr.bf16.gmra.mrb[0].mxu0 %v2023
          %v2137 = vpop.f32.mrb[0].mxu0
          %v2138 = vadd.f32 0.0, %v2137
          %v2139 = vpop.f32.mrb[0].mxu0
          %v2140 = vpop.f32.mrb[0].mxu0
          %v2141 = vadd.f32 0.0, %v2140
          %v2142 = vpop.f32.mrb[0].mxu0
          %2143 = vmatprep.mubr.bf16.mxu0 0
          %2144 = vmatmul.mubr.bf16.gmra.mrb[0].mxu0 %v2026
          %v2145 = vpop.f32.mrb[0].mxu0
          %v2146 = vadd.f32 0.0, %v2145
          %v2147 = vpop.f32.mrb[0].mxu0
          %v2148 = vpop.f32.mrb[0].mxu0
          %v2149 = vadd.f32 0.0, %v2148
          %v2150 = vpop.f32.mrb[0].mxu0
          %2151 = vmatprep.mubr.bf16.mxu0 0
          %2152 = vmatmul.mubr.bf16.gmra.mrb[0].mxu0 %v2029
          %v2153 = vpop.f32.mrb[0].mxu0
          %v2154 = vadd.f32 0.0, %v2153
          %v2155 = vpop.f32.mrb[0].mxu0
          %v2156 = vpop.f32.mrb[0].mxu0
          %v2157 = vadd.f32 0.0, %v2156
          %v2158 = vpop.f32.mrb[0].mxu0
          %2159 = vmatprep.mubr.bf16.mxu0 0
          %2160 = vmatmul.mubr.bf16.gmra.mrb[0].mxu0 %v2032
          %v2161 = vpop.f32.mrb[0].mxu0
          %v2162 = vadd.f32 0.0, %v2161
          %v2163 = vpop.f32.mrb[0].mxu0
          %v2164 = vpop.f32.mrb[0].mxu0
          %v2165 = vadd.f32 0.0, %v2164
          %v2166 = vpop.f32.mrb[0].mxu0
          %2167 = vmatprep.mubr.bf16.mxu0 0
          %2168 = vmatmul.mubr.bf16.gmra.mrb[0].mxu0 %v2035
          %v2169 = vpop.f32.mrb[0].mxu0
          %v2170 = vadd.f32 0.0, %v2169
          %v2171 = vpop.f32.mrb[0].mxu0
          %v2172 = vpop.f32.mrb[0].mxu0
          %v2173 = vadd.f32 0.0, %v2172
          %v2174 = vpop.f32.mrb[0].mxu0
          %2175 = vmatprep.mubr.bf16.mxu0 0
          %2176 = vmatmul.mubr.bf16.gmra.mrb[0].mxu0 %v2038
          %v2177 = vpop.f32.mrb[0].mxu0
          %v2178 = vadd.f32 0.0, %v2177
          %v2179 = vpop.f32.mrb[0].mxu0
          %v2180 = vpop.f32.mrb[0].mxu0
          %v2181 = vadd.f32 0.0, %v2180
          %v2182 = vpop.f32.mrb[0].mxu0
          %2183 = vmatprep.mubr.bf16.mxu0 0
          %2184 = vmatmul.mubr.bf16.gmra.mrb[0].mxu0 %v2041
          %v2185 = vpop.f32.mrb[0].mxu0
          %v2186 = vadd.f32 0.0, %v2185
          %v2187 = vpop.f32.mrb[0].mxu0
          %v2188 = vpop.f32.mrb[0].mxu0
          %v2189 = vadd.f32 0.0, %v2188
          %v2190 = vpop.f32.mrb[0].mxu0
          %2191 = vmatprep.mubr.bf16.mxu0 0
          %2192 = vmatmul.mubr.bf16.gmra.mrb[0].mxu0 %v2044
          %v2193 = vpop.f32.mrb[0].mxu0
          %v2194 = vadd.f32 0.0, %v2193
          %v2195 = vpop.f32.mrb[0].mxu0
          %v2196 = vpop.f32.mrb[0].mxu0
          %v2197 = vadd.f32 0.0, %v2196
          %v2198 = vpop.f32.mrb[0].mxu0
          %2199 = vmatprep.mubr.bf16.mxu0 0
          %2200 = vmatmul.mubr.bf16.gmra.mrb[0].mxu0 %v2047
          %v2201 = vpop.f32.mrb[0].mxu0
          %v2202 = vadd.f32 0.0, %v2201
          %v2203 = vpop.f32.mrb[0].mxu0
          %v2204 = vpop.f32.mrb[0].mxu0
          %v2205 = vadd.f32 0.0, %v2204
          %v2206 = vpop.f32.mrb[0].mxu0
          %2207 = vmatprep.mubr.bf16.mxu0 0
          %2208 = vmatmul.mubr.bf16.gmra.mrb[0].mxu0 %v2050
          %v2209 = vpop.f32.mrb[0].mxu0
          %v2210 = vadd.f32 0.0, %v2209
          %v2211 = vpop.f32.mrb[0].mxu0
          %v2212 = vpop.f32.mrb[0].mxu0
          %v2213 = vadd.f32 0.0, %v2212
          %v2214 = vpop.f32.mrb[0].mxu0
          %2215 = vdwg.mxu0
          %v2216 = vpack.c.bf16 %v2093, %v2090
          %v2217 = vpack.c.bf16 %v2101, %v2098
          %v2218 = vpack.c.bf16 %v2109, %v2106
          %v2219 = vpack.c.bf16 %v2117, %v2114
          %v2220 = vpack.c.bf16 %v2125, %v2122
          %v2221 = vpack.c.bf16 %v2133, %v2130
          %v2222 = vpack.c.bf16 %v2141, %v2138
          %v2223 = vpack.c.bf16 %v2149, %v2146
          %v2224 = vpack.c.bf16 %v2157, %v2154
          %v2225 = vpack.c.bf16 %v2165, %v2162
          %v2226 = vpack.c.bf16 %v2173, %v2170
          %v2227 = vpack.c.bf16 %v2181, %v2178
          %v2228 = vpack.c.bf16 %v2189, %v2186
          %v2229 = vpack.c.bf16 %v2197, %v2194
          %v2230 = vpack.c.bf16 %v2205, %v2202
          %v2231 = vpack.c.bf16 %v2213, %v2210
          %2232 = vst.msk [vmem:[#allocation3] sm:$0xff] %vm1593, %v2216
          %2233 = vst.msk [vmem:[#allocation3 + $0x8] sm:$0xff] %vm1593, %v2217
          %2234 = vst.msk [vmem:[#allocation3 + $0x10] sm:$0xff] %vm1593, %v2218
          %2235 = vst.msk [vmem:[#allocation3 + $0x18] sm:$0xff] %vm1593, %v2219
          %2236 = vst.msk [vmem:[#allocation3 + $0x20] sm:$0xff] %vm1593, %v2220
          %2237 = vst.msk [vmem:[#allocation3 + $0x28] sm:$0xff] %vm1593, %v2221
          %2238 = vst.msk [vmem:[#allocation3 + $0x30] sm:$0xff] %vm1593, %v2222
          %2239 = vst.msk [vmem:[#allocation3 + $0x38] sm:$0xff] %vm1593, %v2223
          %2240 = vst.msk [vmem:[#allocation3 + $0x40] sm:$0xff] %vm1593, %v2224
          %2241 = vst.msk [vmem:[#allocation3 + $0x48] sm:$0xff] %vm1593, %v2225
          %2242 = vst.msk [vmem:[#allocation3 + $0x50] sm:$0xff] %vm1593, %v2226
          %2243 = vst.msk [vmem:[#allocation3 + $0x58] sm:$0xff] %vm1593, %v2227
          %2244 = vst.msk [vmem:[#allocation3 + $0x60] sm:$0xff] %vm1593, %v2228
          %2245 = vst.msk [vmem:[#allocation3 + $0x68] sm:$0xff] %vm1593, %v2229
          %2246 = vst.msk [vmem:[#allocation3 + $0x70] sm:$0xff] %vm1593, %v2230
          %2247 = vst.msk [vmem:[#allocation3 + $0x78] sm:$0xff] %vm1593, %v2231
          %v2249 = vsel %vm1628, %v1885, 0
          %2251 = vmatprep.subr.bf16.mxu0 0
          %2252 = vmatpush1.bf16.msra.mxu0 %v2249
          %2253 = vmatprep.subr.bf16.mxu0 0
          %2254 = vmatpush1.bf16.msra.mxu0 0
          %2255 = vmatprep.subr.bf16.mxu0 0
          %2256 = vmatpush1.bf16.msra.mxu0 0
          %2257 = vmatprep.subr.bf16.mxu0 0
          %2258 = vmatpush1.bf16.msra.mxu0 0
          %2259 = vmatprep.subr.bf16.mxu0 0
          %2260 = vmatpush1.bf16.msra.mxu0 0
          %2261 = vmatprep.subr.bf16.mxu0 0
          %2262 = vmatpush1.bf16.msra.mxu0 0
          %2263 = vmatprep.subr.bf16.mxu0 0
          %2264 = vmatpush1.bf16.msra.mxu0 0
          %2265 = vmatprep.subr.bf16.mxu0 0
          %2266 = vmatpush1.bf16.msra.mxu0 0
          %2267 = vmatprep.subr.bf16.mxu0 0
          %2268 = vmatpush1.bf16.msra.mxu0 0
          %2269 = vmatprep.subr.bf16.mxu0 0
          %2270 = vmatpush1.bf16.msra.mxu0 0
          %2271 = vmatprep.subr.bf16.mxu0 0
          %2272 = vmatpush1.bf16.msra.mxu0 0
          %2273 = vmatprep.subr.bf16.mxu0 0
          %2274 = vmatpush1.bf16.msra.mxu0 0
          %2275 = vmatprep.subr.bf16.mxu0 0
          %2276 = vmatpush1.bf16.msra.mxu0 0
          %2277 = vmatprep.subr.bf16.mxu0 0
          %2278 = vmatpush1.bf16.msra.mxu0 0
          %2279 = vmatprep.subr.bf16.mxu0 0
          %2280 = vmatpush1.bf16.msra.mxu0 0
          %2281 = vmatprep.subr.bf16.mxu0 0
          %2282 = vmatpush1.bf16.msra.mxu0 0
          %2283 = vmatprep.mubr.bf16.mxu0 0
          %2284 = vmatmul.mubr.bf16.gmra.mrb[0].mxu0 %v2005
          %v2285 = vpop.f32.mrb[0].mxu0
          %v2286 = vadd.f32 0.0, %v2285
          %v2287 = vpop.f32.mrb[0].mxu0
          %v2288 = vpop.f32.mrb[0].mxu0
          %v2289 = vadd.f32 0.0, %v2288
          %v2290 = vpop.f32.mrb[0].mxu0
          %2291 = vmatprep.mubr.bf16.mxu0 0
          %2292 = vmatmul.mubr.bf16.gmra.mrb[0].mxu0 %v2008
          %v2293 = vpop.f32.mrb[0].mxu0
          %v2294 = vadd.f32 0.0, %v2293
          %v2295 = vpop.f32.mrb[0].mxu0
          %v2296 = vpop.f32.mrb[0].mxu0
          %v2297 = vadd.f32 0.0, %v2296
          %v2298 = vpop.f32.mrb[0].mxu0
          %2299 = vmatprep.mubr.bf16.mxu0 0
          %2300 = vmatmul.mubr.bf16.gmra.mrb[0].mxu0 %v2011
          %v2301 = vpop.f32.mrb[0].mxu0
          %v2302 = vadd.f32 0.0, %v2301
          %v2303 = vpop.f32.mrb[0].mxu0
          %v2304 = vpop.f32.mrb[0].mxu0
          %v2305 = vadd.f32 0.0, %v2304
          %v2306 = vpop.f32.mrb[0].mxu0
          %2307 = vmatprep.mubr.bf16.mxu0 0
          %2308 = vmatmul.mubr.bf16.gmra.mrb[0].mxu0 %v2014
          %v2309 = vpop.f32.mrb[0].mxu0
          %v2310 = vadd.f32 0.0, %v2309
          %v2311 = vpop.f32.mrb[0].mxu0
          %v2312 = vpop.f32.mrb[0].mxu0
          %v2313 = vadd.f32 0.0, %v2312
          %v2314 = vpop.f32.mrb[0].mxu0
          %2315 = vmatprep.mubr.bf16.mxu0 0
          %2316 = vmatmul.mubr.bf16.gmra.mrb[0].mxu0 %v2017
          %v2317 = vpop.f32.mrb[0].mxu0
          %v2318 = vadd.f32 0.0, %v2317
          %v2319 = vpop.f32.mrb[0].mxu0
          %v2320 = vpop.f32.mrb[0].mxu0
          %v2321 = vadd.f32 0.0, %v2320
          %v2322 = vpop.f32.mrb[0].mxu0
          %2323 = vmatprep.mubr.bf16.mxu0 0
          %2324 = vmatmul.mubr.bf16.gmra.mrb[0].mxu0 %v2020
          %v2325 = vpop.f32.mrb[0].mxu0
          %v2326 = vadd.f32 0.0, %v2325
          %v2327 = vpop.f32.mrb[0].mxu0
          %v2328 = vpop.f32.mrb[0].mxu0
          %v2329 = vadd.f32 0.0, %v2328
          %v2330 = vpop.f32.mrb[0].mxu0
          %2331 = vmatprep.mubr.bf16.mxu0 0
          %2332 = vmatmul.mubr.bf16.gmra.mrb[0].mxu0 %v2023
          %v2333 = vpop.f32.mrb[0].mxu0
          %v2334 = vadd.f32 0.0, %v2333
          %v2335 = vpop.f32.mrb[0].mxu0
          %v2336 = vpop.f32.mrb[0].mxu0
          %v2337 = vadd.f32 0.0, %v2336
          %v2338 = vpop.f32.mrb[0].mxu0
          %2339 = vmatprep.mubr.bf16.mxu0 0
          %2340 = vmatmul.mubr.bf16.gmra.mrb[0].mxu0 %v2026
          %v2341 = vpop.f32.mrb[0].mxu0
          %v2342 = vadd.f32 0.0, %v2341
          %v2343 = vpop.f32.mrb[0].mxu0
          %v2344 = vpop.f32.mrb[0].mxu0
          %v2345 = vadd.f32 0.0, %v2344
          %v2346 = vpop.f32.mrb[0].mxu0
          %2347 = vmatprep.mubr.bf16.mxu0 0
          %2348 = vmatmul.mubr.bf16.gmra.mrb[0].mxu0 %v2029
          %v2349 = vpop.f32.mrb[0].mxu0
          %v2350 = vadd.f32 0.0, %v2349
          %v2351 = vpop.f32.mrb[0].mxu0
          %v2352 = vpop.f32.mrb[0].mxu0
          %v2353 = vadd.f32 0.0, %v2352
          %v2354 = vpop.f32.mrb[0].mxu0
          %2355 = vmatprep.mubr.bf16.mxu0 0
          %2356 = vmatmul.mubr.bf16.gmra.mrb[0].mxu0 %v2032
          %v2357 = vpop.f32.mrb[0].mxu0
          %v2358 = vadd.f32 0.0, %v2357
          %v2359 = vpop.f32.mrb[0].mxu0
          %v2360 = vpop.f32.mrb[0].mxu0
          %v2361 = vadd.f32 0.0, %v2360
          %v2362 = vpop.f32.mrb[0].mxu0
          %2363 = vmatprep.mubr.bf16.mxu0 0
          %2364 = vmatmul.mubr.bf16.gmra.mrb[0].mxu0 %v2035
          %v2365 = vpop.f32.mrb[0].mxu0
          %v2366 = vadd.f32 0.0, %v2365
          %v2367 = vpop.f32.mrb[0].mxu0
          %v2368 = vpop.f32.mrb[0].mxu0
          %v2369 = vadd.f32 0.0, %v2368
          %v2370 = vpop.f32.mrb[0].mxu0
          %2371 = vmatprep.mubr.bf16.mxu0 0
          %2372 = vmatmul.mubr.bf16.gmra.mrb[0].mxu0 %v2038
          %v2373 = vpop.f32.mrb[0].mxu0
          %v2374 = vadd.f32 0.0, %v2373
          %v2375 = vpop.f32.mrb[0].mxu0
          %v2376 = vpop.f32.mrb[0].mxu0
          %v2377 = vadd.f32 0.0, %v2376
          %v2378 = vpop.f32.mrb[0].mxu0
          %2379 = vmatprep.mubr.bf16.mxu0 0
          %2380 = vmatmul.mubr.bf16.gmra.mrb[0].mxu0 %v2041
          %v2381 = vpop.f32.mrb[0].mxu0
          %v2382 = vadd.f32 0.0, %v2381
          %v2383 = vpop.f32.mrb[0].mxu0
          %v2384 = vpop.f32.mrb[0].mxu0
          %v2385 = vadd.f32 0.0, %v2384
          %v2386 = vpop.f32.mrb[0].mxu0
          %2387 = vmatprep.mubr.bf16.mxu0 0
          %2388 = vmatmul.mubr.bf16.gmra.mrb[0].mxu0 %v2044
          %v2389 = vpop.f32.mrb[0].mxu0
          %v2390 = vadd.f32 0.0, %v2389
          %v2391 = vpop.f32.mrb[0].mxu0
          %v2392 = vpop.f32.mrb[0].mxu0
          %v2393 = vadd.f32 0.0, %v2392
          %v2394 = vpop.f32.mrb[0].mxu0
          %2395 = vmatprep.mubr.bf16.mxu0 0
          %2396 = vmatmul.mubr.bf16.gmra.mrb[0].mxu0 %v2047
          %v2397 = vpop.f32.mrb[0].mxu0
          %v2398 = vadd.f32 0.0, %v2397
          %v2399 = vpop.f32.mrb[0].mxu0
          %v2400 = vpop.f32.mrb[0].mxu0
          %v2401 = vadd.f32 0.0, %v2400
          %v2402 = vpop.f32.mrb[0].mxu0
          %2403 = vmatprep.mubr.bf16.mxu0 0
          %2404 = vmatmul.mubr.bf16.gmra.mrb[0].mxu0 %v2050
          %v2405 = vpop.f32.mrb[0].mxu0
          %v2406 = vadd.f32 0.0, %v2405
          %v2407 = vpop.f32.mrb[0].mxu0
          %v2408 = vpop.f32.mrb[0].mxu0
          %v2409 = vadd.f32 0.0, %v2408
          %v2410 = vpop.f32.mrb[0].mxu0
          %2411 = vdwg.mxu0
          %v2412 = vpack.c.bf16 %v2289, %v2286
          %v2413 = vpack.c.bf16 %v2297, %v2294
          %v2414 = vpack.c.bf16 %v2305, %v2302
          %v2415 = vpack.c.bf16 %v2313, %v2310
          %v2416 = vpack.c.bf16 %v2321, %v2318
          %v2417 = vpack.c.bf16 %v2329, %v2326
          %v2418 = vpack.c.bf16 %v2337, %v2334
          %v2419 = vpack.c.bf16 %v2345, %v2342
          %v2420 = vpack.c.bf16 %v2353, %v2350
          %v2421 = vpack.c.bf16 %v2361, %v2358
          %v2422 = vpack.c.bf16 %v2369, %v2366
          %v2423 = vpack.c.bf16 %v2377, %v2374
          %v2424 = vpack.c.bf16 %v2385, %v2382
          %v2425 = vpack.c.bf16 %v2393, %v2390
          %v2426 = vpack.c.bf16 %v2401, %v2398
          %v2427 = vpack.c.bf16 %v2409, %v2406
          %s2428 = scalar_lea.vmem [#allocation3], 128
          %2429 = vst.msk [vmem:[%s2428] sm:$0xff] %vm1593, %v2412
          %2430 = vst.msk [vmem:[%s2428 + $0x8] sm:$0xff] %vm1593, %v2413
          %2431 = vst.msk [vmem:[%s2428 + $0x10] sm:$0xff] %vm1593, %v2414
          %2432 = vst.msk [vmem:[%s2428 + $0x18] sm:$0xff] %vm1593, %v2415
          %2433 = vst.msk [vmem:[%s2428 + $0x20] sm:$0xff] %vm1593, %v2416
          %2434 = vst.msk [vmem:[%s2428 + $0x28] sm:$0xff] %vm1593, %v2417
          %2435 = vst.msk [vmem:[%s2428 + $0x30] sm:$0xff] %vm1593, %v2418
          %2436 = vst.msk [vmem:[%s2428 + $0x38] sm:$0xff] %vm1593, %v2419
          %2437 = vst.msk [vmem:[%s2428 + $0x40] sm:$0xff] %vm1593, %v2420
          %2438 = vst.msk [vmem:[%s2428 + $0x48] sm:$0xff] %vm1593, %v2421
          %2439 = vst.msk [vmem:[%s2428 + $0x50] sm:$0xff] %vm1593, %v2422
          %2440 = vst.msk [vmem:[%s2428 + $0x58] sm:$0xff] %vm1593, %v2423
          %2441 = vst.msk [vmem:[%s2428 + $0x60] sm:$0xff] %vm1593, %v2424
          %2442 = vst.msk [vmem:[%s2428 + $0x68] sm:$0xff] %vm1593, %v2425
          %2443 = vst.msk [vmem:[%s2428 + $0x70] sm:$0xff] %vm1593, %v2426
          %2444 = vst.msk [vmem:[%s2428 + $0x78] sm:$0xff] %vm1593, %v2427
          %v2446 = vsel %vm1628, %v1886, 0
          %2448 = vmatprep.subr.bf16.mxu0 0
          %2449 = vmatpush1.bf16.msra.mxu0 %v2446
          %2450 = vmatprep.subr.bf16.mxu0 0
          %2451 = vmatpush1.bf16.msra.mxu0 0
          %2452 = vmatprep.subr.bf16.mxu0 0
          %2453 = vmatpush1.bf16.msra.mxu0 0
          %2454 = vmatprep.subr.bf16.mxu0 0
          %2455 = vmatpush1.bf16.msra.mxu0 0
          %2456 = vmatprep.subr.bf16.mxu0 0
          %2457 = vmatpush1.bf16.msra.mxu0 0
          %2458 = vmatprep.subr.bf16.mxu0 0
          %2459 = vmatpush1.bf16.msra.mxu0 0
          %2460 = vmatprep.subr.bf16.mxu0 0
          %2461 = vmatpush1.bf16.msra.mxu0 0
          %2462 = vmatprep.subr.bf16.mxu0 0
          %2463 = vmatpush1.bf16.msra.mxu0 0
          %2464 = vmatprep.subr.bf16.mxu0 0
          %2465 = vmatpush1.bf16.msra.mxu0 0
          %2466 = vmatprep.subr.bf16.mxu0 0
          %2467 = vmatpush1.bf16.msra.mxu0 0
          %2468 = vmatprep.subr.bf16.mxu0 0
          %2469 = vmatpush1.bf16.msra.mxu0 0
          %2470 = vmatprep.subr.bf16.mxu0 0
          %2471 = vmatpush1.bf16.msra.mxu0 0
          %2472 = vmatprep.subr.bf16.mxu0 0
          %2473 = vmatpush1.bf16.msra.mxu0 0
          %2474 = vmatprep.subr.bf16.mxu0 0
          %2475 = vmatpush1.bf16.msra.mxu0 0
          %2476 = vmatprep.subr.bf16.mxu0 0
          %2477 = vmatpush1.bf16.msra.mxu0 0
          %2478 = vmatprep.subr.bf16.mxu0 0
          %2479 = vmatpush1.bf16.msra.mxu0 0
          %2480 = vmatprep.mubr.bf16.mxu0 0
          %2481 = vmatmul.mubr.bf16.gmra.mrb[0].mxu0 %v2005
          %v2482 = vpop.f32.mrb[0].mxu0
          %v2483 = vadd.f32 0.0, %v2482
          %v2484 = vpop.f32.mrb[0].mxu0
          %v2485 = vpop.f32.mrb[0].mxu0
          %v2486 = vadd.f32 0.0, %v2485
          %v2487 = vpop.f32.mrb[0].mxu0
          %2488 = vmatprep.mubr.bf16.mxu0 0
          %2489 = vmatmul.mubr.bf16.gmra.mrb[0].mxu0 %v2008
          %v2490 = vpop.f32.mrb[0].mxu0
          %v2491 = vadd.f32 0.0, %v2490
          %v2492 = vpop.f32.mrb[0].mxu0
          %v2493 = vpop.f32.mrb[0].mxu0
          %v2494 = vadd.f32 0.0, %v2493
          %v2495 = vpop.f32.mrb[0].mxu0
          %2496 = vmatprep.mubr.bf16.mxu0 0
          %2497 = vmatmul.mubr.bf16.gmra.mrb[0].mxu0 %v2011
          %v2498 = vpop.f32.mrb[0].mxu0
          %v2499 = vadd.f32 0.0, %v2498
          %v2500 = vpop.f32.mrb[0].mxu0
          %v2501 = vpop.f32.mrb[0].mxu0
          %v2502 = vadd.f32 0.0, %v2501
          %v2503 = vpop.f32.mrb[0].mxu0
          %2504 = vmatprep.mubr.bf16.mxu0 0
          %2505 = vmatmul.mubr.bf16.gmra.mrb[0].mxu0 %v2014
          %v2506 = vpop.f32.mrb[0].mxu0
          %v2507 = vadd.f32 0.0, %v2506
          %v2508 = vpop.f32.mrb[0].mxu0
          %v2509 = vpop.f32.mrb[0].mxu0
          %v2510 = vadd.f32 0.0, %v2509
          %v2511 = vpop.f32.mrb[0].mxu0
          %2512 = vmatprep.mubr.bf16.mxu0 0
          %2513 = vmatmul.mubr.bf16.gmra.mrb[0].mxu0 %v2017
          %v2514 = vpop.f32.mrb[0].mxu0
          %v2515 = vadd.f32 0.0, %v2514
          %v2516 = vpop.f32.mrb[0].mxu0
          %v2517 = vpop.f32.mrb[0].mxu0
          %v2518 = vadd.f32 0.0, %v2517
          %v2519 = vpop.f32.mrb[0].mxu0
          %2520 = vmatprep.mubr.bf16.mxu0 0
          %2521 = vmatmul.mubr.bf16.gmra.mrb[0].mxu0 %v2020
          %v2522 = vpop.f32.mrb[0].mxu0
          %v2523 = vadd.f32 0.0, %v2522
          %v2524 = vpop.f32.mrb[0].mxu0
          %v2525 = vpop.f32.mrb[0].mxu0
          %v2526 = vadd.f32 0.0, %v2525
          %v2527 = vpop.f32.mrb[0].mxu0
          %2528 = vmatprep.mubr.bf16.mxu0 0
          %2529 = vmatmul.mubr.bf16.gmra.mrb[0].mxu0 %v2023
          %v2530 = vpop.f32.mrb[0].mxu0
          %v2531 = vadd.f32 0.0, %v2530
          %v2532 = vpop.f32.mrb[0].mxu0
          %v2533 = vpop.f32.mrb[0].mxu0
          %v2534 = vadd.f32 0.0, %v2533
          %v2535 = vpop.f32.mrb[0].mxu0
          %2536 = vmatprep.mubr.bf16.mxu0 0
          %2537 = vmatmul.mubr.bf16.gmra.mrb[0].mxu0 %v2026
          %v2538 = vpop.f32.mrb[0].mxu0
          %v2539 = vadd.f32 0.0, %v2538
          %v2540 = vpop.f32.mrb[0].mxu0
          %v2541 = vpop.f32.mrb[0].mxu0
          %v2542 = vadd.f32 0.0, %v2541
          %v2543 = vpop.f32.mrb[0].mxu0
          %2544 = vmatprep.mubr.bf16.mxu0 0
          %2545 = vmatmul.mubr.bf16.gmra.mrb[0].mxu0 %v2029
          %v2546 = vpop.f32.mrb[0].mxu0
          %v2547 = vadd.f32 0.0, %v2546
          %v2548 = vpop.f32.mrb[0].mxu0
          %v2549 = vpop.f32.mrb[0].mxu0
          %v2550 = vadd.f32 0.0, %v2549
          %v2551 = vpop.f32.mrb[0].mxu0
          %2552 = vmatprep.mubr.bf16.mxu0 0
          %2553 = vmatmul.mubr.bf16.gmra.mrb[0].mxu0 %v2032
          %v2554 = vpop.f32.mrb[0].mxu0
          %v2555 = vadd.f32 0.0, %v2554
          %v2556 = vpop.f32.mrb[0].mxu0
          %v2557 = vpop.f32.mrb[0].mxu0
          %v2558 = vadd.f32 0.0, %v2557
          %v2559 = vpop.f32.mrb[0].mxu0
          %2560 = vmatprep.mubr.bf16.mxu0 0
          %2561 = vmatmul.mubr.bf16.gmra.mrb[0].mxu0 %v2035
          %v2562 = vpop.f32.mrb[0].mxu0
          %v2563 = vadd.f32 0.0, %v2562
          %v2564 = vpop.f32.mrb[0].mxu0
          %v2565 = vpop.f32.mrb[0].mxu0
          %v2566 = vadd.f32 0.0, %v2565
          %v2567 = vpop.f32.mrb[0].mxu0
          %2568 = vmatprep.mubr.bf16.mxu0 0
          %2569 = vmatmul.mubr.bf16.gmra.mrb[0].mxu0 %v2038
          %v2570 = vpop.f32.mrb[0].mxu0
          %v2571 = vadd.f32 0.0, %v2570
          %v2572 = vpop.f32.mrb[0].mxu0
          %v2573 = vpop.f32.mrb[0].mxu0
          %v2574 = vadd.f32 0.0, %v2573
          %v2575 = vpop.f32.mrb[0].mxu0
          %2576 = vmatprep.mubr.bf16.mxu0 0
          %2577 = vmatmul.mubr.bf16.gmra.mrb[0].mxu0 %v2041
          %v2578 = vpop.f32.mrb[0].mxu0
          %v2579 = vadd.f32 0.0, %v2578
          %v2580 = vpop.f32.mrb[0].mxu0
          %v2581 = vpop.f32.mrb[0].mxu0
          %v2582 = vadd.f32 0.0, %v2581
          %v2583 = vpop.f32.mrb[0].mxu0
          %2584 = vmatprep.mubr.bf16.mxu0 0
          %2585 = vmatmul.mubr.bf16.gmra.mrb[0].mxu0 %v2044
          %v2586 = vpop.f32.mrb[0].mxu0
          %v2587 = vadd.f32 0.0, %v2586
          %v2588 = vpop.f32.mrb[0].mxu0
          %v2589 = vpop.f32.mrb[0].mxu0
          %v2590 = vadd.f32 0.0, %v2589
          %v2591 = vpop.f32.mrb[0].mxu0
          %2592 = vmatprep.mubr.bf16.mxu0 0
          %2593 = vmatmul.mubr.bf16.gmra.mrb[0].mxu0 %v2047
          %v2594 = vpop.f32.mrb[0].mxu0
          %v2595 = vadd.f32 0.0, %v2594
          %v2596 = vpop.f32.mrb[0].mxu0
          %v2597 = vpop.f32.mrb[0].mxu0
          %v2598 = vadd.f32 0.0, %v2597
          %v2599 = vpop.f32.mrb[0].mxu0
          %2600 = vmatprep.mubr.bf16.mxu0 0
          %2601 = vmatmul.mubr.bf16.gmra.mrb[0].mxu0 %v2050
          %v2602 = vpop.f32.mrb[0].mxu0
          %v2603 = vadd.f32 0.0, %v2602
          %v2604 = vpop.f32.mrb[0].mxu0
          %v2605 = vpop.f32.mrb[0].mxu0
          %v2606 = vadd.f32 0.0, %v2605
          %v2607 = vpop.f32.mrb[0].mxu0
          %2608 = vdwg.mxu0
          %v2609 = vpack.c.bf16 %v2486, %v2483
          %v2610 = vpack.c.bf16 %v2494, %v2491
          %v2611 = vpack.c.bf16 %v2502, %v2499
          %v2612 = vpack.c.bf16 %v2510, %v2507
          %v2613 = vpack.c.bf16 %v2518, %v2515
          %v2614 = vpack.c.bf16 %v2526, %v2523
          %v2615 = vpack.c.bf16 %v2534, %v2531
          %v2616 = vpack.c.bf16 %v2542, %v2539
          %v2617 = vpack.c.bf16 %v2550, %v2547
          %v2618 = vpack.c.bf16 %v2558, %v2555
          %v2619 = vpack.c.bf16 %v2566, %v2563
          %v2620 = vpack.c.bf16 %v2574, %v2571
          %v2621 = vpack.c.bf16 %v2582, %v2579
          %v2622 = vpack.c.bf16 %v2590, %v2587
          %v2623 = vpack.c.bf16 %v2598, %v2595
          %v2624 = vpack.c.bf16 %v2606, %v2603
          %s2625 = scalar_lea.vmem [#allocation3], 256
          %2626 = vst.msk [vmem:[%s2625] sm:$0xff] %vm1593, %v2609
          %2627 = vst.msk [vmem:[%s2625 + $0x8] sm:$0xff] %vm1593, %v2610
          %2628 = vst.msk [vmem:[%s2625 + $0x10] sm:$0xff] %vm1593, %v2611
          %2629 = vst.msk [vmem:[%s2625 + $0x18] sm:$0xff] %vm1593, %v2612
          %2630 = vst.msk [vmem:[%s2625 + $0x20] sm:$0xff] %vm1593, %v2613
          %2631 = vst.msk [vmem:[%s2625 + $0x28] sm:$0xff] %vm1593, %v2614
          %2632 = vst.msk [vmem:[%s2625 + $0x30] sm:$0xff] %vm1593, %v2615
          %2633 = vst.msk [vmem:[%s2625 + $0x38] sm:$0xff] %vm1593, %v2616
          %2634 = vst.msk [vmem:[%s2625 + $0x40] sm:$0xff] %vm1593, %v2617
          %2635 = vst.msk [vmem:[%s2625 + $0x48] sm:$0xff] %vm1593, %v2618
          %2636 = vst.msk [vmem:[%s2625 + $0x50] sm:$0xff] %vm1593, %v2619
          %2637 = vst.msk [vmem:[%s2625 + $0x58] sm:$0xff] %vm1593, %v2620
          %2638 = vst.msk [vmem:[%s2625 + $0x60] sm:$0xff] %vm1593, %v2621
          %2639 = vst.msk [vmem:[%s2625 + $0x68] sm:$0xff] %vm1593, %v2622
          %2640 = vst.msk [vmem:[%s2625 + $0x70] sm:$0xff] %vm1593, %v2623
          %2641 = vst.msk [vmem:[%s2625 + $0x78] sm:$0xff] %vm1593, %v2624
          %v2643 = vsel %vm1628, %v1887, 0
          %2645 = vmatprep.subr.bf16.mxu0 0
          %2646 = vmatpush1.bf16.msra.mxu0 %v2643
          %2647 = vmatprep.subr.bf16.mxu0 0
          %2648 = vmatpush1.bf16.msra.mxu0 0
          %2649 = vmatprep.subr.bf16.mxu0 0
          %2650 = vmatpush1.bf16.msra.mxu0 0
          %2651 = vmatprep.subr.bf16.mxu0 0
          %2652 = vmatpush1.bf16.msra.mxu0 0
          %2653 = vmatprep.subr.bf16.mxu0 0
          %2654 = vmatpush1.bf16.msra.mxu0 0
          %2655 = vmatprep.subr.bf16.mxu0 0
          %2656 = vmatpush1.bf16.msra.mxu0 0
          %2657 = vmatprep.subr.bf16.mxu0 0
          %2658 = vmatpush1.bf16.msra.mxu0 0
          %2659 = vmatprep.subr.bf16.mxu0 0
          %2660 = vmatpush1.bf16.msra.mxu0 0
          %2661 = vmatprep.subr.bf16.mxu0 0
          %2662 = vmatpush1.bf16.msra.mxu0 0
          %2663 = vmatprep.subr.bf16.mxu0 0
          %2664 = vmatpush1.bf16.msra.mxu0 0
          %2665 = vmatprep.subr.bf16.mxu0 0
          %2666 = vmatpush1.bf16.msra.mxu0 0
          %2667 = vmatprep.subr.bf16.mxu0 0
          %2668 = vmatpush1.bf16.msra.mxu0 0
          %2669 = vmatprep.subr.bf16.mxu0 0
          %2670 = vmatpush1.bf16.msra.mxu0 0
          %2671 = vmatprep.subr.bf16.mxu0 0
          %2672 = vmatpush1.bf16.msra.mxu0 0
          %2673 = vmatprep.subr.bf16.mxu0 0
          %2674 = vmatpush1.bf16.msra.mxu0 0
          %2675 = vmatprep.subr.bf16.mxu0 0
          %2676 = vmatpush1.bf16.msra.mxu0 0
          %2677 = vmatprep.mubr.bf16.mxu0 0
          %2678 = vmatmul.mubr.bf16.gmra.mrb[0].mxu0 %v2005
          %v2679 = vpop.f32.mrb[0].mxu0
          %v2680 = vadd.f32 0.0, %v2679
          %v2681 = vpop.f32.mrb[0].mxu0
          %v2682 = vpop.f32.mrb[0].mxu0
          %v2683 = vadd.f32 0.0, %v2682
          %v2684 = vpop.f32.mrb[0].mxu0
          %2685 = vmatprep.mubr.bf16.mxu0 0
          %2686 = vmatmul.mubr.bf16.gmra.mrb[0].mxu0 %v2008
          %v2687 = vpop.f32.mrb[0].mxu0
          %v2688 = vadd.f32 0.0, %v2687
          %v2689 = vpop.f32.mrb[0].mxu0
          %v2690 = vpop.f32.mrb[0].mxu0
          %v2691 = vadd.f32 0.0, %v2690
          %v2692 = vpop.f32.mrb[0].mxu0
          %2693 = vmatprep.mubr.bf16.mxu0 0
          %2694 = vmatmul.mubr.bf16.gmra.mrb[0].mxu0 %v2011
          %v2695 = vpop.f32.mrb[0].mxu0
          %v2696 = vadd.f32 0.0, %v2695
          %v2697 = vpop.f32.mrb[0].mxu0
          %v2698 = vpop.f32.mrb[0].mxu0
          %v2699 = vadd.f32 0.0, %v2698
          %v2700 = vpop.f32.mrb[0].mxu0
          %2701 = vmatprep.mubr.bf16.mxu0 0
          %2702 = vmatmul.mubr.bf16.gmra.mrb[0].mxu0 %v2014
          %v2703 = vpop.f32.mrb[0].mxu0
          %v2704 = vadd.f32 0.0, %v2703
          %v2705 = vpop.f32.mrb[0].mxu0
          %v2706 = vpop.f32.mrb[0].mxu0
          %v2707 = vadd.f32 0.0, %v2706
          %v2708 = vpop.f32.mrb[0].mxu0
          %2709 = vmatprep.mubr.bf16.mxu0 0
          %2710 = vmatmul.mubr.bf16.gmra.mrb[0].mxu0 %v2017
          %v2711 = vpop.f32.mrb[0].mxu0
          %v2712 = vadd.f32 0.0, %v2711
          %v2713 = vpop.f32.mrb[0].mxu0
          %v2714 = vpop.f32.mrb[0].mxu0
          %v2715 = vadd.f32 0.0, %v2714
          %v2716 = vpop.f32.mrb[0].mxu0
          %2717 = vmatprep.mubr.bf16.mxu0 0
          %2718 = vmatmul.mubr.bf16.gmra.mrb[0].mxu0 %v2020
          %v2719 = vpop.f32.mrb[0].mxu0
          %v2720 = vadd.f32 0.0, %v2719
          %v2721 = vpop.f32.mrb[0].mxu0
          %v2722 = vpop.f32.mrb[0].mxu0
          %v2723 = vadd.f32 0.0, %v2722
          %v2724 = vpop.f32.mrb[0].mxu0
          %2725 = vmatprep.mubr.bf16.mxu0 0
          %2726 = vmatmul.mubr.bf16.gmra.mrb[0].mxu0 %v2023
          %v2727 = vpop.f32.mrb[0].mxu0
          %v2728 = vadd.f32 0.0, %v2727
          %v2729 = vpop.f32.mrb[0].mxu0
          %v2730 = vpop.f32.mrb[0].mxu0
          %v2731 = vadd.f32 0.0, %v2730
          %v2732 = vpop.f32.mrb[0].mxu0
          %2733 = vmatprep.mubr.bf16.mxu0 0
          %2734 = vmatmul.mubr.bf16.gmra.mrb[0].mxu0 %v2026
          %v2735 = vpop.f32.mrb[0].mxu0
          %v2736 = vadd.f32 0.0, %v2735
          %v2737 = vpop.f32.mrb[0].mxu0
          %v2738 = vpop.f32.mrb[0].mxu0
          %v2739 = vadd.f32 0.0, %v2738
          %v2740 = vpop.f32.mrb[0].mxu0
          %2741 = vmatprep.mubr.bf16.mxu0 0
          %2742 = vmatmul.mubr.bf16.gmra.mrb[0].mxu0 %v2029
          %v2743 = vpop.f32.mrb[0].mxu0
          %v2744 = vadd.f32 0.0, %v2743
          %v2745 = vpop.f32.mrb[0].mxu0
          %v2746 = vpop.f32.mrb[0].mxu0
          %v2747 = vadd.f32 0.0, %v2746
          %v2748 = vpop.f32.mrb[0].mxu0
          %2749 = vmatprep.mubr.bf16.mxu0 0
          %2750 = vmatmul.mubr.bf16.gmra.mrb[0].mxu0 %v2032
          %v2751 = vpop.f32.mrb[0].mxu0
          %v2752 = vadd.f32 0.0, %v2751
          %v2753 = vpop.f32.mrb[0].mxu0
          %v2754 = vpop.f32.mrb[0].mxu0
          %v2755 = vadd.f32 0.0, %v2754
          %v2756 = vpop.f32.mrb[0].mxu0
          %2757 = vmatprep.mubr.bf16.mxu0 0
          %2758 = vmatmul.mubr.bf16.gmra.mrb[0].mxu0 %v2035
          %v2759 = vpop.f32.mrb[0].mxu0
          %v2760 = vadd.f32 0.0, %v2759
          %v2761 = vpop.f32.mrb[0].mxu0
          %v2762 = vpop.f32.mrb[0].mxu0
          %v2763 = vadd.f32 0.0, %v2762
          %v2764 = vpop.f32.mrb[0].mxu0
          %2765 = vmatprep.mubr.bf16.mxu0 0
          %2766 = vmatmul.mubr.bf16.gmra.mrb[0].mxu0 %v2038
          %v2767 = vpop.f32.mrb[0].mxu0
          %v2768 = vadd.f32 0.0, %v2767
          %v2769 = vpop.f32.mrb[0].mxu0
          %v2770 = vpop.f32.mrb[0].mxu0
          %v2771 = vadd.f32 0.0, %v2770
          %v2772 = vpop.f32.mrb[0].mxu0
          %2773 = vmatprep.mubr.bf16.mxu0 0
          %2774 = vmatmul.mubr.bf16.gmra.mrb[0].mxu0 %v2041
          %v2775 = vpop.f32.mrb[0].mxu0
          %v2776 = vadd.f32 0.0, %v2775
          %v2777 = vpop.f32.mrb[0].mxu0
          %v2778 = vpop.f32.mrb[0].mxu0
          %v2779 = vadd.f32 0.0, %v2778
          %v2780 = vpop.f32.mrb[0].mxu0
          %2781 = vmatprep.mubr.bf16.mxu0 0
          %2782 = vmatmul.mubr.bf16.gmra.mrb[0].mxu0 %v2044
          %v2783 = vpop.f32.mrb[0].mxu0
          %v2784 = vadd.f32 0.0, %v2783
          %v2785 = vpop.f32.mrb[0].mxu0
          %v2786 = vpop.f32.mrb[0].mxu0
          %v2787 = vadd.f32 0.0, %v2786
          %v2788 = vpop.f32.mrb[0].mxu0
          %2789 = vmatprep.mubr.bf16.mxu0 0
          %2790 = vmatmul.mubr.bf16.gmra.mrb[0].mxu0 %v2047
          %v2791 = vpop.f32.mrb[0].mxu0
          %v2792 = vadd.f32 0.0, %v2791
          %v2793 = vpop.f32.mrb[0].mxu0
          %v2794 = vpop.f32.mrb[0].mxu0
          %v2795 = vadd.f32 0.0, %v2794
          %v2796 = vpop.f32.mrb[0].mxu0
          %2797 = vmatprep.mubr.bf16.mxu0 0
          %2798 = vmatmul.mubr.bf16.gmra.mrb[0].mxu0 %v2050
          %v2799 = vpop.f32.mrb[0].mxu0
          %v2800 = vadd.f32 0.0, %v2799
          %v2801 = vpop.f32.mrb[0].mxu0
          %v2802 = vpop.f32.mrb[0].mxu0
          %v2803 = vadd.f32 0.0, %v2802
          %v2804 = vpop.f32.mrb[0].mxu0
          %2805 = vdwg.mxu0
          %v2806 = vpack.c.bf16 %v2683, %v2680
          %v2807 = vpack.c.bf16 %v2691, %v2688
          %v2808 = vpack.c.bf16 %v2699, %v2696
          %v2809 = vpack.c.bf16 %v2707, %v2704
          %v2810 = vpack.c.bf16 %v2715, %v2712
          %v2811 = vpack.c.bf16 %v2723, %v2720
          %v2812 = vpack.c.bf16 %v2731, %v2728
          %v2813 = vpack.c.bf16 %v2739, %v2736
          %v2814 = vpack.c.bf16 %v2747, %v2744
          %v2815 = vpack.c.bf16 %v2755, %v2752
          %v2816 = vpack.c.bf16 %v2763, %v2760
          %v2817 = vpack.c.bf16 %v2771, %v2768
          %v2818 = vpack.c.bf16 %v2779, %v2776
          %v2819 = vpack.c.bf16 %v2787, %v2784
          %v2820 = vpack.c.bf16 %v2795, %v2792
          %v2821 = vpack.c.bf16 %v2803, %v2800
          %s2822 = scalar_lea.vmem [#allocation3], 384
          %2823 = vst.msk [vmem:[%s2822] sm:$0xff] %vm1593, %v2806
          %2824 = vst.msk [vmem:[%s2822 + $0x8] sm:$0xff] %vm1593, %v2807
          %2825 = vst.msk [vmem:[%s2822 + $0x10] sm:$0xff] %vm1593, %v2808
          %2826 = vst.msk [vmem:[%s2822 + $0x18] sm:$0xff] %vm1593, %v2809
          %2827 = vst.msk [vmem:[%s2822 + $0x20] sm:$0xff] %vm1593, %v2810
          %2828 = vst.msk [vmem:[%s2822 + $0x28] sm:$0xff] %vm1593, %v2811
          %2829 = vst.msk [vmem:[%s2822 + $0x30] sm:$0xff] %vm1593, %v2812
          %2830 = vst.msk [vmem:[%s2822 + $0x38] sm:$0xff] %vm1593, %v2813
          %2831 = vst.msk [vmem:[%s2822 + $0x40] sm:$0xff] %vm1593, %v2814
          %2832 = vst.msk [vmem:[%s2822 + $0x48] sm:$0xff] %vm1593, %v2815
          %2833 = vst.msk [vmem:[%s2822 + $0x50] sm:$0xff] %vm1593, %v2816
          %2834 = vst.msk [vmem:[%s2822 + $0x58] sm:$0xff] %vm1593, %v2817
          %2835 = vst.msk [vmem:[%s2822 + $0x60] sm:$0xff] %vm1593, %v2818
          %2836 = vst.msk [vmem:[%s2822 + $0x68] sm:$0xff] %vm1593, %v2819
          %2837 = vst.msk [vmem:[%s2822 + $0x70] sm:$0xff] %vm1593, %v2820
          %2838 = vst.msk [vmem:[%s2822 + $0x78] sm:$0xff] %vm1593, %v2821
          %v2840 = vsel %vm1628, %v1888, 0
          %2842 = vmatprep.subr.bf16.mxu0 0
          %2843 = vmatpush1.bf16.msra.mxu0 %v2840
          %2844 = vmatprep.subr.bf16.mxu0 0
          %2845 = vmatpush1.bf16.msra.mxu0 0
          %2846 = vmatprep.subr.bf16.mxu0 0
          %2847 = vmatpush1.bf16.msra.mxu0 0
          %2848 = vmatprep.subr.bf16.mxu0 0
          %2849 = vmatpush1.bf16.msra.mxu0 0
          %2850 = vmatprep.subr.bf16.mxu0 0
          %2851 = vmatpush1.bf16.msra.mxu0 0
          %2852 = vmatprep.subr.bf16.mxu0 0
          %2853 = vmatpush1.bf16.msra.mxu0 0
          %2854 = vmatprep.subr.bf16.mxu0 0
          %2855 = vmatpush1.bf16.msra.mxu0 0
          %2856 = vmatprep.subr.bf16.mxu0 0
          %2857 = vmatpush1.bf16.msra.mxu0 0
          %2858 = vmatprep.subr.bf16.mxu0 0
          %2859 = vmatpush1.bf16.msra.mxu0 0
          %2860 = vmatprep.subr.bf16.mxu0 0
          %2861 = vmatpush1.bf16.msra.mxu0 0
          %2862 = vmatprep.subr.bf16.mxu0 0
          %2863 = vmatpush1.bf16.msra.mxu0 0
          %2864 = vmatprep.subr.bf16.mxu0 0
          %2865 = vmatpush1.bf16.msra.mxu0 0
          %2866 = vmatprep.subr.bf16.mxu0 0
          %2867 = vmatpush1.bf16.msra.mxu0 0
          %2868 = vmatprep.subr.bf16.mxu0 0
          %2869 = vmatpush1.bf16.msra.mxu0 0
          %2870 = vmatprep.subr.bf16.mxu0 0
          %2871 = vmatpush1.bf16.msra.mxu0 0
          %2872 = vmatprep.subr.bf16.mxu0 0
          %2873 = vmatpush1.bf16.msra.mxu0 0
          %2874 = vmatprep.mubr.bf16.mxu0 0
          %2875 = vmatmul.mubr.bf16.gmra.mrb[0].mxu0 %v2005
          %v2876 = vpop.f32.mrb[0].mxu0
          %v2877 = vadd.f32 0.0, %v2876
          %v2878 = vpop.f32.mrb[0].mxu0
          %v2879 = vpop.f32.mrb[0].mxu0
          %v2880 = vadd.f32 0.0, %v2879
          %v2881 = vpop.f32.mrb[0].mxu0
          %2882 = vmatprep.mubr.bf16.mxu0 0
          %2883 = vmatmul.mubr.bf16.gmra.mrb[0].mxu0 %v2008
          %v2884 = vpop.f32.mrb[0].mxu0
          %v2885 = vadd.f32 0.0, %v2884
          %v2886 = vpop.f32.mrb[0].mxu0
          %v2887 = vpop.f32.mrb[0].mxu0
          %v2888 = vadd.f32 0.0, %v2887
          %v2889 = vpop.f32.mrb[0].mxu0
          %2890 = vmatprep.mubr.bf16.mxu0 0
          %2891 = vmatmul.mubr.bf16.gmra.mrb[0].mxu0 %v2011
          %v2892 = vpop.f32.mrb[0].mxu0
          %v2893 = vadd.f32 0.0, %v2892
          %v2894 = vpop.f32.mrb[0].mxu0
          %v2895 = vpop.f32.mrb[0].mxu0
          %v2896 = vadd.f32 0.0, %v2895
          %v2897 = vpop.f32.mrb[0].mxu0
          %2898 = vmatprep.mubr.bf16.mxu0 0
          %2899 = vmatmul.mubr.bf16.gmra.mrb[0].mxu0 %v2014
          %v2900 = vpop.f32.mrb[0].mxu0
          %v2901 = vadd.f32 0.0, %v2900
          %v2902 = vpop.f32.mrb[0].mxu0
          %v2903 = vpop.f32.mrb[0].mxu0
          %v2904 = vadd.f32 0.0, %v2903
          %v2905 = vpop.f32.mrb[0].mxu0
          %2906 = vmatprep.mubr.bf16.mxu0 0
          %2907 = vmatmul.mubr.bf16.gmra.mrb[0].mxu0 %v2017
          %v2908 = vpop.f32.mrb[0].mxu0
          %v2909 = vadd.f32 0.0, %v2908
          %v2910 = vpop.f32.mrb[0].mxu0
          %v2911 = vpop.f32.mrb[0].mxu0
          %v2912 = vadd.f32 0.0, %v2911
          %v2913 = vpop.f32.mrb[0].mxu0
          %2914 = vmatprep.mubr.bf16.mxu0 0
          %2915 = vmatmul.mubr.bf16.gmra.mrb[0].mxu0 %v2020
          %v2916 = vpop.f32.mrb[0].mxu0
          %v2917 = vadd.f32 0.0, %v2916
          %v2918 = vpop.f32.mrb[0].mxu0
          %v2919 = vpop.f32.mrb[0].mxu0
          %v2920 = vadd.f32 0.0, %v2919
          %v2921 = vpop.f32.mrb[0].mxu0
          %2922 = vmatprep.mubr.bf16.mxu0 0
          %2923 = vmatmul.mubr.bf16.gmra.mrb[0].mxu0 %v2023
          %v2924 = vpop.f32.mrb[0].mxu0
          %v2925 = vadd.f32 0.0, %v2924
          %v2926 = vpop.f32.mrb[0].mxu0
          %v2927 = vpop.f32.mrb[0].mxu0
          %v2928 = vadd.f32 0.0, %v2927
          %v2929 = vpop.f32.mrb[0].mxu0
          %2930 = vmatprep.mubr.bf16.mxu0 0
          %2931 = vmatmul.mubr.bf16.gmra.mrb[0].mxu0 %v2026
          %v2932 = vpop.f32.mrb[0].mxu0
          %v2933 = vadd.f32 0.0, %v2932
          %v2934 = vpop.f32.mrb[0].mxu0
          %v2935 = vpop.f32.mrb[0].mxu0
          %v2936 = vadd.f32 0.0, %v2935
          %v2937 = vpop.f32.mrb[0].mxu0
          %2938 = vmatprep.mubr.bf16.mxu0 0
          %2939 = vmatmul.mubr.bf16.gmra.mrb[0].mxu0 %v2029
          %v2940 = vpop.f32.mrb[0].mxu0
          %v2941 = vadd.f32 0.0, %v2940
          %v2942 = vpop.f32.mrb[0].mxu0
          %v2943 = vpop.f32.mrb[0].mxu0
          %v2944 = vadd.f32 0.0, %v2943
          %v2945 = vpop.f32.mrb[0].mxu0
          %2946 = vmatprep.mubr.bf16.mxu0 0
          %2947 = vmatmul.mubr.bf16.gmra.mrb[0].mxu0 %v2032
          %v2948 = vpop.f32.mrb[0].mxu0
          %v2949 = vadd.f32 0.0, %v2948
          %v2950 = vpop.f32.mrb[0].mxu0
          %v2951 = vpop.f32.mrb[0].mxu0
          %v2952 = vadd.f32 0.0, %v2951
          %v2953 = vpop.f32.mrb[0].mxu0
          %2954 = vmatprep.mubr.bf16.mxu0 0
          %2955 = vmatmul.mubr.bf16.gmra.mrb[0].mxu0 %v2035
          %v2956 = vpop.f32.mrb[0].mxu0
          %v2957 = vadd.f32 0.0, %v2956
          %v2958 = vpop.f32.mrb[0].mxu0
          %v2959 = vpop.f32.mrb[0].mxu0
          %v2960 = vadd.f32 0.0, %v2959
          %v2961 = vpop.f32.mrb[0].mxu0
          %2962 = vmatprep.mubr.bf16.mxu0 0
          %2963 = vmatmul.mubr.bf16.gmra.mrb[0].mxu0 %v2038
          %v2964 = vpop.f32.mrb[0].mxu0
          %v2965 = vadd.f32 0.0, %v2964
          %v2966 = vpop.f32.mrb[0].mxu0
          %v2967 = vpop.f32.mrb[0].mxu0
          %v2968 = vadd.f32 0.0, %v2967
          %v2969 = vpop.f32.mrb[0].mxu0
          %2970 = vmatprep.mubr.bf16.mxu0 0
          %2971 = vmatmul.mubr.bf16.gmra.mrb[0].mxu0 %v2041
          %v2972 = vpop.f32.mrb[0].mxu0
          %v2973 = vadd.f32 0.0, %v2972
          %v2974 = vpop.f32.mrb[0].mxu0
          %v2975 = vpop.f32.mrb[0].mxu0
          %v2976 = vadd.f32 0.0, %v2975
          %v2977 = vpop.f32.mrb[0].mxu0
          %2978 = vmatprep.mubr.bf16.mxu0 0
          %2979 = vmatmul.mubr.bf16.gmra.mrb[0].mxu0 %v2044
          %v2980 = vpop.f32.mrb[0].mxu0
          %v2981 = vadd.f32 0.0, %v2980
          %v2982 = vpop.f32.mrb[0].mxu0
          %v2983 = vpop.f32.mrb[0].mxu0
          %v2984 = vadd.f32 0.0, %v2983
          %v2985 = vpop.f32.mrb[0].mxu0
          %2986 = vmatprep.mubr.bf16.mxu0 0
          %2987 = vmatmul.mubr.bf16.gmra.mrb[0].mxu0 %v2047
          %v2988 = vpop.f32.mrb[0].mxu0
          %v2989 = vadd.f32 0.0, %v2988
          %v2990 = vpop.f32.mrb[0].mxu0
          %v2991 = vpop.f32.mrb[0].mxu0
          %v2992 = vadd.f32 0.0, %v2991
          %v2993 = vpop.f32.mrb[0].mxu0
          %2994 = vmatprep.mubr.bf16.mxu0 0
          %2995 = vmatmul.mubr.bf16.gmra.mrb[0].mxu0 %v2050
          %v2996 = vpop.f32.mrb[0].mxu0
          %v2997 = vadd.f32 0.0, %v2996
          %v2998 = vpop.f32.mrb[0].mxu0
          %v2999 = vpop.f32.mrb[0].mxu0
          %v3000 = vadd.f32 0.0, %v2999
          %v3001 = vpop.f32.mrb[0].mxu0
          %3002 = vdwg.mxu0
          %v3003 = vpack.c.bf16 %v2880, %v2877
          %v3004 = vpack.c.bf16 %v2888, %v2885
          %v3005 = vpack.c.bf16 %v2896, %v2893
          %v3006 = vpack.c.bf16 %v2904, %v2901
          %v3007 = vpack.c.bf16 %v2912, %v2909
          %v3008 = vpack.c.bf16 %v2920, %v2917
          %v3009 = vpack.c.bf16 %v2928, %v2925
          %v3010 = vpack.c.bf16 %v2936, %v2933
          %v3011 = vpack.c.bf16 %v2944, %v2941
          %v3012 = vpack.c.bf16 %v2952, %v2949
          %v3013 = vpack.c.bf16 %v2960, %v2957
          %v3014 = vpack.c.bf16 %v2968, %v2965
          %v3015 = vpack.c.bf16 %v2976, %v2973
          %v3016 = vpack.c.bf16 %v2984, %v2981
          %v3017 = vpack.c.bf16 %v2992, %v2989
          %v3018 = vpack.c.bf16 %v3000, %v2997
          %s3019 = scalar_lea.vmem [#allocation3], 512
          %3020 = vst.msk [vmem:[%s3019] sm:$0xff] %vm1593, %v3003
          %3021 = vst.msk [vmem:[%s3019 + $0x8] sm:$0xff] %vm1593, %v3004
          %3022 = vst.msk [vmem:[%s3019 + $0x10] sm:$0xff] %vm1593, %v3005
          %3023 = vst.msk [vmem:[%s3019 + $0x18] sm:$0xff] %vm1593, %v3006
          %3024 = vst.msk [vmem:[%s3019 + $0x20] sm:$0xff] %vm1593, %v3007
          %3025 = vst.msk [vmem:[%s3019 + $0x28] sm:$0xff] %vm1593, %v3008
          %3026 = vst.msk [vmem:[%s3019 + $0x30] sm:$0xff] %vm1593, %v3009
          %3027 = vst.msk [vmem:[%s3019 + $0x38] sm:$0xff] %vm1593, %v3010
          %3028 = vst.msk [vmem:[%s3019 + $0x40] sm:$0xff] %vm1593, %v3011
          %3029 = vst.msk [vmem:[%s3019 + $0x48] sm:$0xff] %vm1593, %v3012
          %3030 = vst.msk [vmem:[%s3019 + $0x50] sm:$0xff] %vm1593, %v3013
          %3031 = vst.msk [vmem:[%s3019 + $0x58] sm:$0xff] %vm1593, %v3014
          %3032 = vst.msk [vmem:[%s3019 + $0x60] sm:$0xff] %vm1593, %v3015
          %3033 = vst.msk [vmem:[%s3019 + $0x68] sm:$0xff] %vm1593, %v3016
          %3034 = vst.msk [vmem:[%s3019 + $0x70] sm:$0xff] %vm1593, %v3017
          %3035 = vst.msk [vmem:[%s3019 + $0x78] sm:$0xff] %vm1593, %v3018
          %v3037 = vsel %vm1628, %v1889, 0
          %3039 = vmatprep.subr.bf16.mxu0 0
          %3040 = vmatpush1.bf16.msra.mxu0 %v3037
          %3041 = vmatprep.subr.bf16.mxu0 0
          %3042 = vmatpush1.bf16.msra.mxu0 0
          %3043 = vmatprep.subr.bf16.mxu0 0
          %3044 = vmatpush1.bf16.msra.mxu0 0
          %3045 = vmatprep.subr.bf16.mxu0 0
          %3046 = vmatpush1.bf16.msra.mxu0 0
          %3047 = vmatprep.subr.bf16.mxu0 0
          %3048 = vmatpush1.bf16.msra.mxu0 0
          %3049 = vmatprep.subr.bf16.mxu0 0
          %3050 = vmatpush1.bf16.msra.mxu0 0
          %3051 = vmatprep.subr.bf16.mxu0 0
          %3052 = vmatpush1.bf16.msra.mxu0 0
          %3053 = vmatprep.subr.bf16.mxu0 0
          %3054 = vmatpush1.bf16.msra.mxu0 0
          %3055 = vmatprep.subr.bf16.mxu0 0
          %3056 = vmatpush1.bf16.msra.mxu0 0
          %3057 = vmatprep.subr.bf16.mxu0 0
          %3058 = vmatpush1.bf16.msra.mxu0 0
          %3059 = vmatprep.subr.bf16.mxu0 0
          %3060 = vmatpush1.bf16.msra.mxu0 0
          %3061 = vmatprep.subr.bf16.mxu0 0
          %3062 = vmatpush1.bf16.msra.mxu0 0
          %3063 = vmatprep.subr.bf16.mxu0 0
          %3064 = vmatpush1.bf16.msra.mxu0 0
          %3065 = vmatprep.subr.bf16.mxu0 0
          %3066 = vmatpush1.bf16.msra.mxu0 0
          %3067 = vmatprep.subr.bf16.mxu0 0
          %3068 = vmatpush1.bf16.msra.mxu0 0
          %3069 = vmatprep.subr.bf16.mxu0 0
          %3070 = vmatpush1.bf16.msra.mxu0 0
          %3071 = vmatprep.mubr.bf16.mxu0 0
          %3072 = vmatmul.mubr.bf16.gmra.mrb[0].mxu0 %v2005
          %v3073 = vpop.f32.mrb[0].mxu0
          %v3074 = vadd.f32 0.0, %v3073
          %v3075 = vpop.f32.mrb[0].mxu0
          %v3076 = vpop.f32.mrb[0].mxu0
          %v3077 = vadd.f32 0.0, %v3076
          %v3078 = vpop.f32.mrb[0].mxu0
          %3079 = vmatprep.mubr.bf16.mxu0 0
          %3080 = vmatmul.mubr.bf16.gmra.mrb[0].mxu0 %v2008
          %v3081 = vpop.f32.mrb[0].mxu0
          %v3082 = vadd.f32 0.0, %v3081
          %v3083 = vpop.f32.mrb[0].mxu0
          %v3084 = vpop.f32.mrb[0].mxu0
          %v3085 = vadd.f32 0.0, %v3084
          %v3086 = vpop.f32.mrb[0].mxu0
          %3087 = vmatprep.mubr.bf16.mxu0 0
          %3088 = vmatmul.mubr.bf16.gmra.mrb[0].mxu0 %v2011
          %v3089 = vpop.f32.mrb[0].mxu0
          %v3090 = vadd.f32 0.0, %v3089
          %v3091 = vpop.f32.mrb[0].mxu0
          %v3092 = vpop.f32.mrb[0].mxu0
          %v3093 = vadd.f32 0.0, %v3092
          %v3094 = vpop.f32.mrb[0].mxu0
          %3095 = vmatprep.mubr.bf16.mxu0 0
          %3096 = vmatmul.mubr.bf16.gmra.mrb[0].mxu0 %v2014
          %v3097 = vpop.f32.mrb[0].mxu0
          %v3098 = vadd.f32 0.0, %v3097
          %v3099 = vpop.f32.mrb[0].mxu0
          %v3100 = vpop.f32.mrb[0].mxu0
          %v3101 = vadd.f32 0.0, %v3100
          %v3102 = vpop.f32.mrb[0].mxu0
          %3103 = vmatprep.mubr.bf16.mxu0 0
          %3104 = vmatmul.mubr.bf16.gmra.mrb[0].mxu0 %v2017
          %v3105 = vpop.f32.mrb[0].mxu0
          %v3106 = vadd.f32 0.0, %v3105
          %v3107 = vpop.f32.mrb[0].mxu0
          %v3108 = vpop.f32.mrb[0].mxu0
          %v3109 = vadd.f32 0.0, %v3108
          %v3110 = vpop.f32.mrb[0].mxu0
          %3111 = vmatprep.mubr.bf16.mxu0 0
          %3112 = vmatmul.mubr.bf16.gmra.mrb[0].mxu0 %v2020
          %v3113 = vpop.f32.mrb[0].mxu0
          %v3114 = vadd.f32 0.0, %v3113
          %v3115 = vpop.f32.mrb[0].mxu0
          %v3116 = vpop.f32.mrb[0].mxu0
          %v3117 = vadd.f32 0.0, %v3116
          %v3118 = vpop.f32.mrb[0].mxu0
          %3119 = vmatprep.mubr.bf16.mxu0 0
          %3120 = vmatmul.mubr.bf16.gmra.mrb[0].mxu0 %v2023
          %v3121 = vpop.f32.mrb[0].mxu0
          %v3122 = vadd.f32 0.0, %v3121
          %v3123 = vpop.f32.mrb[0].mxu0
          %v3124 = vpop.f32.mrb[0].mxu0
          %v3125 = vadd.f32 0.0, %v3124
          %v3126 = vpop.f32.mrb[0].mxu0
          %3127 = vmatprep.mubr.bf16.mxu0 0
          %3128 = vmatmul.mubr.bf16.gmra.mrb[0].mxu0 %v2026
          %v3129 = vpop.f32.mrb[0].mxu0
          %v3130 = vadd.f32 0.0, %v3129
          %v3131 = vpop.f32.mrb[0].mxu0
          %v3132 = vpop.f32.mrb[0].mxu0
          %v3133 = vadd.f32 0.0, %v3132
          %v3134 = vpop.f32.mrb[0].mxu0
          %3135 = vmatprep.mubr.bf16.mxu0 0
          %3136 = vmatmul.mubr.bf16.gmra.mrb[0].mxu0 %v2029
          %v3137 = vpop.f32.mrb[0].mxu0
          %v3138 = vadd.f32 0.0, %v3137
          %v3139 = vpop.f32.mrb[0].mxu0
          %v3140 = vpop.f32.mrb[0].mxu0
          %v3141 = vadd.f32 0.0, %v3140
          %v3142 = vpop.f32.mrb[0].mxu0
          %3143 = vmatprep.mubr.bf16.mxu0 0
          %3144 = vmatmul.mubr.bf16.gmra.mrb[0].mxu0 %v2032
          %v3145 = vpop.f32.mrb[0].mxu0
          %v3146 = vadd.f32 0.0, %v3145
          %v3147 = vpop.f32.mrb[0].mxu0
          %v3148 = vpop.f32.mrb[0].mxu0
          %v3149 = vadd.f32 0.0, %v3148
          %v3150 = vpop.f32.mrb[0].mxu0
          %3151 = vmatprep.mubr.bf16.mxu0 0
          %3152 = vmatmul.mubr.bf16.gmra.mrb[0].mxu0 %v2035
          %v3153 = vpop.f32.mrb[0].mxu0
          %v3154 = vadd.f32 0.0, %v3153
          %v3155 = vpop.f32.mrb[0].mxu0
          %v3156 = vpop.f32.mrb[0].mxu0
          %v3157 = vadd.f32 0.0, %v3156
          %v3158 = vpop.f32.mrb[0].mxu0
          %3159 = vmatprep.mubr.bf16.mxu0 0
          %3160 = vmatmul.mubr.bf16.gmra.mrb[0].mxu0 %v2038
          %v3161 = vpop.f32.mrb[0].mxu0
          %v3162 = vadd.f32 0.0, %v3161
          %v3163 = vpop.f32.mrb[0].mxu0
          %v3164 = vpop.f32.mrb[0].mxu0
          %v3165 = vadd.f32 0.0, %v3164
          %v3166 = vpop.f32.mrb[0].mxu0
          %3167 = vmatprep.mubr.bf16.mxu0 0
          %3168 = vmatmul.mubr.bf16.gmra.mrb[0].mxu0 %v2041
          %v3169 = vpop.f32.mrb[0].mxu0
          %v3170 = vadd.f32 0.0, %v3169
          %v3171 = vpop.f32.mrb[0].mxu0
          %v3172 = vpop.f32.mrb[0].mxu0
          %v3173 = vadd.f32 0.0, %v3172
          %v3174 = vpop.f32.mrb[0].mxu0
          %3175 = vmatprep.mubr.bf16.mxu0 0
          %3176 = vmatmul.mubr.bf16.gmra.mrb[0].mxu0 %v2044
          %v3177 = vpop.f32.mrb[0].mxu0
          %v3178 = vadd.f32 0.0, %v3177
          %v3179 = vpop.f32.mrb[0].mxu0
          %v3180 = vpop.f32.mrb[0].mxu0
          %v3181 = vadd.f32 0.0, %v3180
          %v3182 = vpop.f32.mrb[0].mxu0
          %3183 = vmatprep.mubr.bf16.mxu0 0
          %3184 = vmatmul.mubr.bf16.gmra.mrb[0].mxu0 %v2047
          %v3185 = vpop.f32.mrb[0].mxu0
          %v3186 = vadd.f32 0.0, %v3185
          %v3187 = vpop.f32.mrb[0].mxu0
          %v3188 = vpop.f32.mrb[0].mxu0
          %v3189 = vadd.f32 0.0, %v3188
          %v3190 = vpop.f32.mrb[0].mxu0
          %3191 = vmatprep.mubr.bf16.mxu0 0
          %3192 = vmatmul.mubr.bf16.gmra.mrb[0].mxu0 %v2050
          %v3193 = vpop.f32.mrb[0].mxu0
          %v3194 = vadd.f32 0.0, %v3193
          %v3195 = vpop.f32.mrb[0].mxu0
          %v3196 = vpop.f32.mrb[0].mxu0
          %v3197 = vadd.f32 0.0, %v3196
          %v3198 = vpop.f32.mrb[0].mxu0
          %3199 = vdwg.mxu0
          %v3200 = vpack.c.bf16 %v3077, %v3074
          %v3201 = vpack.c.bf16 %v3085, %v3082
          %v3202 = vpack.c.bf16 %v3093, %v3090
          %v3203 = vpack.c.bf16 %v3101, %v3098
          %v3204 = vpack.c.bf16 %v3109, %v3106
          %v3205 = vpack.c.bf16 %v3117, %v3114
          %v3206 = vpack.c.bf16 %v3125, %v3122
          %v3207 = vpack.c.bf16 %v3133, %v3130
          %v3208 = vpack.c.bf16 %v3141, %v3138
          %v3209 = vpack.c.bf16 %v3149, %v3146
          %v3210 = vpack.c.bf16 %v3157, %v3154
          %v3211 = vpack.c.bf16 %v3165, %v3162
          %v3212 = vpack.c.bf16 %v3173, %v3170
          %v3213 = vpack.c.bf16 %v3181, %v3178
          %v3214 = vpack.c.bf16 %v3189, %v3186
          %v3215 = vpack.c.bf16 %v3197, %v3194
          %s3216 = scalar_lea.vmem [#allocation3], 640
          %3217 = vst.msk [vmem:[%s3216] sm:$0xff] %vm1593, %v3200
          %3218 = vst.msk [vmem:[%s3216 + $0x8] sm:$0xff] %vm1593, %v3201
          %3219 = vst.msk [vmem:[%s3216 + $0x10] sm:$0xff] %vm1593, %v3202
          %3220 = vst.msk [vmem:[%s3216 + $0x18] sm:$0xff] %vm1593, %v3203
          %3221 = vst.msk [vmem:[%s3216 + $0x20] sm:$0xff] %vm1593, %v3204
          %3222 = vst.msk [vmem:[%s3216 + $0x28] sm:$0xff] %vm1593, %v3205
          %3223 = vst.msk [vmem:[%s3216 + $0x30] sm:$0xff] %vm1593, %v3206
          %3224 = vst.msk [vmem:[%s3216 + $0x38] sm:$0xff] %vm1593, %v3207
          %3225 = vst.msk [vmem:[%s3216 + $0x40] sm:$0xff] %vm1593, %v3208
          %3226 = vst.msk [vmem:[%s3216 + $0x48] sm:$0xff] %vm1593, %v3209
          %3227 = vst.msk [vmem:[%s3216 + $0x50] sm:$0xff] %vm1593, %v3210
          %3228 = vst.msk [vmem:[%s3216 + $0x58] sm:$0xff] %vm1593, %v3211
          %3229 = vst.msk [vmem:[%s3216 + $0x60] sm:$0xff] %vm1593, %v3212
          %3230 = vst.msk [vmem:[%s3216 + $0x68] sm:$0xff] %vm1593, %v3213
          %3231 = vst.msk [vmem:[%s3216 + $0x70] sm:$0xff] %vm1593, %v3214
          %3232 = vst.msk [vmem:[%s3216 + $0x78] sm:$0xff] %vm1593, %v3215
          %v3234 = vsel %vm1628, %v1890, 0
          %3236 = vmatprep.subr.bf16.mxu0 0
          %3237 = vmatpush1.bf16.msra.mxu0 %v3234
          %3238 = vmatprep.subr.bf16.mxu0 0
          %3239 = vmatpush1.bf16.msra.mxu0 0
          %3240 = vmatprep.subr.bf16.mxu0 0
          %3241 = vmatpush1.bf16.msra.mxu0 0
          %3242 = vmatprep.subr.bf16.mxu0 0
          %3243 = vmatpush1.bf16.msra.mxu0 0
          %3244 = vmatprep.subr.bf16.mxu0 0
          %3245 = vmatpush1.bf16.msra.mxu0 0
          %3246 = vmatprep.subr.bf16.mxu0 0
          %3247 = vmatpush1.bf16.msra.mxu0 0
          %3248 = vmatprep.subr.bf16.mxu0 0
          %3249 = vmatpush1.bf16.msra.mxu0 0
          %3250 = vmatprep.subr.bf16.mxu0 0
          %3251 = vmatpush1.bf16.msra.mxu0 0
          %3252 = vmatprep.subr.bf16.mxu0 0
          %3253 = vmatpush1.bf16.msra.mxu0 0
          %3254 = vmatprep.subr.bf16.mxu0 0
          %3255 = vmatpush1.bf16.msra.mxu0 0
          %3256 = vmatprep.subr.bf16.mxu0 0
          %3257 = vmatpush1.bf16.msra.mxu0 0
          %3258 = vmatprep.subr.bf16.mxu0 0
          %3259 = vmatpush1.bf16.msra.mxu0 0
          %3260 = vmatprep.subr.bf16.mxu0 0
          %3261 = vmatpush1.bf16.msra.mxu0 0
          %3262 = vmatprep.subr.bf16.mxu0 0
          %3263 = vmatpush1.bf16.msra.mxu0 0
          %3264 = vmatprep.subr.bf16.mxu0 0
          %3265 = vmatpush1.bf16.msra.mxu0 0
          %3266 = vmatprep.subr.bf16.mxu0 0
          %3267 = vmatpush1.bf16.msra.mxu0 0
          %3268 = vmatprep.mubr.bf16.mxu0 0
          %3269 = vmatmul.mubr.bf16.gmra.mrb[0].mxu0 %v2005
          %v3270 = vpop.f32.mrb[0].mxu0
          %v3271 = vadd.f32 0.0, %v3270
          %v3272 = vpop.f32.mrb[0].mxu0
          %v3273 = vpop.f32.mrb[0].mxu0
          %v3274 = vadd.f32 0.0, %v3273
          %v3275 = vpop.f32.mrb[0].mxu0
          %3276 = vmatprep.mubr.bf16.mxu0 0
          %3277 = vmatmul.mubr.bf16.gmra.mrb[0].mxu0 %v2008
          %v3278 = vpop.f32.mrb[0].mxu0
          %v3279 = vadd.f32 0.0, %v3278
          %v3280 = vpop.f32.mrb[0].mxu0
          %v3281 = vpop.f32.mrb[0].mxu0
          %v3282 = vadd.f32 0.0, %v3281
          %v3283 = vpop.f32.mrb[0].mxu0
          %3284 = vmatprep.mubr.bf16.mxu0 0
          %3285 = vmatmul.mubr.bf16.gmra.mrb[0].mxu0 %v2011
          %v3286 = vpop.f32.mrb[0].mxu0
          %v3287 = vadd.f32 0.0, %v3286
          %v3288 = vpop.f32.mrb[0].mxu0
          %v3289 = vpop.f32.mrb[0].mxu0
          %v3290 = vadd.f32 0.0, %v3289
          %v3291 = vpop.f32.mrb[0].mxu0
          %3292 = vmatprep.mubr.bf16.mxu0 0
          %3293 = vmatmul.mubr.bf16.gmra.mrb[0].mxu0 %v2014
          %v3294 = vpop.f32.mrb[0].mxu0
          %v3295 = vadd.f32 0.0, %v3294
          %v3296 = vpop.f32.mrb[0].mxu0
          %v3297 = vpop.f32.mrb[0].mxu0
          %v3298 = vadd.f32 0.0, %v3297
          %v3299 = vpop.f32.mrb[0].mxu0
          %3300 = vmatprep.mubr.bf16.mxu0 0
          %3301 = vmatmul.mubr.bf16.gmra.mrb[0].mxu0 %v2017
          %v3302 = vpop.f32.mrb[0].mxu0
          %v3303 = vadd.f32 0.0, %v3302
          %v3304 = vpop.f32.mrb[0].mxu0
          %v3305 = vpop.f32.mrb[0].mxu0
          %v3306 = vadd.f32 0.0, %v3305
          %v3307 = vpop.f32.mrb[0].mxu0
          %3308 = vmatprep.mubr.bf16.mxu0 0
          %3309 = vmatmul.mubr.bf16.gmra.mrb[0].mxu0 %v2020
          %v3310 = vpop.f32.mrb[0].mxu0
          %v3311 = vadd.f32 0.0, %v3310
          %v3312 = vpop.f32.mrb[0].mxu0
          %v3313 = vpop.f32.mrb[0].mxu0
          %v3314 = vadd.f32 0.0, %v3313
          %v3315 = vpop.f32.mrb[0].mxu0
          %3316 = vmatprep.mubr.bf16.mxu0 0
          %3317 = vmatmul.mubr.bf16.gmra.mrb[0].mxu0 %v2023
          %v3318 = vpop.f32.mrb[0].mxu0
          %v3319 = vadd.f32 0.0, %v3318
          %v3320 = vpop.f32.mrb[0].mxu0
          %v3321 = vpop.f32.mrb[0].mxu0
          %v3322 = vadd.f32 0.0, %v3321
          %v3323 = vpop.f32.mrb[0].mxu0
          %3324 = vmatprep.mubr.bf16.mxu0 0
          %3325 = vmatmul.mubr.bf16.gmra.mrb[0].mxu0 %v2026
          %v3326 = vpop.f32.mrb[0].mxu0
          %v3327 = vadd.f32 0.0, %v3326
          %v3328 = vpop.f32.mrb[0].mxu0
          %v3329 = vpop.f32.mrb[0].mxu0
          %v3330 = vadd.f32 0.0, %v3329
          %v3331 = vpop.f32.mrb[0].mxu0
          %3332 = vmatprep.mubr.bf16.mxu0 0
          %3333 = vmatmul.mubr.bf16.gmra.mrb[0].mxu0 %v2029
          %v3334 = vpop.f32.mrb[0].mxu0
          %v3335 = vadd.f32 0.0, %v3334
          %v3336 = vpop.f32.mrb[0].mxu0
          %v3337 = vpop.f32.mrb[0].mxu0
          %v3338 = vadd.f32 0.0, %v3337
          %v3339 = vpop.f32.mrb[0].mxu0
          %3340 = vmatprep.mubr.bf16.mxu0 0
          %3341 = vmatmul.mubr.bf16.gmra.mrb[0].mxu0 %v2032
          %v3342 = vpop.f32.mrb[0].mxu0
          %v3343 = vadd.f32 0.0, %v3342
          %v3344 = vpop.f32.mrb[0].mxu0
          %v3345 = vpop.f32.mrb[0].mxu0
          %v3346 = vadd.f32 0.0, %v3345
          %v3347 = vpop.f32.mrb[0].mxu0
          %3348 = vmatprep.mubr.bf16.mxu0 0
          %3349 = vmatmul.mubr.bf16.gmra.mrb[0].mxu0 %v2035
          %v3350 = vpop.f32.mrb[0].mxu0
          %v3351 = vadd.f32 0.0, %v3350
          %v3352 = vpop.f32.mrb[0].mxu0
          %v3353 = vpop.f32.mrb[0].mxu0
          %v3354 = vadd.f32 0.0, %v3353
          %v3355 = vpop.f32.mrb[0].mxu0
          %3356 = vmatprep.mubr.bf16.mxu0 0
          %3357 = vmatmul.mubr.bf16.gmra.mrb[0].mxu0 %v2038
          %v3358 = vpop.f32.mrb[0].mxu0
          %v3359 = vadd.f32 0.0, %v3358
          %v3360 = vpop.f32.mrb[0].mxu0
          %v3361 = vpop.f32.mrb[0].mxu0
          %v3362 = vadd.f32 0.0, %v3361
          %v3363 = vpop.f32.mrb[0].mxu0
          %3364 = vmatprep.mubr.bf16.mxu0 0
          %3365 = vmatmul.mubr.bf16.gmra.mrb[0].mxu0 %v2041
          %v3366 = vpop.f32.mrb[0].mxu0
          %v3367 = vadd.f32 0.0, %v3366
          %v3368 = vpop.f32.mrb[0].mxu0
          %v3369 = vpop.f32.mrb[0].mxu0
          %v3370 = vadd.f32 0.0, %v3369
          %v3371 = vpop.f32.mrb[0].mxu0
          %3372 = vmatprep.mubr.bf16.mxu0 0
          %3373 = vmatmul.mubr.bf16.gmra.mrb[0].mxu0 %v2044
          %v3374 = vpop.f32.mrb[0].mxu0
          %v3375 = vadd.f32 0.0, %v3374
          %v3376 = vpop.f32.mrb[0].mxu0
          %v3377 = vpop.f32.mrb[0].mxu0
          %v3378 = vadd.f32 0.0, %v3377
          %v3379 = vpop.f32.mrb[0].mxu0
          %3380 = vmatprep.mubr.bf16.mxu0 0
          %3381 = vmatmul.mubr.bf16.gmra.mrb[0].mxu0 %v2047
          %v3382 = vpop.f32.mrb[0].mxu0
          %v3383 = vadd.f32 0.0, %v3382
          %v3384 = vpop.f32.mrb[0].mxu0
          %v3385 = vpop.f32.mrb[0].mxu0
          %v3386 = vadd.f32 0.0, %v3385
          %v3387 = vpop.f32.mrb[0].mxu0
          %3388 = vmatprep.mubr.bf16.mxu0 0
          %3389 = vmatmul.mubr.bf16.gmra.mrb[0].mxu0 %v2050
          %v3390 = vpop.f32.mrb[0].mxu0
          %v3391 = vadd.f32 0.0, %v3390
          %v3392 = vpop.f32.mrb[0].mxu0
          %v3393 = vpop.f32.mrb[0].mxu0
          %v3394 = vadd.f32 0.0, %v3393
          %v3395 = vpop.f32.mrb[0].mxu0
          %3396 = vdwg.mxu0
          %v3397 = vpack.c.bf16 %v3274, %v3271
          %v3398 = vpack.c.bf16 %v3282, %v3279
          %v3399 = vpack.c.bf16 %v3290, %v3287
          %v3400 = vpack.c.bf16 %v3298, %v3295
          %v3401 = vpack.c.bf16 %v3306, %v3303
          %v3402 = vpack.c.bf16 %v3314, %v3311
          %v3403 = vpack.c.bf16 %v3322, %v3319
          %v3404 = vpack.c.bf16 %v3330, %v3327
          %v3405 = vpack.c.bf16 %v3338, %v3335
          %v3406 = vpack.c.bf16 %v3346, %v3343
          %v3407 = vpack.c.bf16 %v3354, %v3351
          %v3408 = vpack.c.bf16 %v3362, %v3359
          %v3409 = vpack.c.bf16 %v3370, %v3367
          %v3410 = vpack.c.bf16 %v3378, %v3375
          %v3411 = vpack.c.bf16 %v3386, %v3383
          %v3412 = vpack.c.bf16 %v3394, %v3391
          %s3413 = scalar_lea.vmem [#allocation3], 768
          %3414 = vst.msk [vmem:[%s3413] sm:$0xff] %vm1593, %v3397
          %3415 = vst.msk [vmem:[%s3413 + $0x8] sm:$0xff] %vm1593, %v3398
          %3416 = vst.msk [vmem:[%s3413 + $0x10] sm:$0xff] %vm1593, %v3399
          %3417 = vst.msk [vmem:[%s3413 + $0x18] sm:$0xff] %vm1593, %v3400
          %3418 = vst.msk [vmem:[%s3413 + $0x20] sm:$0xff] %vm1593, %v3401
          %3419 = vst.msk [vmem:[%s3413 + $0x28] sm:$0xff] %vm1593, %v3402
          %3420 = vst.msk [vmem:[%s3413 + $0x30] sm:$0xff] %vm1593, %v3403
          %3421 = vst.msk [vmem:[%s3413 + $0x38] sm:$0xff] %vm1593, %v3404
          %3422 = vst.msk [vmem:[%s3413 + $0x40] sm:$0xff] %vm1593, %v3405
          %3423 = vst.msk [vmem:[%s3413 + $0x48] sm:$0xff] %vm1593, %v3406
          %3424 = vst.msk [vmem:[%s3413 + $0x50] sm:$0xff] %vm1593, %v3407
          %3425 = vst.msk [vmem:[%s3413 + $0x58] sm:$0xff] %vm1593, %v3408
          %3426 = vst.msk [vmem:[%s3413 + $0x60] sm:$0xff] %vm1593, %v3409
          %3427 = vst.msk [vmem:[%s3413 + $0x68] sm:$0xff] %vm1593, %v3410
          %3428 = vst.msk [vmem:[%s3413 + $0x70] sm:$0xff] %vm1593, %v3411
          %3429 = vst.msk [vmem:[%s3413 + $0x78] sm:$0xff] %vm1593, %v3412
          %v3431 = vsel %vm1628, %v1891, 0
          %3433 = vmatprep.subr.bf16.mxu0 0
          %3434 = vmatpush1.bf16.msra.mxu0 %v3431
          %3435 = vmatprep.subr.bf16.mxu0 0
          %3436 = vmatpush1.bf16.msra.mxu0 0
          %3437 = vmatprep.subr.bf16.mxu0 0
          %3438 = vmatpush1.bf16.msra.mxu0 0
          %3439 = vmatprep.subr.bf16.mxu0 0
          %3440 = vmatpush1.bf16.msra.mxu0 0
          %3441 = vmatprep.subr.bf16.mxu0 0
          %3442 = vmatpush1.bf16.msra.mxu0 0
          %3443 = vmatprep.subr.bf16.mxu0 0
          %3444 = vmatpush1.bf16.msra.mxu0 0
          %3445 = vmatprep.subr.bf16.mxu0 0
          %3446 = vmatpush1.bf16.msra.mxu0 0
          %3447 = vmatprep.subr.bf16.mxu0 0
          %3448 = vmatpush1.bf16.msra.mxu0 0
          %3449 = vmatprep.subr.bf16.mxu0 0
          %3450 = vmatpush1.bf16.msra.mxu0 0
          %3451 = vmatprep.subr.bf16.mxu0 0
          %3452 = vmatpush1.bf16.msra.mxu0 0
          %3453 = vmatprep.subr.bf16.mxu0 0
          %3454 = vmatpush1.bf16.msra.mxu0 0
          %3455 = vmatprep.subr.bf16.mxu0 0
          %3456 = vmatpush1.bf16.msra.mxu0 0
          %3457 = vmatprep.subr.bf16.mxu0 0
          %3458 = vmatpush1.bf16.msra.mxu0 0
          %3459 = vmatprep.subr.bf16.mxu0 0
          %3460 = vmatpush1.bf16.msra.mxu0 0
          %3461 = vmatprep.subr.bf16.mxu0 0
          %3462 = vmatpush1.bf16.msra.mxu0 0
          %3463 = vmatprep.subr.bf16.mxu0 0
          %3464 = vmatpush1.bf16.msra.mxu0 0
          %3465 = vmatprep.mubr.bf16.mxu0 0
          %3466 = vmatmul.mubr.bf16.gmra.mrb[0].mxu0 %v2005
          %v3467 = vpop.f32.mrb[0].mxu0
          %v3468 = vadd.f32 0.0, %v3467
          %v3469 = vpop.f32.mrb[0].mxu0
          %v3470 = vpop.f32.mrb[0].mxu0
          %v3471 = vadd.f32 0.0, %v3470
          %v3472 = vpop.f32.mrb[0].mxu0
          %3473 = vmatprep.mubr.bf16.mxu0 0
          %3474 = vmatmul.mubr.bf16.gmra.mrb[0].mxu0 %v2008
          %v3475 = vpop.f32.mrb[0].mxu0
          %v3476 = vadd.f32 0.0, %v3475
          %v3477 = vpop.f32.mrb[0].mxu0
          %v3478 = vpop.f32.mrb[0].mxu0
          %v3479 = vadd.f32 0.0, %v3478
          %v3480 = vpop.f32.mrb[0].mxu0
          %3481 = vmatprep.mubr.bf16.mxu0 0
          %3482 = vmatmul.mubr.bf16.gmra.mrb[0].mxu0 %v2011
          %v3483 = vpop.f32.mrb[0].mxu0
          %v3484 = vadd.f32 0.0, %v3483
          %v3485 = vpop.f32.mrb[0].mxu0
          %v3486 = vpop.f32.mrb[0].mxu0
          %v3487 = vadd.f32 0.0, %v3486
          %v3488 = vpop.f32.mrb[0].mxu0
          %3489 = vmatprep.mubr.bf16.mxu0 0
          %3490 = vmatmul.mubr.bf16.gmra.mrb[0].mxu0 %v2014
          %v3491 = vpop.f32.mrb[0].mxu0
          %v3492 = vadd.f32 0.0, %v3491
          %v3493 = vpop.f32.mrb[0].mxu0
          %v3494 = vpop.f32.mrb[0].mxu0
          %v3495 = vadd.f32 0.0, %v3494
          %v3496 = vpop.f32.mrb[0].mxu0
          %3497 = vmatprep.mubr.bf16.mxu0 0
          %3498 = vmatmul.mubr.bf16.gmra.mrb[0].mxu0 %v2017
          %v3499 = vpop.f32.mrb[0].mxu0
          %v3500 = vadd.f32 0.0, %v3499
          %v3501 = vpop.f32.mrb[0].mxu0
          %v3502 = vpop.f32.mrb[0].mxu0
          %v3503 = vadd.f32 0.0, %v3502
          %v3504 = vpop.f32.mrb[0].mxu0
          %3505 = vmatprep.mubr.bf16.mxu0 0
          %3506 = vmatmul.mubr.bf16.gmra.mrb[0].mxu0 %v2020
          %v3507 = vpop.f32.mrb[0].mxu0
          %v3508 = vadd.f32 0.0, %v3507
          %v3509 = vpop.f32.mrb[0].mxu0
          %v3510 = vpop.f32.mrb[0].mxu0
          %v3511 = vadd.f32 0.0, %v3510
          %v3512 = vpop.f32.mrb[0].mxu0
          %3513 = vmatprep.mubr.bf16.mxu0 0
          %3514 = vmatmul.mubr.bf16.gmra.mrb[0].mxu0 %v2023
          %v3515 = vpop.f32.mrb[0].mxu0
          %v3516 = vadd.f32 0.0, %v3515
          %v3517 = vpop.f32.mrb[0].mxu0
          %v3518 = vpop.f32.mrb[0].mxu0
          %v3519 = vadd.f32 0.0, %v3518
          %v3520 = vpop.f32.mrb[0].mxu0
          %3521 = vmatprep.mubr.bf16.mxu0 0
          %3522 = vmatmul.mubr.bf16.gmra.mrb[0].mxu0 %v2026
          %v3523 = vpop.f32.mrb[0].mxu0
          %v3524 = vadd.f32 0.0, %v3523
          %v3525 = vpop.f32.mrb[0].mxu0
          %v3526 = vpop.f32.mrb[0].mxu0
          %v3527 = vadd.f32 0.0, %v3526
          %v3528 = vpop.f32.mrb[0].mxu0
          %3529 = vmatprep.mubr.bf16.mxu0 0
          %3530 = vmatmul.mubr.bf16.gmra.mrb[0].mxu0 %v2029
          %v3531 = vpop.f32.mrb[0].mxu0
          %v3532 = vadd.f32 0.0, %v3531
          %v3533 = vpop.f32.mrb[0].mxu0
          %v3534 = vpop.f32.mrb[0].mxu0
          %v3535 = vadd.f32 0.0, %v3534
          %v3536 = vpop.f32.mrb[0].mxu0
          %3537 = vmatprep.mubr.bf16.mxu0 0
          %3538 = vmatmul.mubr.bf16.gmra.mrb[0].mxu0 %v2032
          %v3539 = vpop.f32.mrb[0].mxu0
          %v3540 = vadd.f32 0.0, %v3539
          %v3541 = vpop.f32.mrb[0].mxu0
          %v3542 = vpop.f32.mrb[0].mxu0
          %v3543 = vadd.f32 0.0, %v3542
          %v3544 = vpop.f32.mrb[0].mxu0
          %3545 = vmatprep.mubr.bf16.mxu0 0
          %3546 = vmatmul.mubr.bf16.gmra.mrb[0].mxu0 %v2035
          %v3547 = vpop.f32.mrb[0].mxu0
          %v3548 = vadd.f32 0.0, %v3547
          %v3549 = vpop.f32.mrb[0].mxu0
          %v3550 = vpop.f32.mrb[0].mxu0
          %v3551 = vadd.f32 0.0, %v3550
          %v3552 = vpop.f32.mrb[0].mxu0
          %3553 = vmatprep.mubr.bf16.mxu0 0
          %3554 = vmatmul.mubr.bf16.gmra.mrb[0].mxu0 %v2038
          %v3555 = vpop.f32.mrb[0].mxu0
          %v3556 = vadd.f32 0.0, %v3555
          %v3557 = vpop.f32.mrb[0].mxu0
          %v3558 = vpop.f32.mrb[0].mxu0
          %v3559 = vadd.f32 0.0, %v3558
          %v3560 = vpop.f32.mrb[0].mxu0
          %3561 = vmatprep.mubr.bf16.mxu0 0
          %3562 = vmatmul.mubr.bf16.gmra.mrb[0].mxu0 %v2041
          %v3563 = vpop.f32.mrb[0].mxu0
          %v3564 = vadd.f32 0.0, %v3563
          %v3565 = vpop.f32.mrb[0].mxu0
          %v3566 = vpop.f32.mrb[0].mxu0
          %v3567 = vadd.f32 0.0, %v3566
          %v3568 = vpop.f32.mrb[0].mxu0
          %3569 = vmatprep.mubr.bf16.mxu0 0
          %3570 = vmatmul.mubr.bf16.gmra.mrb[0].mxu0 %v2044
          %v3571 = vpop.f32.mrb[0].mxu0
          %v3572 = vadd.f32 0.0, %v3571
          %v3573 = vpop.f32.mrb[0].mxu0
          %v3574 = vpop.f32.mrb[0].mxu0
          %v3575 = vadd.f32 0.0, %v3574
          %v3576 = vpop.f32.mrb[0].mxu0
          %3577 = vmatprep.mubr.bf16.mxu0 0
          %3578 = vmatmul.mubr.bf16.gmra.mrb[0].mxu0 %v2047
          %v3579 = vpop.f32.mrb[0].mxu0
          %v3580 = vadd.f32 0.0, %v3579
          %v3581 = vpop.f32.mrb[0].mxu0
          %v3582 = vpop.f32.mrb[0].mxu0
          %v3583 = vadd.f32 0.0, %v3582
          %v3584 = vpop.f32.mrb[0].mxu0
          %3585 = vmatprep.mubr.bf16.mxu0 0
          %3586 = vmatmul.mubr.bf16.gmra.mrb[0].mxu0 %v2050
          %v3587 = vpop.f32.mrb[0].mxu0
          %v3588 = vadd.f32 0.0, %v3587
          %v3589 = vpop.f32.mrb[0].mxu0
          %v3590 = vpop.f32.mrb[0].mxu0
          %v3591 = vadd.f32 0.0, %v3590
          %v3592 = vpop.f32.mrb[0].mxu0
          %3593 = vdwg.mxu0
          %v3594 = vpack.c.bf16 %v3471, %v3468
          %v3595 = vpack.c.bf16 %v3479, %v3476
          %v3596 = vpack.c.bf16 %v3487, %v3484
          %v3597 = vpack.c.bf16 %v3495, %v3492
          %v3598 = vpack.c.bf16 %v3503, %v3500
          %v3599 = vpack.c.bf16 %v3511, %v3508
          %v3600 = vpack.c.bf16 %v3519, %v3516
          %v3601 = vpack.c.bf16 %v3527, %v3524
          %v3602 = vpack.c.bf16 %v3535, %v3532
          %v3603 = vpack.c.bf16 %v3543, %v3540
          %v3604 = vpack.c.bf16 %v3551, %v3548
          %v3605 = vpack.c.bf16 %v3559, %v3556
          %v3606 = vpack.c.bf16 %v3567, %v3564
          %v3607 = vpack.c.bf16 %v3575, %v3572
          %v3608 = vpack.c.bf16 %v3583, %v3580
          %v3609 = vpack.c.bf16 %v3591, %v3588
          %s3610 = scalar_lea.vmem [#allocation3], 896
          %3611 = vst.msk [vmem:[%s3610] sm:$0xff] %vm1593, %v3594
          %3612 = vst.msk [vmem:[%s3610 + $0x8] sm:$0xff] %vm1593, %v3595
          %3613 = vst.msk [vmem:[%s3610 + $0x10] sm:$0xff] %vm1593, %v3596
          %3614 = vst.msk [vmem:[%s3610 + $0x18] sm:$0xff] %vm1593, %v3597
          %3615 = vst.msk [vmem:[%s3610 + $0x20] sm:$0xff] %vm1593, %v3598
          %3616 = vst.msk [vmem:[%s3610 + $0x28] sm:$0xff] %vm1593, %v3599
          %3617 = vst.msk [vmem:[%s3610 + $0x30] sm:$0xff] %vm1593, %v3600
          %3618 = vst.msk [vmem:[%s3610 + $0x38] sm:$0xff] %vm1593, %v3601
          %3619 = vst.msk [vmem:[%s3610 + $0x40] sm:$0xff] %vm1593, %v3602
          %3620 = vst.msk [vmem:[%s3610 + $0x48] sm:$0xff] %vm1593, %v3603
          %3621 = vst.msk [vmem:[%s3610 + $0x50] sm:$0xff] %vm1593, %v3604
          %3622 = vst.msk [vmem:[%s3610 + $0x58] sm:$0xff] %vm1593, %v3605
          %3623 = vst.msk [vmem:[%s3610 + $0x60] sm:$0xff] %vm1593, %v3606
          %3624 = vst.msk [vmem:[%s3610 + $0x68] sm:$0xff] %vm1593, %v3607
          %3625 = vst.msk [vmem:[%s3610 + $0x70] sm:$0xff] %vm1593, %v3608
          %3626 = vst.msk [vmem:[%s3610 + $0x78] sm:$0xff] %vm1593, %v3609
        $region68: #{dense_prediction_forward.1} parent=51 // pred_fallthru
          _
        %s3627 = smul.u32 %s31, 64
        %s3628 = sshra.s32 %s3627, 4
        %s3629 = sand.u32 %s3627, 15
        %s3630 = smul.addr %s3628, 8
        %s3631 = scalar_lea.vmem [#allocation3], %s3630
        %v3632 = vld [vmem:[%s3631] sm:$0xff]
        %v3633 = vld [vmem:[%s3631 + $0x8] sm:$0xff]
        %v3634 = vld [vmem:[%s3631 + $0x10] sm:$0xff]
        %v3635 = vld [vmem:[%s3631 + $0x18] sm:$0xff]
        %v3636 = vld [vmem:[%s3631 + $0x80] sm:$0xff]
        %v3637 = vld [vmem:[%s3631 + $0x88] sm:$0xff]
        %v3638 = vld [vmem:[%s3631 + $0x90] sm:$0xff]
        %v3639 = vld [vmem:[%s3631 + $0x98] sm:$0xff]
        %v3640 = vld [vmem:[%s3631 + $0x100] sm:$0xff]
        %v3641 = vld [vmem:[%s3631 + $0x108] sm:$0xff]
        %v3642 = vld [vmem:[%s3631 + $0x110] sm:$0xff]
        %v3643 = vld [vmem:[%s3631 + $0x118] sm:$0xff]
        %v3644 = vld [vmem:[%s3631 + $0x180] sm:$0xff]
        %v3645 = vld [vmem:[%s3631 + $0x188] sm:$0xff]
        %v3646 = vld [vmem:[%s3631 + $0x190] sm:$0xff]
        %v3647 = vld [vmem:[%s3631 + $0x198] sm:$0xff]
        %v3648 = vld [vmem:[%s3631 + $0x200] sm:$0xff]
        %v3649 = vld [vmem:[%s3631 + $0x208] sm:$0xff]
        %v3650 = vld [vmem:[%s3631 + $0x210] sm:$0xff]
        %v3651 = vld [vmem:[%s3631 + $0x218] sm:$0xff]
        %v3652 = vld [vmem:[%s3631 + $0x280] sm:$0xff]
        %v3653 = vld [vmem:[%s3631 + $0x288] sm:$0xff]
        %v3654 = vld [vmem:[%s3631 + $0x290] sm:$0xff]
        %v3655 = vld [vmem:[%s3631 + $0x298] sm:$0xff]
        %v3656 = vld [vmem:[%s3631 + $0x300] sm:$0xff]
        %v3657 = vld [vmem:[%s3631 + $0x308] sm:$0xff]
        %v3658 = vld [vmem:[%s3631 + $0x310] sm:$0xff]
        %v3659 = vld [vmem:[%s3631 + $0x318] sm:$0xff]
        %v3660 = vld [vmem:[%s3631 + $0x380] sm:$0xff]
        %v3661 = vld [vmem:[%s3631 + $0x388] sm:$0xff]
        %v3662 = vld [vmem:[%s3631 + $0x390] sm:$0xff]
        %v3663 = vld [vmem:[%s3631 + $0x398] sm:$0xff]
        %v3664 = vld [vmem:[#allocation9] sm:$0xff]
        %v3666 = vunpack.c.l.b16 %v3664
        %v3667 = vunpack.c.h.b16 %v3664
        %v3668 = vpack.c.b16 %v3666, %v3666
        %v3669 = vpack.c.b16 %v3667, %v3667
        %vm3670 = vcmask 64512
        %v3672 = vsel %vm3670, %v3632, 0
        %v3675 = vsel %vm3670, %v3633, 0
        %v3678 = vsel %vm3670, %v3634, 0
        %v3681 = vsel %vm3670, %v3635, 0
        %v3684 = vsel %vm3670, %v3636, 0
        %v3687 = vsel %vm3670, %v3637, 0
        %v3690 = vsel %vm3670, %v3638, 0
        %v3693 = vsel %vm3670, %v3639, 0
        %v3696 = vsel %vm3670, %v3640, 0
        %v3699 = vsel %vm3670, %v3641, 0
        %v3702 = vsel %vm3670, %v3642, 0
        %v3705 = vsel %vm3670, %v3643, 0
        %v3708 = vsel %vm3670, %v3644, 0
        %v3711 = vsel %vm3670, %v3645, 0
        %v3714 = vsel %vm3670, %v3646, 0
        %v3717 = vsel %vm3670, %v3647, 0
        %v3720 = vsel %vm3670, %v3648, 0
        %v3723 = vsel %vm3670, %v3649, 0
        %v3726 = vsel %vm3670, %v3650, 0
        %v3729 = vsel %vm3670, %v3651, 0
        %v3732 = vsel %vm3670, %v3652, 0
        %v3735 = vsel %vm3670, %v3653, 0
        %v3738 = vsel %vm3670, %v3654, 0
        %v3741 = vsel %vm3670, %v3655, 0
        %v3744 = vsel %vm3670, %v3656, 0
        %v3747 = vsel %vm3670, %v3657, 0
        %v3750 = vsel %vm3670, %v3658, 0
        %v3753 = vsel %vm3670, %v3659, 0
        %v3756 = vsel %vm3670, %v3660, 0
        %v3759 = vsel %vm3670, %v3661, 0
        %v3762 = vsel %vm3670, %v3662, 0
        %v3765 = vsel %vm3670, %v3663, 0
        %vm3767 = vcmask 1043456
        %v3769 = vsel %vm3767, %v3668, 0
        %v3772 = vsel %vm3767, %v3669, 0
        %3774 = vmatprep.subr.bf16.mxu0 %v3772
        %3775 = vmatpush1.bf16.msra.mxu0 %v3769
        %3776 = vmatprep.subr.bf16.mxu0 0
        %3777 = vmatpush1.bf16.msra.mxu0 0
        %3778 = vmatprep.subr.bf16.mxu0 0
        %3779 = vmatpush1.bf16.msra.mxu0 0
        %3780 = vmatprep.subr.bf16.mxu0 0
        %3781 = vmatpush1.bf16.msra.mxu0 0
        %3782 = vmatprep.subr.bf16.mxu0 0
        %3783 = vmatpush1.bf16.msra.mxu0 0
        %3784 = vmatprep.subr.bf16.mxu0 0
        %3785 = vmatpush1.bf16.msra.mxu0 0
        %3786 = vmatprep.subr.bf16.mxu0 0
        %3787 = vmatpush1.bf16.msra.mxu0 0
        %3788 = vmatprep.subr.bf16.mxu0 0
        %3789 = vmatpush1.bf16.msra.mxu0 0
        %3790 = vmatprep.subr.bf16.mxu0 0
        %3791 = vmatpush1.bf16.msra.mxu0 0
        %3792 = vmatprep.subr.bf16.mxu0 0
        %3793 = vmatpush1.bf16.msra.mxu0 0
        %3794 = vmatprep.subr.bf16.mxu0 0
        %3795 = vmatpush1.bf16.msra.mxu0 0
        %3796 = vmatprep.subr.bf16.mxu0 0
        %3797 = vmatpush1.bf16.msra.mxu0 0
        %3798 = vmatprep.subr.bf16.mxu0 0
        %3799 = vmatpush1.bf16.msra.mxu0 0
        %3800 = vmatprep.subr.bf16.mxu0 0
        %3801 = vmatpush1.bf16.msra.mxu0 0
        %3802 = vmatprep.subr.bf16.mxu0 0
        %3803 = vmatpush1.bf16.msra.mxu0 0
        %3804 = vmatprep.subr.bf16.mxu0 0
        %3805 = vmatpush1.bf16.msra.mxu0 0
        %3806 = vmatprep.mubr.bf16.mxu0 0
        %3807 = vmatmul.mubr.bf16.gmra.mrb[0].mxu0 %v3672
        %v3808 = vpop.f32.mrb[0].mxu0
        %v3809 = vadd.f32 0.0, %v3808
        %v3810 = vpop.f32.mrb[0].mxu0
        %v3811 = vadd.f32 0.0, %v3810
        %v3812 = vpop.f32.mrb[0].mxu0
        %v3813 = vadd.f32 0.0, %v3812
        %v3814 = vpop.f32.mrb[0].mxu0
        %v3815 = vadd.f32 0.0, %v3814
        %3816 = vmatprep.mubr.bf16.mxu0 0
        %3817 = vmatmul.mubr.bf16.gmra.mrb[0].mxu0 %v3675
        %v3818 = vpop.f32.mrb[0].mxu0
        %v3819 = vadd.f32 0.0, %v3818
        %v3820 = vpop.f32.mrb[0].mxu0
        %v3821 = vadd.f32 0.0, %v3820
        %v3822 = vpop.f32.mrb[0].mxu0
        %v3823 = vadd.f32 0.0, %v3822
        %v3824 = vpop.f32.mrb[0].mxu0
        %v3825 = vadd.f32 0.0, %v3824
        %3826 = vmatprep.mubr.bf16.mxu0 0
        %3827 = vmatmul.mubr.bf16.gmra.mrb[0].mxu0 %v3678
        %v3828 = vpop.f32.mrb[0].mxu0
        %v3829 = vadd.f32 0.0, %v3828
        %v3830 = vpop.f32.mrb[0].mxu0
        %v3831 = vadd.f32 0.0, %v3830
        %v3832 = vpop.f32.mrb[0].mxu0
        %v3833 = vadd.f32 0.0, %v3832
        %v3834 = vpop.f32.mrb[0].mxu0
        %v3835 = vadd.f32 0.0, %v3834
        %3836 = vmatprep.mubr.bf16.mxu0 0
        %3837 = vmatmul.mubr.bf16.gmra.mrb[0].mxu0 %v3681
        %v3838 = vpop.f32.mrb[0].mxu0
        %v3839 = vadd.f32 0.0, %v3838
        %v3840 = vpop.f32.mrb[0].mxu0
        %v3841 = vadd.f32 0.0, %v3840
        %v3842 = vpop.f32.mrb[0].mxu0
        %v3843 = vadd.f32 0.0, %v3842
        %v3844 = vpop.f32.mrb[0].mxu0
        %v3845 = vadd.f32 0.0, %v3844
        %3846 = vmatprep.mubr.bf16.mxu0 0
        %3847 = vmatmul.mubr.bf16.gmra.mrb[0].mxu0 %v3684
        %v3848 = vpop.f32.mrb[0].mxu0
        %v3849 = vadd.f32 0.0, %v3848
        %v3850 = vpop.f32.mrb[0].mxu0
        %v3851 = vadd.f32 0.0, %v3850
        %v3852 = vpop.f32.mrb[0].mxu0
        %v3853 = vadd.f32 0.0, %v3852
        %v3854 = vpop.f32.mrb[0].mxu0
        %v3855 = vadd.f32 0.0, %v3854
        %3856 = vmatprep.mubr.bf16.mxu0 0
        %3857 = vmatmul.mubr.bf16.gmra.mrb[0].mxu0 %v3687
        %v3858 = vpop.f32.mrb[0].mxu0
        %v3859 = vadd.f32 0.0, %v3858
        %v3860 = vpop.f32.mrb[0].mxu0
        %v3861 = vadd.f32 0.0, %v3860
        %v3862 = vpop.f32.mrb[0].mxu0
        %v3863 = vadd.f32 0.0, %v3862
        %v3864 = vpop.f32.mrb[0].mxu0
        %v3865 = vadd.f32 0.0, %v3864
        %3866 = vmatprep.mubr.bf16.mxu0 0
        %3867 = vmatmul.mubr.bf16.gmra.mrb[0].mxu0 %v3690
        %v3868 = vpop.f32.mrb[0].mxu0
        %v3869 = vadd.f32 0.0, %v3868
        %v3870 = vpop.f32.mrb[0].mxu0
        %v3871 = vadd.f32 0.0, %v3870
        %v3872 = vpop.f32.mrb[0].mxu0
        %v3873 = vadd.f32 0.0, %v3872
        %v3874 = vpop.f32.mrb[0].mxu0
        %v3875 = vadd.f32 0.0, %v3874
        %3876 = vmatprep.mubr.bf16.mxu0 0
        %3877 = vmatmul.mubr.bf16.gmra.mrb[0].mxu0 %v3693
        %v3878 = vpop.f32.mrb[0].mxu0
        %v3879 = vadd.f32 0.0, %v3878
        %v3880 = vpop.f32.mrb[0].mxu0
        %v3881 = vadd.f32 0.0, %v3880
        %v3882 = vpop.f32.mrb[0].mxu0
        %v3883 = vadd.f32 0.0, %v3882
        %v3884 = vpop.f32.mrb[0].mxu0
        %v3885 = vadd.f32 0.0, %v3884
        %3886 = vmatprep.mubr.bf16.mxu0 0
        %3887 = vmatmul.mubr.bf16.gmra.mrb[0].mxu0 %v3696
        %v3888 = vpop.f32.mrb[0].mxu0
        %v3889 = vadd.f32 0.0, %v3888
        %v3890 = vpop.f32.mrb[0].mxu0
        %v3891 = vadd.f32 0.0, %v3890
        %v3892 = vpop.f32.mrb[0].mxu0
        %v3893 = vadd.f32 0.0, %v3892
        %v3894 = vpop.f32.mrb[0].mxu0
        %v3895 = vadd.f32 0.0, %v3894
        %3896 = vmatprep.mubr.bf16.mxu0 0
        %3897 = vmatmul.mubr.bf16.gmra.mrb[0].mxu0 %v3699
        %v3898 = vpop.f32.mrb[0].mxu0
        %v3899 = vadd.f32 0.0, %v3898
        %v3900 = vpop.f32.mrb[0].mxu0
        %v3901 = vadd.f32 0.0, %v3900
        %v3902 = vpop.f32.mrb[0].mxu0
        %v3903 = vadd.f32 0.0, %v3902
        %v3904 = vpop.f32.mrb[0].mxu0
        %v3905 = vadd.f32 0.0, %v3904
        %3906 = vmatprep.mubr.bf16.mxu0 0
        %3907 = vmatmul.mubr.bf16.gmra.mrb[0].mxu0 %v3702
        %v3908 = vpop.f32.mrb[0].mxu0
        %v3909 = vadd.f32 0.0, %v3908
        %v3910 = vpop.f32.mrb[0].mxu0
        %v3911 = vadd.f32 0.0, %v3910
        %v3912 = vpop.f32.mrb[0].mxu0
        %v3913 = vadd.f32 0.0, %v3912
        %v3914 = vpop.f32.mrb[0].mxu0
        %v3915 = vadd.f32 0.0, %v3914
        %3916 = vmatprep.mubr.bf16.mxu0 0
        %3917 = vmatmul.mubr.bf16.gmra.mrb[0].mxu0 %v3705
        %v3918 = vpop.f32.mrb[0].mxu0
        %v3919 = vadd.f32 0.0, %v3918
        %v3920 = vpop.f32.mrb[0].mxu0
        %v3921 = vadd.f32 0.0, %v3920
        %v3922 = vpop.f32.mrb[0].mxu0
        %v3923 = vadd.f32 0.0, %v3922
        %v3924 = vpop.f32.mrb[0].mxu0
        %v3925 = vadd.f32 0.0, %v3924
        %3926 = vmatprep.mubr.bf16.mxu0 0
        %3927 = vmatmul.mubr.bf16.gmra.mrb[0].mxu0 %v3708
        %v3928 = vpop.f32.mrb[0].mxu0
        %v3929 = vadd.f32 0.0, %v3928
        %v3930 = vpop.f32.mrb[0].mxu0
        %v3931 = vadd.f32 0.0, %v3930
        %v3932 = vpop.f32.mrb[0].mxu0
        %v3933 = vadd.f32 0.0, %v3932
        %v3934 = vpop.f32.mrb[0].mxu0
        %v3935 = vadd.f32 0.0, %v3934
        %3936 = vmatprep.mubr.bf16.mxu0 0
        %3937 = vmatmul.mubr.bf16.gmra.mrb[0].mxu0 %v3711
        %v3938 = vpop.f32.mrb[0].mxu0
        %v3939 = vadd.f32 0.0, %v3938
        %v3940 = vpop.f32.mrb[0].mxu0
        %v3941 = vadd.f32 0.0, %v3940
        %v3942 = vpop.f32.mrb[0].mxu0
        %v3943 = vadd.f32 0.0, %v3942
        %v3944 = vpop.f32.mrb[0].mxu0
        %v3945 = vadd.f32 0.0, %v3944
        %3946 = vmatprep.mubr.bf16.mxu0 0
        %3947 = vmatmul.mubr.bf16.gmra.mrb[0].mxu0 %v3714
        %v3948 = vpop.f32.mrb[0].mxu0
        %v3949 = vadd.f32 0.0, %v3948
        %v3950 = vpop.f32.mrb[0].mxu0
        %v3951 = vadd.f32 0.0, %v3950
        %v3952 = vpop.f32.mrb[0].mxu0
        %v3953 = vadd.f32 0.0, %v3952
        %v3954 = vpop.f32.mrb[0].mxu0
        %v3955 = vadd.f32 0.0, %v3954
        %3956 = vmatprep.mubr.bf16.mxu0 0
        %3957 = vmatmul.mubr.bf16.gmra.mrb[0].mxu0 %v3717
        %v3958 = vpop.f32.mrb[0].mxu0
        %v3959 = vadd.f32 0.0, %v3958
        %v3960 = vpop.f32.mrb[0].mxu0
        %v3961 = vadd.f32 0.0, %v3960
        %v3962 = vpop.f32.mrb[0].mxu0
        %v3963 = vadd.f32 0.0, %v3962
        %v3964 = vpop.f32.mrb[0].mxu0
        %v3965 = vadd.f32 0.0, %v3964
        %3966 = vmatprep.mubr.bf16.mxu0 0
        %3967 = vmatmul.mubr.bf16.gmra.mrb[0].mxu0 %v3720
        %v3968 = vpop.f32.mrb[0].mxu0
        %v3969 = vadd.f32 0.0, %v3968
        %v3970 = vpop.f32.mrb[0].mxu0
        %v3971 = vadd.f32 0.0, %v3970
        %v3972 = vpop.f32.mrb[0].mxu0
        %v3973 = vadd.f32 0.0, %v3972
        %v3974 = vpop.f32.mrb[0].mxu0
        %v3975 = vadd.f32 0.0, %v3974
        %3976 = vmatprep.mubr.bf16.mxu0 0
        %3977 = vmatmul.mubr.bf16.gmra.mrb[0].mxu0 %v3723
        %v3978 = vpop.f32.mrb[0].mxu0
        %v3979 = vadd.f32 0.0, %v3978
        %v3980 = vpop.f32.mrb[0].mxu0
        %v3981 = vadd.f32 0.0, %v3980
        %v3982 = vpop.f32.mrb[0].mxu0
        %v3983 = vadd.f32 0.0, %v3982
        %v3984 = vpop.f32.mrb[0].mxu0
        %v3985 = vadd.f32 0.0, %v3984
        %3986 = vmatprep.mubr.bf16.mxu0 0
        %3987 = vmatmul.mubr.bf16.gmra.mrb[0].mxu0 %v3726
        %v3988 = vpop.f32.mrb[0].mxu0
        %v3989 = vadd.f32 0.0, %v3988
        %v3990 = vpop.f32.mrb[0].mxu0
        %v3991 = vadd.f32 0.0, %v3990
        %v3992 = vpop.f32.mrb[0].mxu0
        %v3993 = vadd.f32 0.0, %v3992
        %v3994 = vpop.f32.mrb[0].mxu0
        %v3995 = vadd.f32 0.0, %v3994
        %3996 = vmatprep.mubr.bf16.mxu0 0
        %3997 = vmatmul.mubr.bf16.gmra.mrb[0].mxu0 %v3729
        %v3998 = vpop.f32.mrb[0].mxu0
        %v3999 = vadd.f32 0.0, %v3998
        %v4000 = vpop.f32.mrb[0].mxu0
        %v4001 = vadd.f32 0.0, %v4000
        %v4002 = vpop.f32.mrb[0].mxu0
        %v4003 = vadd.f32 0.0, %v4002
        %v4004 = vpop.f32.mrb[0].mxu0
        %v4005 = vadd.f32 0.0, %v4004
        %4006 = vmatprep.mubr.bf16.mxu0 0
        %4007 = vmatmul.mubr.bf16.gmra.mrb[0].mxu0 %v3732
        %v4008 = vpop.f32.mrb[0].mxu0
        %v4009 = vadd.f32 0.0, %v4008
        %v4010 = vpop.f32.mrb[0].mxu0
        %v4011 = vadd.f32 0.0, %v4010
        %v4012 = vpop.f32.mrb[0].mxu0
        %v4013 = vadd.f32 0.0, %v4012
        %v4014 = vpop.f32.mrb[0].mxu0
        %v4015 = vadd.f32 0.0, %v4014
        %4016 = vmatprep.mubr.bf16.mxu0 0
        %4017 = vmatmul.mubr.bf16.gmra.mrb[0].mxu0 %v3735
        %v4018 = vpop.f32.mrb[0].mxu0
        %v4019 = vadd.f32 0.0, %v4018
        %v4020 = vpop.f32.mrb[0].mxu0
        %v4021 = vadd.f32 0.0, %v4020
        %v4022 = vpop.f32.mrb[0].mxu0
        %v4023 = vadd.f32 0.0, %v4022
        %v4024 = vpop.f32.mrb[0].mxu0
        %v4025 = vadd.f32 0.0, %v4024
        %4026 = vmatprep.mubr.bf16.mxu0 0
        %4027 = vmatmul.mubr.bf16.gmra.mrb[0].mxu0 %v3738
        %v4028 = vpop.f32.mrb[0].mxu0
        %v4029 = vadd.f32 0.0, %v4028
        %v4030 = vpop.f32.mrb[0].mxu0
        %v4031 = vadd.f32 0.0, %v4030
        %v4032 = vpop.f32.mrb[0].mxu0
        %v4033 = vadd.f32 0.0, %v4032
        %v4034 = vpop.f32.mrb[0].mxu0
        %v4035 = vadd.f32 0.0, %v4034
        %4036 = vmatprep.mubr.bf16.mxu0 0
        %4037 = vmatmul.mubr.bf16.gmra.mrb[0].mxu0 %v3741
        %v4038 = vpop.f32.mrb[0].mxu0
        %v4039 = vadd.f32 0.0, %v4038
        %v4040 = vpop.f32.mrb[0].mxu0
        %v4041 = vadd.f32 0.0, %v4040
        %v4042 = vpop.f32.mrb[0].mxu0
        %v4043 = vadd.f32 0.0, %v4042
        %v4044 = vpop.f32.mrb[0].mxu0
        %v4045 = vadd.f32 0.0, %v4044
        %4046 = vmatprep.mubr.bf16.mxu0 0
        %4047 = vmatmul.mubr.bf16.gmra.mrb[0].mxu0 %v3744
        %v4048 = vpop.f32.mrb[0].mxu0
        %v4049 = vadd.f32 0.0, %v4048
        %v4050 = vpop.f32.mrb[0].mxu0
        %v4051 = vadd.f32 0.0, %v4050
        %v4052 = vpop.f32.mrb[0].mxu0
        %v4053 = vadd.f32 0.0, %v4052
        %v4054 = vpop.f32.mrb[0].mxu0
        %v4055 = vadd.f32 0.0, %v4054
        %4056 = vmatprep.mubr.bf16.mxu0 0
        %4057 = vmatmul.mubr.bf16.gmra.mrb[0].mxu0 %v3747
        %v4058 = vpop.f32.mrb[0].mxu0
        %v4059 = vadd.f32 0.0, %v4058
        %v4060 = vpop.f32.mrb[0].mxu0
        %v4061 = vadd.f32 0.0, %v4060
        %v4062 = vpop.f32.mrb[0].mxu0
        %v4063 = vadd.f32 0.0, %v4062
        %v4064 = vpop.f32.mrb[0].mxu0
        %v4065 = vadd.f32 0.0, %v4064
        %4066 = vmatprep.mubr.bf16.mxu0 0
        %4067 = vmatmul.mubr.bf16.gmra.mrb[0].mxu0 %v3750
        %v4068 = vpop.f32.mrb[0].mxu0
        %v4069 = vadd.f32 0.0, %v4068
        %v4070 = vpop.f32.mrb[0].mxu0
        %v4071 = vadd.f32 0.0, %v4070
        %v4072 = vpop.f32.mrb[0].mxu0
        %v4073 = vadd.f32 0.0, %v4072
        %v4074 = vpop.f32.mrb[0].mxu0
        %v4075 = vadd.f32 0.0, %v4074
        %4076 = vmatprep.mubr.bf16.mxu0 0
        %4077 = vmatmul.mubr.bf16.gmra.mrb[0].mxu0 %v3753
        %v4078 = vpop.f32.mrb[0].mxu0
        %v4079 = vadd.f32 0.0, %v4078
        %v4080 = vpop.f32.mrb[0].mxu0
        %v4081 = vadd.f32 0.0, %v4080
        %v4082 = vpop.f32.mrb[0].mxu0
        %v4083 = vadd.f32 0.0, %v4082
        %v4084 = vpop.f32.mrb[0].mxu0
        %v4085 = vadd.f32 0.0, %v4084
        %4086 = vmatprep.mubr.bf16.mxu0 0
        %4087 = vmatmul.mubr.bf16.gmra.mrb[0].mxu0 %v3756
        %v4088 = vpop.f32.mrb[0].mxu0
        %v4089 = vadd.f32 0.0, %v4088
        %v4090 = vpop.f32.mrb[0].mxu0
        %v4091 = vadd.f32 0.0, %v4090
        %v4092 = vpop.f32.mrb[0].mxu0
        %v4093 = vadd.f32 0.0, %v4092
        %v4094 = vpop.f32.mrb[0].mxu0
        %v4095 = vadd.f32 0.0, %v4094
        %4096 = vmatprep.mubr.bf16.mxu0 0
        %4097 = vmatmul.mubr.bf16.gmra.mrb[0].mxu0 %v3759
        %v4098 = vpop.f32.mrb[0].mxu0
        %v4099 = vadd.f32 0.0, %v4098
        %v4100 = vpop.f32.mrb[0].mxu0
        %v4101 = vadd.f32 0.0, %v4100
        %v4102 = vpop.f32.mrb[0].mxu0
        %v4103 = vadd.f32 0.0, %v4102
        %v4104 = vpop.f32.mrb[0].mxu0
        %v4105 = vadd.f32 0.0, %v4104
        %4106 = vmatprep.mubr.bf16.mxu0 0
        %4107 = vmatmul.mubr.bf16.gmra.mrb[0].mxu0 %v3762
        %v4108 = vpop.f32.mrb[0].mxu0
        %v4109 = vadd.f32 0.0, %v4108
        %v4110 = vpop.f32.mrb[0].mxu0
        %v4111 = vadd.f32 0.0, %v4110
        %v4112 = vpop.f32.mrb[0].mxu0
        %v4113 = vadd.f32 0.0, %v4112
        %v4114 = vpop.f32.mrb[0].mxu0
        %v4115 = vadd.f32 0.0, %v4114
        %4116 = vmatprep.mubr.bf16.mxu0 0
        %4117 = vmatmul.mubr.bf16.gmra.mrb[0].mxu0 %v3765
        %v4118 = vpop.f32.mrb[0].mxu0
        %v4119 = vadd.f32 0.0, %v4118
        %v4120 = vpop.f32.mrb[0].mxu0
        %v4121 = vadd.f32 0.0, %v4120
        %v4122 = vpop.f32.mrb[0].mxu0
        %v4123 = vadd.f32 0.0, %v4122
        %v4124 = vpop.f32.mrb[0].mxu0
        %v4125 = vadd.f32 0.0, %v4124
        %4126 = vdwg.mxu0
        %4127 = vst [vmem:[%s364] sm:$0xff] %v3809
        %4128 = vst [vmem:[%s364 + $0x8] sm:$0xff] %v3811
        %4129 = vst [vmem:[%s364 + $0x10] sm:$0xff] %v3813
        %4130 = vst [vmem:[%s364 + $0x18] sm:$0xff] %v3815
        %4131 = vst [vmem:[%s364 + $0x20] sm:$0xff] %v3819
        %4132 = vst [vmem:[%s364 + $0x28] sm:$0xff] %v3821
        %4133 = vst [vmem:[%s364 + $0x30] sm:$0xff] %v3823
        %4134 = vst [vmem:[%s364 + $0x38] sm:$0xff] %v3825
        %4135 = vst [vmem:[%s364 + $0x40] sm:$0xff] %v3829
        %4136 = vst [vmem:[%s364 + $0x48] sm:$0xff] %v3831
        %4137 = vst [vmem:[%s364 + $0x50] sm:$0xff] %v3833
        %4138 = vst [vmem:[%s364 + $0x58] sm:$0xff] %v3835
        %4139 = vst [vmem:[%s364 + $0x60] sm:$0xff] %v3839
        %4140 = vst [vmem:[%s364 + $0x68] sm:$0xff] %v3841
        %4141 = vst [vmem:[%s364 + $0x70] sm:$0xff] %v3843
        %4142 = vst [vmem:[%s364 + $0x78] sm:$0xff] %v3845
        %4143 = vst [vmem:[%s364 + $0x80] sm:$0xff] %v3849
        %4144 = vst [vmem:[%s364 + $0x88] sm:$0xff] %v3851
        %4145 = vst [vmem:[%s364 + $0x90] sm:$0xff] %v3853
        %4146 = vst [vmem:[%s364 + $0x98] sm:$0xff] %v3855
        %4147 = vst [vmem:[%s364 + $0xa0] sm:$0xff] %v3859
        %4148 = vst [vmem:[%s364 + $0xa8] sm:$0xff] %v3861
        %4149 = vst [vmem:[%s364 + $0xb0] sm:$0xff] %v3863
        %4150 = vst [vmem:[%s364 + $0xb8] sm:$0xff] %v3865
        %4151 = vst [vmem:[%s364 + $0xc0] sm:$0xff] %v3869
        %4152 = vst [vmem:[%s364 + $0xc8] sm:$0xff] %v3871
        %4153 = vst [vmem:[%s364 + $0xd0] sm:$0xff] %v3873
        %4154 = vst [vmem:[%s364 + $0xd8] sm:$0xff] %v3875
        %4155 = vst [vmem:[%s364 + $0xe0] sm:$0xff] %v3879
        %4156 = vst [vmem:[%s364 + $0xe8] sm:$0xff] %v3881
        %4157 = vst [vmem:[%s364 + $0xf0] sm:$0xff] %v3883
        %4158 = vst [vmem:[%s364 + $0xf8] sm:$0xff] %v3885
        %4159 = vst [vmem:[%s364 + $0x100] sm:$0xff] %v3889
        %4160 = vst [vmem:[%s364 + $0x108] sm:$0xff] %v3891
        %4161 = vst [vmem:[%s364 + $0x110] sm:$0xff] %v3893
        %4162 = vst [vmem:[%s364 + $0x118] sm:$0xff] %v3895
        %4163 = vst [vmem:[%s364 + $0x120] sm:$0xff] %v3899
        %4164 = vst [vmem:[%s364 + $0x128] sm:$0xff] %v3901
        %4165 = vst [vmem:[%s364 + $0x130] sm:$0xff] %v3903
        %4166 = vst [vmem:[%s364 + $0x138] sm:$0xff] %v3905
        %4167 = vst [vmem:[%s364 + $0x140] sm:$0xff] %v3909
        %4168 = vst [vmem:[%s364 + $0x148] sm:$0xff] %v3911
        %4169 = vst [vmem:[%s364 + $0x150] sm:$0xff] %v3913
        %4170 = vst [vmem:[%s364 + $0x158] sm:$0xff] %v3915
        %4171 = vst [vmem:[%s364 + $0x160] sm:$0xff] %v3919
        %4172 = vst [vmem:[%s364 + $0x168] sm:$0xff] %v3921
        %4173 = vst [vmem:[%s364 + $0x170] sm:$0xff] %v3923
        %4174 = vst [vmem:[%s364 + $0x178] sm:$0xff] %v3925
        %4175 = vst [vmem:[%s364 + $0x180] sm:$0xff] %v3929
        %4176 = vst [vmem:[%s364 + $0x188] sm:$0xff] %v3931
        %4177 = vst [vmem:[%s364 + $0x190] sm:$0xff] %v3933
        %4178 = vst [vmem:[%s364 + $0x198] sm:$0xff] %v3935
        %4179 = vst [vmem:[%s364 + $0x1a0] sm:$0xff] %v3939
        %4180 = vst [vmem:[%s364 + $0x1a8] sm:$0xff] %v3941
        %4181 = vst [vmem:[%s364 + $0x1b0] sm:$0xff] %v3943
        %4182 = vst [vmem:[%s364 + $0x1b8] sm:$0xff] %v3945
        %4183 = vst [vmem:[%s364 + $0x1c0] sm:$0xff] %v3949
        %4184 = vst [vmem:[%s364 + $0x1c8] sm:$0xff] %v3951
        %4185 = vst [vmem:[%s364 + $0x1d0] sm:$0xff] %v3953
        %4186 = vst [vmem:[%s364 + $0x1d8] sm:$0xff] %v3955
        %4187 = vst [vmem:[%s364 + $0x1e0] sm:$0xff] %v3959
        %4188 = vst [vmem:[%s364 + $0x1e8] sm:$0xff] %v3961
        %4189 = vst [vmem:[%s364 + $0x1f0] sm:$0xff] %v3963
        %4190 = vst [vmem:[%s364 + $0x1f8] sm:$0xff] %v3965
        %4191 = vst [vmem:[%s364 + $0x200] sm:$0xff] %v3969
        %4192 = vst [vmem:[%s364 + $0x208] sm:$0xff] %v3971
        %4193 = vst [vmem:[%s364 + $0x210] sm:$0xff] %v3973
        %4194 = vst [vmem:[%s364 + $0x218] sm:$0xff] %v3975
        %4195 = vst [vmem:[%s364 + $0x220] sm:$0xff] %v3979
        %4196 = vst [vmem:[%s364 + $0x228] sm:$0xff] %v3981
        %4197 = vst [vmem:[%s364 + $0x230] sm:$0xff] %v3983
        %4198 = vst [vmem:[%s364 + $0x238] sm:$0xff] %v3985
        %4199 = vst [vmem:[%s364 + $0x240] sm:$0xff] %v3989
        %4200 = vst [vmem:[%s364 + $0x248] sm:$0xff] %v3991
        %4201 = vst [vmem:[%s364 + $0x250] sm:$0xff] %v3993
        %4202 = vst [vmem:[%s364 + $0x258] sm:$0xff] %v3995
        %4203 = vst [vmem:[%s364 + $0x260] sm:$0xff] %v3999
        %4204 = vst [vmem:[%s364 + $0x268] sm:$0xff] %v4001
        %4205 = vst [vmem:[%s364 + $0x270] sm:$0xff] %v4003
        %4206 = vst [vmem:[%s364 + $0x278] sm:$0xff] %v4005
        %4207 = vst [vmem:[%s364 + $0x280] sm:$0xff] %v4009
        %4208 = vst [vmem:[%s364 + $0x288] sm:$0xff] %v4011
        %4209 = vst [vmem:[%s364 + $0x290] sm:$0xff] %v4013
        %4210 = vst [vmem:[%s364 + $0x298] sm:$0xff] %v4015
        %4211 = vst [vmem:[%s364 + $0x2a0] sm:$0xff] %v4019
        %4212 = vst [vmem:[%s364 + $0x2a8] sm:$0xff] %v4021
        %4213 = vst [vmem:[%s364 + $0x2b0] sm:$0xff] %v4023
        %4214 = vst [vmem:[%s364 + $0x2b8] sm:$0xff] %v4025
        %4215 = vst [vmem:[%s364 + $0x2c0] sm:$0xff] %v4029
        %4216 = vst [vmem:[%s364 + $0x2c8] sm:$0xff] %v4031
        %4217 = vst [vmem:[%s364 + $0x2d0] sm:$0xff] %v4033
        %4218 = vst [vmem:[%s364 + $0x2d8] sm:$0xff] %v4035
        %4219 = vst [vmem:[%s364 + $0x2e0] sm:$0xff] %v4039
        %4220 = vst [vmem:[%s364 + $0x2e8] sm:$0xff] %v4041
        %4221 = vst [vmem:[%s364 + $0x2f0] sm:$0xff] %v4043
        %4222 = vst [vmem:[%s364 + $0x2f8] sm:$0xff] %v4045
        %4223 = vst [vmem:[%s364 + $0x300] sm:$0xff] %v4049
        %4224 = vst [vmem:[%s364 + $0x308] sm:$0xff] %v4051
        %4225 = vst [vmem:[%s364 + $0x310] sm:$0xff] %v4053
        %4226 = vst [vmem:[%s364 + $0x318] sm:$0xff] %v4055
        %4227 = vst [vmem:[%s364 + $0x320] sm:$0xff] %v4059
        %4228 = vst [vmem:[%s364 + $0x328] sm:$0xff] %v4061
        %4229 = vst [vmem:[%s364 + $0x330] sm:$0xff] %v4063
        %4230 = vst [vmem:[%s364 + $0x338] sm:$0xff] %v4065
        %4231 = vst [vmem:[%s364 + $0x340] sm:$0xff] %v4069
        %4232 = vst [vmem:[%s364 + $0x348] sm:$0xff] %v4071
        %4233 = vst [vmem:[%s364 + $0x350] sm:$0xff] %v4073
        %4234 = vst [vmem:[%s364 + $0x358] sm:$0xff] %v4075
        %4235 = vst [vmem:[%s364 + $0x360] sm:$0xff] %v4079
        %4236 = vst [vmem:[%s364 + $0x368] sm:$0xff] %v4081
        %4237 = vst [vmem:[%s364 + $0x370] sm:$0xff] %v4083
        %4238 = vst [vmem:[%s364 + $0x378] sm:$0xff] %v4085
        %4239 = vst [vmem:[%s364 + $0x380] sm:$0xff] %v4089
        %4240 = vst [vmem:[%s364 + $0x388] sm:$0xff] %v4091
        %4241 = vst [vmem:[%s364 + $0x390] sm:$0xff] %v4093
        %4242 = vst [vmem:[%s364 + $0x398] sm:$0xff] %v4095
        %4243 = vst [vmem:[%s364 + $0x3a0] sm:$0xff] %v4099
        %4244 = vst [vmem:[%s364 + $0x3a8] sm:$0xff] %v4101
        %4245 = vst [vmem:[%s364 + $0x3b0] sm:$0xff] %v4103
        %4246 = vst [vmem:[%s364 + $0x3b8] sm:$0xff] %v4105
        %4247 = vst [vmem:[%s364 + $0x3c0] sm:$0xff] %v4109
        %4248 = vst [vmem:[%s364 + $0x3c8] sm:$0xff] %v4111
        %4249 = vst [vmem:[%s364 + $0x3d0] sm:$0xff] %v4113
        %4250 = vst [vmem:[%s364 + $0x3d8] sm:$0xff] %v4115
        %4251 = vst [vmem:[%s364 + $0x3e0] sm:$0xff] %v4119
        %4252 = vst [vmem:[%s364 + $0x3e8] sm:$0xff] %v4121
        %4253 = vst [vmem:[%s364 + $0x3f0] sm:$0xff] %v4123
        %4254 = vst [vmem:[%s364 + $0x3f8] sm:$0xff] %v4125
        %s4255 = sand.u32 %s221, 1
        %s4256 = scalar_lea.sflag [#allocation6], %s4255
        %s4257 = sand.u32 %s221, 1
        %s4258 = smul.addr %s4257, 1024
        %s4259 = scalar_lea.vmem [#allocation10], %s4258
        // Predicated region
        $region69: #{dense_prediction_forward.1} parent=51 // pred_check
          %p4260 = pneg %p231
        $region70: #{dense_prediction_forward.1} parent=51 // pred_check_branch
          %4262 = sbr.rel (%p4260) target = $region72
        $region71: #{dense_prediction_forward.1} parent=51 // pred_region
          #allocation12 [shape = 'u32[6]{0}', space=smem, size = 0x18, scoped, tag = 'DMA stride descriptor']
          %s4263 = smul.u32 8, %s31
          %s4265 = ssub.s32 16384, 16384
          %4266 = vsyncadd %s4256, %s4265
          %s4267 = smul.addr %s4263, 2
          %s4268 = smul.addr %s30, 512
          %s4269 = sadd.s32 %s4267, %s4268
          %s4270 = smul.addr %s4269, 128
          %s4271 = scalar_lea.hbm %s8, %s4270
          %s4273 = sshll.u32 1, 14
          %s4274 = sxor.u32 4294967295, %s4273
          %s4277 = sshll.u32 7, 18
          %s4278 = sxor.u32 4294967295, %s4277
          %s4279 = sand.u32 0, %s4278
          %s4281 = sor.u32 %s4279, 0
          %s4283 = sshll.u32 3, 24
          %s4284 = sxor.u32 4294967295, %s4283
          %s4285 = sand.u32 %s4281, %s4284
          %s4287 = sor.u32 %s4285, 0
          %s4288 = sshll.u32 %s4259, 4
          %s4289 = int_to_ptr.vmem [resolvable:$true] %s4288
          %4295 = sst [smem:[#allocation12]] 2048
          %s4296 = scalar_lea.smem [#allocation12], 1
          %4297 = sst [smem:[%s4296]] 8192
          %s4298 = scalar_lea.smem [#allocation12], 2
          %4299 = sst [smem:[%s4298]] 8
          %s4300 = scalar_lea.smem [#allocation12], 3
          %4301 = sst [smem:[%s4300]] 256
          %s4302 = scalar_lea.smem [#allocation12], 4
          %4303 = sst [smem:[%s4302]] 256
          %s4304 = scalar_lea.smem [#allocation12], 5
          %4305 = sst [smem:[%s4304]] 16
          %4307 = dma.general %s4289, 16384, %s4271, %s4256, [#allocation11], [#allocation12], %s4287, 0
        $region72: #{dense_prediction_forward.1} parent=51 // pred_fallthru
          _
      $region52: #{dense_prediction_forward.1} parent=5 // pred_fallthru
        _
      %p4308 = scmp.le.s32.totalorder 2, %s21
      // Predicated region
      $region73: #{dense_prediction_forward.1} parent=5 // pred_check
        %p4309 = pneg %p4308
      $region74: #{dense_prediction_forward.1} parent=5 // pred_check_branch
        %4311 = sbr.rel (%p4309) target = $region76
      $region75: #{dense_prediction_forward.1} parent=5 // pred_region
        %s4312 = ssub.s32 %s21, 2
        // Predicated region
        $region77: #{dense_prediction_forward.1} parent=75 // pred_check
          %p4313 = pneg %p237
        $region78: #{dense_prediction_forward.1} parent=75 // pred_check_branch
          %4315 = sbr.rel (%p4313) target = $region80
        $region79: #{dense_prediction_forward.1} parent=75 // pred_region
          %s4316 = sand.u32 %s222, 1
          %s4317 = scalar_lea.sflag [#allocation6], %s4316
          %s4318 = sand.u32 %s222, 1
          %s4319 = smul.addr %s4318, 1024
          %s4320 = scalar_lea.vmem [#allocation10], %s4319
          %4321 = dma.done %s4317, 16384
        $region80: #{dense_prediction_forward.1} parent=75 // pred_fallthru
          _
      $region76: #{dense_prediction_forward.1} parent=5 // pred_fallthru
        _
    $region6: #{dense_prediction_forward.1} parent=1 // loop_footer
      %s25 = sadd.s32 1, %s21
    $region7: #{dense_prediction_forward.1} parent=1 // loop_footer_branch
      %20 = sbr.rel target = $region3
    $region8: #{dense_prediction_forward.1} parent=1 // loop_exit
      _
    %4322 = vsyncpa [#allocation5], 1
    %s4323 = scalar_lea.sflag [#allocation5], 1
    %4324 = vsyncpa %s4323, 1
    %4325 = vsyncpa [#allocation8], 1
    %4326 = vsyncpa [#allocation6], 1
    %s4327 = scalar_lea.sflag [#allocation6], 1
    %4328 = vsyncpa %s4327, 1

</llo_original>
